<compile_context>
chip_gen: v5e
topology: v5e:2x2
jax: 0.10.0
libtpu: 0.0.40
codegen_flags: <defaults>
</compile_context>

<pallas_src>
import functools

import jax
import jax.numpy as jnp
from jax.experimental import pallas as pl
from jax.experimental.pallas import tpu as pltpu


# --------------------------- fused kernel ------------------------------------
def _fused_head_kernel(x_ref, wT_ref, w1_ref, rew_ref, reb_ref,
                       p1w_ref, p1b_ref, p2w_ref, p2b_ref, o_ref,
                       *, T, nr_boxes, num_bins, inv_pool):
    # x_ref  : (1, C, THW) f32   raw input slab for this batch element
    # wT_ref : (D, C)      bf16  conv5 weight, pre-transposed (out, in)
    # w1_ref : (1, SR, THW)bf16  block-diag RoIAlign weights, SR = 9*T*nr_boxes,
    #                             rows ordered (bin s, frame t, box k)
    # rew_ref: (9, D, D)   bf16  region_embed weight, one (D_in, D_out) per bin
    # reb/p1b/p2b : (1, D)/(1, D)/(1, ncls) f32 biases
    # p1w/p2w     : (D, D)/(D, ncls)         f32 projection weights
    x_bf = x_ref[0].astype(jnp.bfloat16)                        # (C, THW)

    # conv5 (1x1x1 Conv3d, no bias): one MXU matmul, f32 accumulation.
    featT = jnp.dot(wT_ref[...], x_bf,
                    preferred_element_type=jnp.float32)          # (D, THW) f32
    featT_bf = featT.astype(jnp.bfloat16)

    # RoIAlign sampling for all bins/frames/boxes of this batch: single matmul
    # contracting the THW axis of both operands (q @ k.T style trans-B dot).
    sampled = jax.lax.dot_general(
        w1_ref[0], featT_bf, (((1,), (1,)), ((), ())),
        preferred_element_type=jnp.float32)                      # (SR, D) f32

    # region_embed: y[(t,k), e] = sum_s sum_d sampled[(s,t,k), d] * Wre_s[d, e]
    # Rows for bin s are the sublane-aligned slice [s*TK, (s+1)*TK).
    TK = T * nr_boxes
    D = featT.shape[0]
    acc = jnp.zeros((TK, D), jnp.float32)
    for s in range(num_bins):                                    # unrolled at trace
        acc = acc + jnp.dot(
            sampled[s * TK:(s + 1) * TK].astype(jnp.bfloat16), rew_ref[s],
            preferred_element_type=jnp.float32)
    # bias + ReLU (Dropout is identity in eval mode)
    h = jnp.maximum(acc + reb_ref[...], 0.0)                     # (TK, D)

    # mean over T then over boxes == uniform mean over the TK rows
    pooled = jnp.sum(h, axis=0, keepdims=True) * inv_pool        # (1, D)

    # projection: Linear(D, D) then Linear(D, num_classes)
    h1 = jnp.dot(pooled, p1w_ref[...],
                 preferred_element_type=jnp.float32) + p1b_ref[...]
    out = jnp.dot(h1, p2w_ref[...],
                  preferred_element_type=jnp.float32) + p2b_ref[...]
    o_ref[0] = out.astype(o_ref.dtype)                           # (1, ncls)


def fused_head(x3, wT, w1, rew3, reb, p1w, p1b, p2w, p2b,
               *, T, nr_boxes, num_bins):
    B, C, THW = x3.shape
    D = wT.shape[0]
    SR = w1.shape[1]
    ncls = p2w.shape[1]
    kernel = functools.partial(
        _fused_head_kernel, T=T, nr_boxes=nr_boxes, num_bins=num_bins,
        inv_pool=1.0 / float(T * nr_boxes))
    # TODO(synk): for much larger T*H*W (per-batch slab > ~8 MiB) add a THW grid
    # axis with a sampled-rows accumulator + pl.when(last) epilogue; at these
    # shapes the whole per-batch slab fits VMEM comfortably.
    out3 = pl.pallas_call(
        kernel,
        out_shape=jax.ShapeDtypeStruct((B, 1, ncls), jnp.float32),
        grid=(B,),
        in_specs=[
            pl.BlockSpec((1, C, THW), lambda b: (b, 0, 0)),        # x slab
            pl.BlockSpec((D, C), lambda b: (0, 0)),                # conv5 w^T
            pl.BlockSpec((1, SR, THW), lambda b: (b, 0, 0)),       # RoI weights
            pl.BlockSpec((num_bins, D, D), lambda b: (0, 0, 0)),   # region_embed w
            pl.BlockSpec((1, D), lambda b: (0, 0)),                # region_embed b
            pl.BlockSpec((D, D), lambda b: (0, 0)),                # proj1 w
            pl.BlockSpec((1, D), lambda b: (0, 0)),                # proj1 b
            pl.BlockSpec((D, ncls), lambda b: (0, 0)),             # proj2 w
            pl.BlockSpec((1, ncls), lambda b: (0, 0)),             # proj2 b
        ],
        out_specs=pl.BlockSpec((1, 1, ncls), lambda b: (b, 0, 0)),
        compiler_params=pltpu.CompilerParams(
            dimension_semantics=("parallel",),
            vmem_limit_bytes=32 * 1024 * 1024),
    )(x3, wT, w1, rew3, reb, p1w, p1b, p2w, p2b)
    return out3.reshape(B, ncls)


# ------------- host-side box conversion + RoIAlign weight matrices -----------
def box_to_normalized(boxes, crop_size=(224, 224)):
    # (cx, cy, w, h) normalized -> (x1, y1, x2, y2) in image pixels.
    # NOTE: assumes a square image (224x224), matching the module.
    cx, cy, w, h = boxes[..., 0], boxes[..., 1], boxes[..., 2], boxes[..., 3]
    x1 = (cx - w / 2.0) * crop_size[0]
    y1 = (cy - h / 2.0) * crop_size[1]
    x2 = (cx + w / 2.0) * crop_size[0]
    y2 = (cy + h / 2.0) * crop_size[1]
    return jnp.stack([x1, y1, x2, y2], axis=-1)


def _bilinear_weights_1d(coord, size):
    valid = ((coord >= -1.0) & (coord <= float(size))).astype(jnp.float32)
    c = jnp.clip(coord, 0.0, float(size - 1))
    low = jnp.floor(c)
    high = jnp.minimum(low + 1.0, float(size - 1))
    frac = c - low
    idx = jnp.arange(size, dtype=jnp.float32)
    one_low = (idx == low[..., None]).astype(jnp.float32)
    one_high = (idx == high[..., None]).astype(jnp.float32)
    w = (1.0 - frac)[..., None] * one_low + frac[..., None] * one_high
    return w * valid[..., None]


def roi_align_weight_matrix(boxes_xyxy, feat_h, feat_w, crop_h, crop_w,
                            scale_y, scale_x, sampling_ratio=2):
    # boxes_xyxy: (N, K, 4) image-pixel coords (torchvision aligned=False semantics).
    # TODO(synk): torchvision roi_align default sampling_ratio=-1 is adaptive
    # per-ROI (data-dependent sample count); fixed sampling_ratio=2 used here.
    ns = sampling_ratio
    x1 = boxes_xyxy[..., 0] * scale_x
    y1 = boxes_xyxy[..., 1] * scale_y
    x2 = boxes_xyxy[..., 2] * scale_x
    y2 = boxes_xyxy[..., 3] * scale_y
    roi_w = jnp.maximum(x2 - x1, 1.0)
    roi_h = jnp.maximum(y2 - y1, 1.0)
    bin_w = roi_w / crop_w
    bin_h = roi_h / crop_h
    off = (jnp.arange(ns, dtype=jnp.float32) + 0.5) / ns
    iy = jnp.arange(crop_h, dtype=jnp.float32)
    ix = jnp.arange(crop_w, dtype=jnp.float32)
    ycoord = (y1[..., None, None]
              + (iy[None, None, :, None] + off[None, None, None, :])
              * bin_h[..., None, None])                      # (N,K,crop_h,ns)
    xcoord = (x1[..., None, None]
              + (ix[None, None, :, None] + off[None, None, None, :])
              * bin_w[..., None, None])                      # (N,K,crop_w,ns)
    wy = _bilinear_weights_1d(ycoord, feat_h)                # (N,K,crop_h,ns,H)
    wx = _bilinear_weights_1d(xcoord, feat_w)                # (N,K,crop_w,ns,W)
    w = jnp.einsum('nkish,nkjtw->nkijhw', wy, wx,
                   precision=jax.lax.Precision.HIGHEST) / float(ns * ns)
    N, K = boxes_xyxy.shape[0], boxes_xyxy.shape[1]
    # (B*T, nr_boxes, crop_h*crop_w, feat_h*feat_w), bin index = i*crop_w + j
    return w.reshape(N, K, crop_h * crop_w, feat_h * feat_w)


# ------------------------------ full forward ---------------------------------
def hard_distangle_head_forward(x, object_boxes, params, cfg):
    B, C, T, H, W = x.shape
    D = cfg["embed_dim"]
    alpha = cfg["alpha"]
    img_size = cfg["img_size"]
    crop_h, crop_w = 3, 3
    num_bins = crop_h * crop_w
    nr_boxes = 2  # hand boxes = box_input[:, :, :2]

    # conv5 input: x viewed as (B, C, T*H*W) -- free reshape, no transpose,
    # no standalone cast pass (bf16 cast happens inside the kernel).
    x3 = x.reshape(B, C, T * H * W)
    wT = params["conv5_w"].T.astype(jnp.bfloat16)            # (D, C_in)

    # boxes: temporal stride, keep the first 2 (hand) boxes
    box_input = object_boxes[:, ::alpha]                      # (B, T, 4, 4)
    hand_box = box_input[:, :, :nr_boxes].reshape(B * T, nr_boxes, 4)
    boxes_xyxy = box_to_normalized(hand_box, (img_size, img_size))
    wmat = roi_align_weight_matrix(
        boxes_xyxy, H, W, crop_h, crop_w,
        scale_y=float(H) / img_size, scale_x=float(W) / img_size)

    # Per-batch T-fold block-diagonal sampling weights (NOT the (B*T)-wide
    # one-hot expansion): rows ordered (bin s, frame t, box k), cols (t, hw).
    wm = wmat.reshape(B, T, nr_boxes, num_bins, H * W)
    w1 = jnp.einsum('btksh,tu->bstkuh', wm, jnp.eye(T, dtype=wm.dtype))
    w1 = w1.reshape(B, num_bins * T * nr_boxes, T * H * W).astype(jnp.bfloat16)

    # region_embed weight re-ordered once so rew3[s, d_in, d_out] matches the
    # kernel's (bin, channel) layout (PyTorch flattens roi features as d*9 + s).
    rew3 = params["re_w"].reshape(D, num_bins, D).transpose(1, 0, 2)
    rew3 = rew3.astype(jnp.bfloat16)                          # (9, D, D)

    return fused_head(
        x3, wT, w1, rew3,
        params["re_b"].reshape(1, -1),
        params["p1_w"], params["p1_b"].reshape(1, -1),
        params["p2_w"], params["p2_b"].reshape(1, -1),
        T=T, nr_boxes=nr_boxes, num_bins=num_bins)


if __name__ == "__main__":
    B, C_in, T, H, W = 2, 2048, 4, 8, 8   # dim_in=2048 is fixed by the module
    alpha = 2                              # SLOWFAST.ALPHA (temporal stride)
    embed_dim = 64                         # VIT.EMBED_DIM
    num_classes = 16                       # MODEL.NUM_CLASSES
    img_size = 224

    key = jax.random.PRNGKey(0)
    ks = jax.random.split(key, 10)
    x = jax.random.normal(ks[0], (B, C_in, T, H, W), jnp.float32)

    # meta['object_boxes']: (B, T*alpha, 4, 4) in normalized (cx, cy, w, h)
    cxcy = jax.random.uniform(ks[1], (B, T * alpha, 4, 2), minval=0.25, maxval=0.75)
    wh = jax.random.uniform(ks[2], (B, T * alpha, 4, 2), minval=0.10, maxval=0.30)
    object_boxes = jnp.concatenate([cxcy, wh], axis=-1).astype(jnp.float32)

    params = {
        # conv5: Conv3d(2048, D, 1) no bias -> (C_in, D) matmul weight
        "conv5_w": 0.02 * jax.random.normal(ks[3], (C_in, embed_dim), jnp.float32),
        # region_embed Linear(D*9, D) (stored as (in, out))
        "re_w": 0.05 * jax.random.normal(ks[4], (embed_dim * 9, embed_dim), jnp.float32),
        "re_b": 0.01 * jax.random.normal(ks[5], (embed_dim,), jnp.float32),
        # projection: Linear(D, D), Linear(D, num_classes) (stored as (in, out))
        "p1_w": 0.05 * jax.random.normal(ks[6], (embed_dim, embed_dim), jnp.float32),
        "p1_b": 0.01 * jax.random.normal(ks[7], (embed_dim,), jnp.float32),
        "p2_w": 0.05 * jax.random.normal(ks[8], (embed_dim, num_classes), jnp.float32),
        "p2_b": 0.01 * jax.random.normal(ks[9], (num_classes,), jnp.float32),
    }
    cfg = {"embed_dim": embed_dim, "alpha": alpha, "img_size": img_size}

    fwd = jax.jit(functools.partial(hard_distangle_head_forward, cfg=cfg))
    out = fwd(x, object_boxes, params)
    out = jax.block_until_ready(out)
    assert out.shape == (B, num_classes), out.shape
    print("KERNEL_OK")
</pallas_src>

<mosaic_0001>
module attributes {stable_mosaic.version = 11 : i64} {
  func.func @_fused_head_kernel(%arg0: i32, %arg1: memref<1x2048x256xf32, #tpu.memory_space<vmem>>, %arg2: memref<64x2048xbf16, #tpu.memory_space<vmem>>, %arg3: memref<1x72x256xbf16, #tpu.memory_space<vmem>>, %arg4: memref<9x64x64xbf16, #tpu.memory_space<vmem>>, %arg5: memref<1x64xf32, #tpu.memory_space<vmem>>, %arg6: memref<64x64xf32, #tpu.memory_space<vmem>>, %arg7: memref<1x64xf32, #tpu.memory_space<vmem>>, %arg8: memref<64x16xf32, #tpu.memory_space<vmem>>, %arg9: memref<1x16xf32, #tpu.memory_space<vmem>>, %arg10: memref<1x1x16xf32, #tpu.memory_space<vmem>>) attributes {dimension_semantics = [#tpu.dimension_semantics<parallel>], iteration_bounds = array<i64: 2>, scalar_prefetch = 0 : i64, scratch_operands = 0 : i64, tpu.core_type = #tpu.core_type<tc>, window_params = [{transform_indices = @transform_0, window_bounds = array<i64: 1, 2048, 256>}, {pipeline_mode = #tpu.pipeline_mode<synchronous>, transform_indices = @transform_1, window_bounds = array<i64: 64, 2048>}, {transform_indices = @transform_2, window_bounds = array<i64: 1, 72, 256>}, {pipeline_mode = #tpu.pipeline_mode<synchronous>, transform_indices = @transform_3, window_bounds = array<i64: 9, 64, 64>}, {pipeline_mode = #tpu.pipeline_mode<synchronous>, transform_indices = @transform_4, window_bounds = array<i64: 1, 64>}, {pipeline_mode = #tpu.pipeline_mode<synchronous>, transform_indices = @transform_5, window_bounds = array<i64: 64, 64>}, {pipeline_mode = #tpu.pipeline_mode<synchronous>, transform_indices = @transform_6, window_bounds = array<i64: 1, 64>}, {pipeline_mode = #tpu.pipeline_mode<synchronous>, transform_indices = @transform_7, window_bounds = array<i64: 64, 16>}, {pipeline_mode = #tpu.pipeline_mode<synchronous>, transform_indices = @transform_8, window_bounds = array<i64: 1, 16>}, {transform_indices = @transform_9, window_bounds = array<i64: 1, 1, 16>}]} {
    %c0 = arith.constant 0 : index
    %c0_0 = arith.constant 0 : index
    %c0_1 = arith.constant 0 : index
    %0 = vector.load %arg1[%c0, %c0_0, %c0_1] : memref<1x2048x256xf32, #tpu.memory_space<vmem>>, vector<1x2048x256xf32>
    %1 = vector.shape_cast %0 : vector<1x2048x256xf32> to vector<2048x256xf32>
    %2 = arith.truncf %1 : vector<2048x256xf32> to vector<2048x256xbf16>
    %c0_2 = arith.constant 0 : index
    %c0_3 = arith.constant 0 : index
    %3 = vector.load %arg2[%c0_2, %c0_3] : memref<64x2048xbf16, #tpu.memory_space<vmem>>, vector<64x2048xbf16>
    %cst = arith.constant dense<0.000000e+00> : vector<64x256xf32>
    %4 = tpu.matmul %3, %2, %cst {dimension_numbers = #tpu.dot_dimension_numbers<[1], [0], [0], [1], [0, 0, 1, 1], [], []>} : vector<64x2048xbf16>, vector<2048x256xbf16>, vector<64x256xf32> -> vector<64x256xf32>
    %5 = arith.truncf %4 : vector<64x256xf32> to vector<64x256xbf16>
    %c0_4 = arith.constant 0 : index
    %c0_5 = arith.constant 0 : index
    %c0_6 = arith.constant 0 : index
    %6 = vector.load %arg3[%c0_4, %c0_5, %c0_6] : memref<1x72x256xbf16, #tpu.memory_space<vmem>>, vector<1x72x256xbf16>
    %7 = vector.shape_cast %6 : vector<1x72x256xbf16> to vector<72x256xbf16>
    %cst_7 = arith.constant dense<0.000000e+00> : vector<72x64xf32>
    %8 = tpu.matmul %7, %5, %cst_7 {dimension_numbers = #tpu.dot_dimension_numbers<[1], [1], [0], [0], [0, 0, 1, 0], [], []>} : vector<72x256xbf16>, vector<64x256xbf16>, vector<72x64xf32> -> vector<72x64xf32>
    %cst_8 = arith.constant 0.000000e+00 : f32
    %9 = vector.broadcast %cst_8 : f32 to vector<8x64xf32>
    %10 = vector.extract_strided_slice %8 {offsets = [0, 0], sizes = [8, 64], strides = [1, 1]} : vector<72x64xf32> to vector<8x64xf32>
    %11 = arith.truncf %10 : vector<8x64xf32> to vector<8x64xbf16>
    %c0_9 = arith.constant 0 : index
    %c0_10 = arith.constant 0 : index
    %c0_11 = arith.constant 0 : index
    %12 = vector.load %arg4[%c0_9, %c0_10, %c0_11] : memref<9x64x64xbf16, #tpu.memory_space<vmem>>, vector<1x64x64xbf16>
    %13 = vector.shape_cast %12 : vector<1x64x64xbf16> to vector<64x64xbf16>
    %cst_12 = arith.constant dense<0.000000e+00> : vector<8x64xf32>
    %14 = tpu.matmul %11, %13, %cst_12 {dimension_numbers = #tpu.dot_dimension_numbers<[1], [0], [0], [1], [0, 0, 1, 1], [], []>} : vector<8x64xbf16>, vector<64x64xbf16>, vector<8x64xf32> -> vector<8x64xf32>
    %15 = arith.addf %9, %14 : vector<8x64xf32>
    %16 = vector.extract_strided_slice %8 {offsets = [8, 0], sizes = [8, 64], strides = [1, 1]} : vector<72x64xf32> to vector<8x64xf32>
    %17 = arith.truncf %16 : vector<8x64xf32> to vector<8x64xbf16>
    %c1 = arith.constant 1 : index
    %c0_13 = arith.constant 0 : index
    %c0_14 = arith.constant 0 : index
    %18 = vector.load %arg4[%c1, %c0_13, %c0_14] : memref<9x64x64xbf16, #tpu.memory_space<vmem>>, vector<1x64x64xbf16>
    %19 = vector.shape_cast %18 : vector<1x64x64xbf16> to vector<64x64xbf16>
    %cst_15 = arith.constant dense<0.000000e+00> : vector<8x64xf32>
    %20 = tpu.matmul %17, %19, %cst_15 {dimension_numbers = #tpu.dot_dimension_numbers<[1], [0], [0], [1], [0, 0, 1, 1], [], []>} : vector<8x64xbf16>, vector<64x64xbf16>, vector<8x64xf32> -> vector<8x64xf32>
    %21 = arith.addf %15, %20 : vector<8x64xf32>
    %22 = vector.extract_strided_slice %8 {offsets = [16, 0], sizes = [8, 64], strides = [1, 1]} : vector<72x64xf32> to vector<8x64xf32>
    %23 = arith.truncf %22 : vector<8x64xf32> to vector<8x64xbf16>
    %c2 = arith.constant 2 : index
    %c0_16 = arith.constant 0 : index
    %c0_17 = arith.constant 0 : index
    %24 = vector.load %arg4[%c2, %c0_16, %c0_17] : memref<9x64x64xbf16, #tpu.memory_space<vmem>>, vector<1x64x64xbf16>
    %25 = vector.shape_cast %24 : vector<1x64x64xbf16> to vector<64x64xbf16>
    %cst_18 = arith.constant dense<0.000000e+00> : vector<8x64xf32>
    %26 = tpu.matmul %23, %25, %cst_18 {dimension_numbers = #tpu.dot_dimension_numbers<[1], [0], [0], [1], [0, 0, 1, 1], [], []>} : vector<8x64xbf16>, vector<64x64xbf16>, vector<8x64xf32> -> vector<8x64xf32>
    %27 = arith.addf %21, %26 : vector<8x64xf32>
    %28 = vector.extract_strided_slice %8 {offsets = [24, 0], sizes = [8, 64], strides = [1, 1]} : vector<72x64xf32> to vector<8x64xf32>
    %29 = arith.truncf %28 : vector<8x64xf32> to vector<8x64xbf16>
    %c3 = arith.constant 3 : index
    %c0_19 = arith.constant 0 : index
    %c0_20 = arith.constant 0 : index
    %30 = vector.load %arg4[%c3, %c0_19, %c0_20] : memref<9x64x64xbf16, #tpu.memory_space<vmem>>, vector<1x64x64xbf16>
    %31 = vector.shape_cast %30 : vector<1x64x64xbf16> to vector<64x64xbf16>
    %cst_21 = arith.constant dense<0.000000e+00> : vector<8x64xf32>
    %32 = tpu.matmul %29, %31, %cst_21 {dimension_numbers = #tpu.dot_dimension_numbers<[1], [0], [0], [1], [0, 0, 1, 1], [], []>} : vector<8x64xbf16>, vector<64x64xbf16>, vector<8x64xf32> -> vector<8x64xf32>
    %33 = arith.addf %27, %32 : vector<8x64xf32>
    %34 = vector.extract_strided_slice %8 {offsets = [32, 0], sizes = [8, 64], strides = [1, 1]} : vector<72x64xf32> to vector<8x64xf32>
    %35 = arith.truncf %34 : vector<8x64xf32> to vector<8x64xbf16>
    %c4 = arith.constant 4 : index
    %c0_22 = arith.constant 0 : index
    %c0_23 = arith.constant 0 : index
    %36 = vector.load %arg4[%c4, %c0_22, %c0_23] : memref<9x64x64xbf16, #tpu.memory_space<vmem>>, vector<1x64x64xbf16>
    %37 = vector.shape_cast %36 : vector<1x64x64xbf16> to vector<64x64xbf16>
    %cst_24 = arith.constant dense<0.000000e+00> : vector<8x64xf32>
    %38 = tpu.matmul %35, %37, %cst_24 {dimension_numbers = #tpu.dot_dimension_numbers<[1], [0], [0], [1], [0, 0, 1, 1], [], []>} : vector<8x64xbf16>, vector<64x64xbf16>, vector<8x64xf32> -> vector<8x64xf32>
    %39 = arith.addf %33, %38 : vector<8x64xf32>
    %40 = vector.extract_strided_slice %8 {offsets = [40, 0], sizes = [8, 64], strides = [1, 1]} : vector<72x64xf32> to vector<8x64xf32>
    %41 = arith.truncf %40 : vector<8x64xf32> to vector<8x64xbf16>
    %c5 = arith.constant 5 : index
    %c0_25 = arith.constant 0 : index
    %c0_26 = arith.constant 0 : index
    %42 = vector.load %arg4[%c5, %c0_25, %c0_26] : memref<9x64x64xbf16, #tpu.memory_space<vmem>>, vector<1x64x64xbf16>
    %43 = vector.shape_cast %42 : vector<1x64x64xbf16> to vector<64x64xbf16>
    %cst_27 = arith.constant dense<0.000000e+00> : vector<8x64xf32>
    %44 = tpu.matmul %41, %43, %cst_27 {dimension_numbers = #tpu.dot_dimension_numbers<[1], [0], [0], [1], [0, 0, 1, 1], [], []>} : vector<8x64xbf16>, vector<64x64xbf16>, vector<8x64xf32> -> vector<8x64xf32>
    %45 = arith.addf %39, %44 : vector<8x64xf32>
    %46 = vector.extract_strided_slice %8 {offsets = [48, 0], sizes = [8, 64], strides = [1, 1]} : vector<72x64xf32> to vector<8x64xf32>
    %47 = arith.truncf %46 : vector<8x64xf32> to vector<8x64xbf16>
    %c6 = arith.constant 6 : index
    %c0_28 = arith.constant 0 : index
    %c0_29 = arith.constant 0 : index
    %48 = vector.load %arg4[%c6, %c0_28, %c0_29] : memref<9x64x64xbf16, #tpu.memory_space<vmem>>, vector<1x64x64xbf16>
    %49 = vector.shape_cast %48 : vector<1x64x64xbf16> to vector<64x64xbf16>
    %cst_30 = arith.constant dense<0.000000e+00> : vector<8x64xf32>
    %50 = tpu.matmul %47, %49, %cst_30 {dimension_numbers = #tpu.dot_dimension_numbers<[1], [0], [0], [1], [0, 0, 1, 1], [], []>} : vector<8x64xbf16>, vector<64x64xbf16>, vector<8x64xf32> -> vector<8x64xf32>
    %51 = arith.addf %45, %50 : vector<8x64xf32>
    %52 = vector.extract_strided_slice %8 {offsets = [56, 0], sizes = [8, 64], strides = [1, 1]} : vector<72x64xf32> to vector<8x64xf32>
    %53 = arith.truncf %52 : vector<8x64xf32> to vector<8x64xbf16>
    %c7 = arith.constant 7 : index
    %c0_31 = arith.constant 0 : index
    %c0_32 = arith.constant 0 : index
    %54 = vector.load %arg4[%c7, %c0_31, %c0_32] : memref<9x64x64xbf16, #tpu.memory_space<vmem>>, vector<1x64x64xbf16>
    %55 = vector.shape_cast %54 : vector<1x64x64xbf16> to vector<64x64xbf16>
    %cst_33 = arith.constant dense<0.000000e+00> : vector<8x64xf32>
    %56 = tpu.matmul %53, %55, %cst_33 {dimension_numbers = #tpu.dot_dimension_numbers<[1], [0], [0], [1], [0, 0, 1, 1], [], []>} : vector<8x64xbf16>, vector<64x64xbf16>, vector<8x64xf32> -> vector<8x64xf32>
    %57 = arith.addf %51, %56 : vector<8x64xf32>
    %58 = vector.extract_strided_slice %8 {offsets = [64, 0], sizes = [8, 64], strides = [1, 1]} : vector<72x64xf32> to vector<8x64xf32>
    %59 = arith.truncf %58 : vector<8x64xf32> to vector<8x64xbf16>
    %c8 = arith.constant 8 : index
    %c0_34 = arith.constant 0 : index
    %c0_35 = arith.constant 0 : index
    %60 = vector.load %arg4[%c8, %c0_34, %c0_35] : memref<9x64x64xbf16, #tpu.memory_space<vmem>>, vector<1x64x64xbf16>
    %61 = vector.shape_cast %60 : vector<1x64x64xbf16> to vector<64x64xbf16>
    %cst_36 = arith.constant dense<0.000000e+00> : vector<8x64xf32>
    %62 = tpu.matmul %59, %61, %cst_36 {dimension_numbers = #tpu.dot_dimension_numbers<[1], [0], [0], [1], [0, 0, 1, 1], [], []>} : vector<8x64xbf16>, vector<64x64xbf16>, vector<8x64xf32> -> vector<8x64xf32>
    %63 = arith.addf %57, %62 : vector<8x64xf32>
    %c0_37 = arith.constant 0 : index
    %c0_38 = arith.constant 0 : index
    %64 = vector.load %arg5[%c0_37, %c0_38] : memref<1x64xf32, #tpu.memory_space<vmem>>, vector<1x64xf32>
    %65 = vector.broadcast %64 : vector<1x64xf32> to vector<8x64xf32>
    %66 = arith.addf %63, %65 : vector<8x64xf32>
    %cst_39 = arith.constant 0.000000e+00 : f32
    %67 = vector.broadcast %cst_39 : f32 to vector<8x64xf32>
    %68 = arith.maximumf %66, %67 : vector<8x64xf32>
    %cst_40 = arith.constant dense<0.000000e+00> : vector<64xf32>
    %69 = vector.multi_reduction <add>, %68, %cst_40 [0] : vector<8x64xf32> to vector<64xf32>
    %70 = vector.shape_cast %69 : vector<64xf32> to vector<1x64xf32>
    %cst_41 = arith.constant 1.250000e-01 : f32
    %71 = vector.broadcast %cst_41 : f32 to vector<1x64xf32>
    %72 = arith.mulf %70, %71 : vector<1x64xf32>
    %c0_42 = arith.constant 0 : index
    %c0_43 = arith.constant 0 : index
    %73 = vector.load %arg6[%c0_42, %c0_43] : memref<64x64xf32, #tpu.memory_space<vmem>>, vector<64x64xf32>
    %cst_44 = arith.constant dense<0.000000e+00> : vector<1x64xf32>
    %74 = tpu.matmul %72, %73, %cst_44 {dimension_numbers = #tpu.dot_dimension_numbers<[1], [0], [0], [1], [0, 0, 1, 1], [], []>} : vector<1x64xf32>, vector<64x64xf32>, vector<1x64xf32> -> vector<1x64xf32>
    %c0_45 = arith.constant 0 : index
    %c0_46 = arith.constant 0 : index
    %75 = vector.load %arg7[%c0_45, %c0_46] : memref<1x64xf32, #tpu.memory_space<vmem>>, vector<1x64xf32>
    %76 = arith.addf %74, %75 : vector<1x64xf32>
    %c0_47 = arith.constant 0 : index
    %c0_48 = arith.constant 0 : index
    %77 = vector.load %arg8[%c0_47, %c0_48] : memref<64x16xf32, #tpu.memory_space<vmem>>, vector<64x16xf32>
    %cst_49 = arith.constant dense<0.000000e+00> : vector<1x16xf32>
    %78 = tpu.matmul %76, %77, %cst_49 {dimension_numbers = #tpu.dot_dimension_numbers<[1], [0], [0], [1], [0, 0, 1, 1], [], []>} : vector<1x64xf32>, vector<64x16xf32>, vector<1x16xf32> -> vector<1x16xf32>
    %c0_50 = arith.constant 0 : index
    %c0_51 = arith.constant 0 : index
    %79 = vector.load %arg9[%c0_50, %c0_51] : memref<1x16xf32, #tpu.memory_space<vmem>>, vector<1x16xf32>
    %80 = arith.addf %78, %79 : vector<1x16xf32>
    %c0_52 = arith.constant 0 : index
    %c0_53 = arith.constant 0 : index
    %c0_54 = arith.constant 0 : index
    %81 = vector.load %arg10[%c0_52, %c0_53, %c0_54] : memref<1x1x16xf32, #tpu.memory_space<vmem>>, vector<1x1x16xf32>
    %82 = vector.shape_cast %81 : vector<1x1x16xf32> to vector<1x16xf32>
    %83 = vector.shape_cast %80 : vector<1x16xf32> to vector<1x1x16xf32>
    tpu.vector_store %arg10[%c0_52, %c0_53, %c0_54], %83 {strides = array<i32>} : memref<1x1x16xf32, #tpu.memory_space<vmem>>, vector<1x1x16xf32>,
    return
  }
  func.func @transform_0(%arg0: i32) -> (i32, i32, i32) {
    %c0_i32 = arith.constant 0 : i32
    %c0_i32_0 = arith.constant 0 : i32
    %c0_i32_1 = arith.constant 0 : i32
    return %arg0, %c0_i32, %c0_i32_0 : i32, i32, i32
  }
  func.func @transform_1(%arg0: i32) -> (i32, i32) {
    %c0_i32 = arith.constant 0 : i32
    %c0_i32_0 = arith.constant 0 : i32
    %c0_i32_1 = arith.constant 0 : i32
    return %c0_i32, %c0_i32_0 : i32, i32
  }
  func.func @transform_2(%arg0: i32) -> (i32, i32, i32) {
    %c0_i32 = arith.constant 0 : i32
    %c0_i32_0 = arith.constant 0 : i32
    %c0_i32_1 = arith.constant 0 : i32
    return %arg0, %c0_i32, %c0_i32_0 : i32, i32, i32
  }
  func.func @transform_3(%arg0: i32) -> (i32, i32, i32) {
    %c0_i32 = arith.constant 0 : i32
    %c0_i32_0 = arith.constant 0 : i32
    %c0_i32_1 = arith.constant 0 : i32
    %c0_i32_2 = arith.constant 0 : i32
    return %c0_i32, %c0_i32_0, %c0_i32_1 : i32, i32, i32
  }
  func.func @transform_4(%arg0: i32) -> (i32, i32) {
    %c0_i32 = arith.constant 0 : i32
    %c0_i32_0 = arith.constant 0 : i32
    %c0_i32_1 = arith.constant 0 : i32
    return %c0_i32, %c0_i32_0 : i32, i32
  }
  func.func @transform_5(%arg0: i32) -> (i32, i32) {
    %c0_i32 = arith.constant 0 : i32
    %c0_i32_0 = arith.constant 0 : i32
    %c0_i32_1 = arith.constant 0 : i32
    return %c0_i32, %c0_i32_0 : i32, i32
  }
  func.func @transform_6(%arg0: i32) -> (i32, i32) {
    %c0_i32 = arith.constant 0 : i32
    %c0_i32_0 = arith.constant 0 : i32
    %c0_i32_1 = arith.constant 0 : i32
    return %c0_i32, %c0_i32_0 : i32, i32
  }
  func.func @transform_7(%arg0: i32) -> (i32, i32) {
    %c0_i32 = arith.constant 0 : i32
    %c0_i32_0 = arith.constant 0 : i32
    %c0_i32_1 = arith.constant 0 : i32
    return %c0_i32, %c0_i32_0 : i32, i32
  }
  func.func @transform_8(%arg0: i32) -> (i32, i32) {
    %c0_i32 = arith.constant 0 : i32
    %c0_i32_0 = arith.constant 0 : i32
    %c0_i32_1 = arith.constant 0 : i32
    return %c0_i32, %c0_i32_0 : i32, i32
  }
  func.func @transform_9(%arg0: i32) -> (i32, i32, i32) {
    %c0_i32 = arith.constant 0 : i32
    %c0_i32_0 = arith.constant 0 : i32
    %c0_i32_1 = arith.constant 0 : i32
    return %arg0, %c0_i32, %c0_i32_0 : i32, i32, i32
  }
}

</mosaic_0001>

<llo_original>
// kernel: hard_distangle_head_forward.1
$region0: #{hard_distangle_head_forward.1}
  #allocation0 [shape = 'u32[]', space=smem, size = 0x4, offset = 0x4, fixed_abs, tag = 'smem constant byte address 0x4 - core index']
  #allocation1 [shape = 'u32[72,128]{1,0:T(1,128)}', space=vmem, size = 0x9000, scoped, tag = 'internal scratch']
  %s0 = inlined_call_operand.vmem [shape: f32[2,2048,256], index: 0, kind: input, shape index: {}]
  %s1 = inlined_call_operand.vmem [shape: bf16[64,2048], index: 1, kind: input, shape index: {}]
  %s2 = inlined_call_operand.vmem [shape: bf16[2,72,256], index: 2, kind: input, shape index: {}]
  %s3 = inlined_call_operand.vmem [shape: bf16[9,64,64], index: 3, kind: input, shape index: {}]
  %s4 = inlined_call_operand.vmem [shape: f32[1,64], index: 4, kind: input, shape index: {}]
  %s5 = inlined_call_operand.vmem [shape: f32[64,64], index: 5, kind: input, shape index: {}]
  %s6 = inlined_call_operand.vmem [shape: f32[1,64], index: 6, kind: input, shape index: {}]
  %s7 = inlined_call_operand.vmem [shape: f32[64,16], index: 7, kind: input, shape index: {}]
  %s8 = inlined_call_operand.vmem [shape: f32[1,16], index: 8, kind: input, shape index: {}]
  %s9 = inlined_call_operand.hbm [shape: f32[2,1,16], index: 9, kind: output, shape index: {}]
  %s10 = sld [smem:[#allocation0]]
  $region69: #{hard_distangle_head_forward.1} parent=0
    _
  %s12 = ssub.s32 1, %s10
  %s13 = scalar_select 0, %s12, %s10
  $region1: #{hard_distangle_head_forward.1} parent=0
    #allocation2 [shape = 'u8[1024]{0}', space=vmem, size = 0x400, scoped, tag = 'output window, operand 0']
    #allocation3 [shape = 's32[2]{0}', space=sflag, size = 0x8, scoped, tag = 'scoped memory for hard_distangle_head_forward.1']
    %14 = vsyncpa [#allocation3], 0
    %s15 = scalar_lea.sflag [#allocation3], 1
    %16 = vsyncpa %s15, 0
    loop: start=0, step=1, limit=4
    $region2: #{hard_distangle_head_forward.1} parent=1 // loop_pre_header
      _
    $region3: #{hard_distangle_head_forward.1} parent=1 // loop_header
      %s18 = sphi 0, %s22
      %p19 = scmp.ge.s32.totalorder %s18, 4
      %s28 = sphi 0, %s30
      %s31 = sphi 0, %s28
      %s32 = sphi 0, %s31
      %s48 = sphi 0, %s32
      %s52 = sphi 0, %s52
      %s54 = sphi 0, %s52
      %s55 = sphi 0, %s54
      %s69 = sphi 0, %s55
      %s75 = sphi 0, %s77
      %s78 = sphi 0, %s75
      %s79 = sphi 0, %s78
      %s95 = sphi 0, %s79
      %s99 = sphi 0, %s99
      %s101 = sphi 0, %s99
      %s102 = sphi 0, %s101
      %s116 = sphi 0, %s102
      %s120 = sphi 0, %s120
      %s122 = sphi 0, %s120
      %s123 = sphi 0, %s122
      %s137 = sphi 0, %s123
      %s141 = sphi 0, %s141
      %s143 = sphi 0, %s141
      %s144 = sphi 0, %s143
      %s158 = sphi 0, %s144
      %s162 = sphi 0, %s162
      %s164 = sphi 0, %s162
      %s165 = sphi 0, %s164
      %s179 = sphi 0, %s165
      %s183 = sphi 0, %s183
      %s185 = sphi 0, %s183
      %s186 = sphi 0, %s185
      %s200 = sphi 0, %s186
      %s204 = sphi 0, %s204
      %s206 = sphi 0, %s204
      %s207 = sphi 0, %s206
      %s221 = sphi 0, %s207
      %s227 = sphi 0, %s229
      %s230 = sphi 0, %s227
      %s231 = sphi 0, %s230
      %s247 = sphi 0, %s231
    $region4: #{hard_distangle_head_forward.1} parent=1 // loop_header_branch
      %21 = sbr.rel (%p19) target = $region8
    $region5: #{hard_distangle_head_forward.1} parent=1 // loop_body
      %s23 = ssub.s32 %s18, 1
      %s24 = ssub.s32 %s18, 2
      %s25 = sadd.s32 %s18, 1
      %s26 = ssub.s32 %s18, %s25
      %p27 = scmp.eq.s32.totalorder %s26, 0
      %s29 = sadd.s32 %s28, 1
      %s30 = scalar_select %p27, %s28, %s29
      %p33 = pneg %p27
      %p34 = scmp.eq.s32.totalorder %s18, 1
      %p35 = por %p33, %p34
      %p36 = scmp.ne.s32.totalorder %s28, %s31
      %p37 = scmp.eq.s32.totalorder %s18, 0
      %p38 = por %p36, %p37
      %p39 = scmp.ne.s32.totalorder %s28, %s31
      %p40 = scmp.eq.s32.totalorder %s23, 1
      %p41 = por %p39, %p40
      %p42 = scmp.ne.s32.totalorder %s31, %s32
      %p43 = scmp.eq.s32.totalorder %s23, 0
      %p44 = por %p42, %p43
      %p45 = scmp.ne.s32.totalorder %s31, %s32
      %p46 = scmp.eq.s32.totalorder %s24, 1
      %p47 = por %p45, %p46
      %p49 = scmp.ne.s32.totalorder %s32, %s48
      %p50 = scmp.eq.s32.totalorder %s24, 0
      %p51 = por %p49, %p50
      %s53 = sadd.s32 %s52, 1
      %p56 = scmp.eq.s32.totalorder %s18, 1
      %p57 = scmp.ne.s32.totalorder %s52, %s54
      %p58 = scmp.eq.s32.totalorder %s18, 0
      %p59 = por %p57, %p58
      %p60 = scmp.ne.s32.totalorder %s52, %s54
      %p61 = scmp.eq.s32.totalorder %s23, 1
      %p62 = por %p60, %p61
      %p63 = scmp.ne.s32.totalorder %s54, %s55
      %p64 = scmp.eq.s32.totalorder %s23, 0
      %p65 = por %p63, %p64
      %p66 = scmp.ne.s32.totalorder %s54, %s55
      %p67 = scmp.eq.s32.totalorder %s24, 1
      %p68 = por %p66, %p67
      %p70 = scmp.ne.s32.totalorder %s55, %s69
      %p71 = scmp.eq.s32.totalorder %s24, 0
      %p72 = por %p70, %p71
      %s73 = ssub.s32 %s18, %s25
      %p74 = scmp.eq.s32.totalorder %s73, 0
      %s76 = sadd.s32 %s75, 1
      %s77 = scalar_select %p74, %s75, %s76
      %p80 = pneg %p74
      %p81 = scmp.eq.s32.totalorder %s18, 1
      %p82 = por %p80, %p81
      %p83 = scmp.ne.s32.totalorder %s75, %s78
      %p84 = scmp.eq.s32.totalorder %s18, 0
      %p85 = por %p83, %p84
      %p86 = scmp.ne.s32.totalorder %s75, %s78
      %p87 = scmp.eq.s32.totalorder %s23, 1
      %p88 = por %p86, %p87
      %p89 = scmp.ne.s32.totalorder %s78, %s79
      %p90 = scmp.eq.s32.totalorder %s23, 0
      %p91 = por %p89, %p90
      %p92 = scmp.ne.s32.totalorder %s78, %s79
      %p93 = scmp.eq.s32.totalorder %s24, 1
      %p94 = por %p92, %p93
      %p96 = scmp.ne.s32.totalorder %s79, %s95
      %p97 = scmp.eq.s32.totalorder %s24, 0
      %p98 = por %p96, %p97
      %s100 = sadd.s32 %s99, 1
      %p103 = scmp.eq.s32.totalorder %s18, 1
      %p104 = scmp.ne.s32.totalorder %s99, %s101
      %p105 = scmp.eq.s32.totalorder %s18, 0
      %p106 = por %p104, %p105
      %p107 = scmp.ne.s32.totalorder %s99, %s101
      %p108 = scmp.eq.s32.totalorder %s23, 1
      %p109 = por %p107, %p108
      %p110 = scmp.ne.s32.totalorder %s101, %s102
      %p111 = scmp.eq.s32.totalorder %s23, 0
      %p112 = por %p110, %p111
      %p113 = scmp.ne.s32.totalorder %s101, %s102
      %p114 = scmp.eq.s32.totalorder %s24, 1
      %p115 = por %p113, %p114
      %p117 = scmp.ne.s32.totalorder %s102, %s116
      %p118 = scmp.eq.s32.totalorder %s24, 0
      %p119 = por %p117, %p118
      %s121 = sadd.s32 %s120, 1
      %p124 = scmp.eq.s32.totalorder %s18, 1
      %p125 = scmp.ne.s32.totalorder %s120, %s122
      %p126 = scmp.eq.s32.totalorder %s18, 0
      %p127 = por %p125, %p126
      %p128 = scmp.ne.s32.totalorder %s120, %s122
      %p129 = scmp.eq.s32.totalorder %s23, 1
      %p130 = por %p128, %p129
      %p131 = scmp.ne.s32.totalorder %s122, %s123
      %p132 = scmp.eq.s32.totalorder %s23, 0
      %p133 = por %p131, %p132
      %p134 = scmp.ne.s32.totalorder %s122, %s123
      %p135 = scmp.eq.s32.totalorder %s24, 1
      %p136 = por %p134, %p135
      %p138 = scmp.ne.s32.totalorder %s123, %s137
      %p139 = scmp.eq.s32.totalorder %s24, 0
      %p140 = por %p138, %p139
      %s142 = sadd.s32 %s141, 1
      %p145 = scmp.eq.s32.totalorder %s18, 1
      %p146 = scmp.ne.s32.totalorder %s141, %s143
      %p147 = scmp.eq.s32.totalorder %s18, 0
      %p148 = por %p146, %p147
      %p149 = scmp.ne.s32.totalorder %s141, %s143
      %p150 = scmp.eq.s32.totalorder %s23, 1
      %p151 = por %p149, %p150
      %p152 = scmp.ne.s32.totalorder %s143, %s144
      %p153 = scmp.eq.s32.totalorder %s23, 0
      %p154 = por %p152, %p153
      %p155 = scmp.ne.s32.totalorder %s143, %s144
      %p156 = scmp.eq.s32.totalorder %s24, 1
      %p157 = por %p155, %p156
      %p159 = scmp.ne.s32.totalorder %s144, %s158
      %p160 = scmp.eq.s32.totalorder %s24, 0
      %p161 = por %p159, %p160
      %s163 = sadd.s32 %s162, 1
      %p166 = scmp.eq.s32.totalorder %s18, 1
      %p167 = scmp.ne.s32.totalorder %s162, %s164
      %p168 = scmp.eq.s32.totalorder %s18, 0
      %p169 = por %p167, %p168
      %p170 = scmp.ne.s32.totalorder %s162, %s164
      %p171 = scmp.eq.s32.totalorder %s23, 1
      %p172 = por %p170, %p171
      %p173 = scmp.ne.s32.totalorder %s164, %s165
      %p174 = scmp.eq.s32.totalorder %s23, 0
      %p175 = por %p173, %p174
      %p176 = scmp.ne.s32.totalorder %s164, %s165
      %p177 = scmp.eq.s32.totalorder %s24, 1
      %p178 = por %p176, %p177
      %p180 = scmp.ne.s32.totalorder %s165, %s179
      %p181 = scmp.eq.s32.totalorder %s24, 0
      %p182 = por %p180, %p181
      %s184 = sadd.s32 %s183, 1
      %p187 = scmp.eq.s32.totalorder %s18, 1
      %p188 = scmp.ne.s32.totalorder %s183, %s185
      %p189 = scmp.eq.s32.totalorder %s18, 0
      %p190 = por %p188, %p189
      %p191 = scmp.ne.s32.totalorder %s183, %s185
      %p192 = scmp.eq.s32.totalorder %s23, 1
      %p193 = por %p191, %p192
      %p194 = scmp.ne.s32.totalorder %s185, %s186
      %p195 = scmp.eq.s32.totalorder %s23, 0
      %p196 = por %p194, %p195
      %p197 = scmp.ne.s32.totalorder %s185, %s186
      %p198 = scmp.eq.s32.totalorder %s24, 1
      %p199 = por %p197, %p198
      %p201 = scmp.ne.s32.totalorder %s186, %s200
      %p202 = scmp.eq.s32.totalorder %s24, 0
      %p203 = por %p201, %p202
      %s205 = sadd.s32 %s204, 1
      %p208 = scmp.eq.s32.totalorder %s18, 1
      %p209 = scmp.ne.s32.totalorder %s204, %s206
      %p210 = scmp.eq.s32.totalorder %s18, 0
      %p211 = por %p209, %p210
      %p212 = scmp.ne.s32.totalorder %s204, %s206
      %p213 = scmp.eq.s32.totalorder %s23, 1
      %p214 = por %p212, %p213
      %p215 = scmp.ne.s32.totalorder %s206, %s207
      %p216 = scmp.eq.s32.totalorder %s23, 0
      %p217 = por %p215, %p216
      %p218 = scmp.ne.s32.totalorder %s206, %s207
      %p219 = scmp.eq.s32.totalorder %s24, 1
      %p220 = por %p218, %p219
      %p222 = scmp.ne.s32.totalorder %s207, %s221
      %p223 = scmp.eq.s32.totalorder %s24, 0
      %p224 = por %p222, %p223
      %s225 = ssub.s32 %s18, %s25
      %p226 = scmp.eq.s32.totalorder %s225, 0
      %s228 = sadd.s32 %s227, 1
      %s229 = scalar_select %p226, %s227, %s228
      %p232 = pneg %p226
      %p233 = scmp.eq.s32.totalorder %s18, 1
      %p234 = por %p232, %p233
      %p235 = scmp.ne.s32.totalorder %s227, %s230
      %p236 = scmp.eq.s32.totalorder %s18, 0
      %p237 = por %p235, %p236
      %p238 = scmp.ne.s32.totalorder %s227, %s230
      %p239 = scmp.eq.s32.totalorder %s23, 1
      %p240 = por %p238, %p239
      %p241 = scmp.ne.s32.totalorder %s230, %s231
      %p242 = scmp.eq.s32.totalorder %s23, 0
      %p243 = por %p241, %p242
      %p244 = scmp.ne.s32.totalorder %s230, %s231
      %p245 = scmp.eq.s32.totalorder %s24, 1
      %p246 = por %p244, %p245
      %p248 = scmp.ne.s32.totalorder %s231, %s247
      %p249 = scmp.eq.s32.totalorder %s24, 0
      %p250 = por %p248, %p249
      %p251 = scmp.le.s32.totalorder 1, %s18
      %p252 = scmp.lt.s32.totalorder %s18, 3
      %p253 = pnand %p251, %p252
      %p254 = pneg %p253
      // Predicated region
      $region9: #{hard_distangle_head_forward.1} parent=5 // pred_check
        _
      $region10: #{hard_distangle_head_forward.1} parent=5 // pred_check_branch
        %256 = sbr.rel (%p253) target = $region12
      $region11: #{hard_distangle_head_forward.1} parent=5 // pred_region
        %s257 = ssub.s32 %s18, 1
        // Predicated region
        $region13: #{hard_distangle_head_forward.1} parent=11 // pred_check
          %p258 = pneg %p65
        $region14: #{hard_distangle_head_forward.1} parent=11 // pred_check_branch
          %260 = sbr.rel (%p258) target = $region16
        $region15: #{hard_distangle_head_forward.1} parent=11 // pred_region
          _
        $region16: #{hard_distangle_head_forward.1} parent=11 // pred_fallthru
          _
        // Predicated region
        $region17: #{hard_distangle_head_forward.1} parent=11 // pred_check
          %p261 = pneg %p112
        $region18: #{hard_distangle_head_forward.1} parent=11 // pred_check_branch
          %263 = sbr.rel (%p261) target = $region20
        $region19: #{hard_distangle_head_forward.1} parent=11 // pred_region
          _
        $region20: #{hard_distangle_head_forward.1} parent=11 // pred_fallthru
          _
        // Predicated region
        $region21: #{hard_distangle_head_forward.1} parent=11 // pred_check
          %p264 = pneg %p133
        $region22: #{hard_distangle_head_forward.1} parent=11 // pred_check_branch
          %266 = sbr.rel (%p264) target = $region24
        $region23: #{hard_distangle_head_forward.1} parent=11 // pred_region
          _
        $region24: #{hard_distangle_head_forward.1} parent=11 // pred_fallthru
          _
        // Predicated region
        $region25: #{hard_distangle_head_forward.1} parent=11 // pred_check
          %p267 = pneg %p154
        $region26: #{hard_distangle_head_forward.1} parent=11 // pred_check_branch
          %269 = sbr.rel (%p267) target = $region28
        $region27: #{hard_distangle_head_forward.1} parent=11 // pred_region
          _
        $region28: #{hard_distangle_head_forward.1} parent=11 // pred_fallthru
          _
        // Predicated region
        $region29: #{hard_distangle_head_forward.1} parent=11 // pred_check
          %p270 = pneg %p175
        $region30: #{hard_distangle_head_forward.1} parent=11 // pred_check_branch
          %272 = sbr.rel (%p270) target = $region32
        $region31: #{hard_distangle_head_forward.1} parent=11 // pred_region
          _
        $region32: #{hard_distangle_head_forward.1} parent=11 // pred_fallthru
          _
        // Predicated region
        $region33: #{hard_distangle_head_forward.1} parent=11 // pred_check
          %p273 = pneg %p196
        $region34: #{hard_distangle_head_forward.1} parent=11 // pred_check_branch
          %275 = sbr.rel (%p273) target = $region36
        $region35: #{hard_distangle_head_forward.1} parent=11 // pred_region
          _
        $region36: #{hard_distangle_head_forward.1} parent=11 // pred_fallthru
          _
        // Predicated region
        $region37: #{hard_distangle_head_forward.1} parent=11 // pred_check
          %p276 = pneg %p217
        $region38: #{hard_distangle_head_forward.1} parent=11 // pred_check_branch
          %278 = sbr.rel (%p276) target = $region40
        $region39: #{hard_distangle_head_forward.1} parent=11 // pred_region
          _
        $region40: #{hard_distangle_head_forward.1} parent=11 // pred_fallthru
          _
      $region12: #{hard_distangle_head_forward.1} parent=5 // pred_fallthru
        _
      %p279 = scmp.lt.s32.totalorder %s18, 2
      // Predicated region
      $region41: #{hard_distangle_head_forward.1} parent=5 // pred_check
        %p280 = pneg %p279
      $region42: #{hard_distangle_head_forward.1} parent=5 // pred_check_branch
        %282 = sbr.rel (%p280) target = $region44
      $region43: #{hard_distangle_head_forward.1} parent=5 // pred_region
        // Predicated region
        $region45: #{hard_distangle_head_forward.1} parent=43 // pred_check
          %p283 = pneg %p38
        $region46: #{hard_distangle_head_forward.1} parent=43 // pred_check_branch
          %285 = sbr.rel (%p283) target = $region48
        $region47: #{hard_distangle_head_forward.1} parent=43 // pred_region
          %p286 = scmp.lt.s32.totalorder %s18, 1
          %s287 = scalar_select %p286, %s18, 1
          %s288 = smul.addr %s287, 512
          %s289 = smul.addr %s288, 8
          %s290 = scalar_lea.vmem %s0, %s289
        $region48: #{hard_distangle_head_forward.1} parent=43 // pred_fallthru
          _
        // Predicated region
        $region49: #{hard_distangle_head_forward.1} parent=43 // pred_check
          %p291 = pneg %p85
        $region50: #{hard_distangle_head_forward.1} parent=43 // pred_check_branch
          %293 = sbr.rel (%p291) target = $region52
        $region51: #{hard_distangle_head_forward.1} parent=43 // pred_region
          %p294 = scmp.lt.s32.totalorder %s18, 1
          %s295 = scalar_select %p294, %s18, 1
          %s296 = smul.addr %s295, 18
          %s297 = smul.addr %s296, 4
          %s298 = scalar_lea.vmem %s2, %s297
        $region52: #{hard_distangle_head_forward.1} parent=43 // pred_fallthru
          _
      $region44: #{hard_distangle_head_forward.1} parent=5 // pred_fallthru
        _
      %p299 = scmp.le.s32.totalorder 1, %s18
      %p300 = scmp.lt.s32.totalorder %s18, 3
      %p301 = pnand %p299, %p300
      %p302 = pneg %p301
      // Predicated region
      $region53: #{hard_distangle_head_forward.1} parent=5 // pred_check
        _
      $region54: #{hard_distangle_head_forward.1} parent=5 // pred_check_branch
        %304 = sbr.rel (%p301) target = $region56
      $region55: #{hard_distangle_head_forward.1} parent=5 // pred_region
        %s305 = ssub.s32 %s18, 1
        %p306 = scmp.lt.s32.totalorder %s23, 1
        %s307 = scalar_select %p306, %s23, 1
        %s308 = smul.addr %s307, 512
        %s309 = smul.addr %s308, 8
        %s310 = scalar_lea.vmem %s0, %s309
        %p311 = pneg %p44
        %p312 = pneg %p41
        %p313 = pneg %p65
        %p314 = pneg %p62
        %p315 = scmp.lt.s32.totalorder %s23, 1
        %s316 = scalar_select %p315, %s23, 1
        %s317 = smul.addr %s316, 18
        %s318 = smul.addr %s317, 4
        %s319 = scalar_lea.vmem %s2, %s318
        %p320 = pneg %p91
        %p321 = pneg %p88
        %p322 = pneg %p112
        %p323 = pneg %p109
        %p324 = pneg %p133
        %p325 = pneg %p130
        %p326 = pneg %p154
        %p327 = pneg %p151
        %p328 = pneg %p175
        %p329 = pneg %p172
        %p330 = pneg %p196
        %p331 = pneg %p193
        %p332 = pneg %p217
        %p333 = pneg %p214
        %p334 = pneg %p243
        %p335 = pneg %p240
        %s336 = sand.u32 %s230, 1
        %s337 = scalar_lea.sflag [#allocation3], %s336
        %s338 = sand.u32 %s230, 1
        %s339 = scalar_lea.vmem [#allocation2], %s338
        %p340 = scmp.lt.s32.totalorder %s23, 1
        %s341 = scalar_select %p340, %s23, 1
        %s342 = smul.addr %s341, 512
        %s343 = smul.addr %s342, 8
        %s344 = scalar_lea.vmem %s0, %s343
        %p345 = scmp.lt.s32.totalorder %s23, 1
        %s346 = scalar_select %p345, %s23, 1
        %s347 = smul.addr %s346, 18
        %s348 = smul.addr %s347, 4
        %s349 = scalar_lea.vmem %s2, %s348
        %v351 = vld [vmem:[%s344] sm:$0xff]
        %v352 = vld [vmem:[%s344 + $0x8] sm:$0xff]
        %v353 = vld [vmem:[%s344 + $0x10] sm:$0xff]
        %v354 = vld [vmem:[%s344 + $0x18] sm:$0xff]
        %v355 = vld [vmem:[%s344 + $0x20] sm:$0xff]
        %v356 = vld [vmem:[%s344 + $0x28] sm:$0xff]
        %v357 = vld [vmem:[%s344 + $0x30] sm:$0xff]
        %v358 = vld [vmem:[%s344 + $0x38] sm:$0xff]
        %v359 = vld [vmem:[%s344 + $0x40] sm:$0xff]
        %v360 = vld [vmem:[%s344 + $0x48] sm:$0xff]
        %v361 = vld [vmem:[%s344 + $0x50] sm:$0xff]
        %v362 = vld [vmem:[%s344 + $0x58] sm:$0xff]
        %v363 = vld [vmem:[%s344 + $0x60] sm:$0xff]
        %v364 = vld [vmem:[%s344 + $0x68] sm:$0xff]
        %v365 = vld [vmem:[%s344 + $0x70] sm:$0xff]
        %v366 = vld [vmem:[%s344 + $0x78] sm:$0xff]
        %v367 = vld [vmem:[%s344 + $0x80] sm:$0xff]
        %v368 = vld [vmem:[%s344 + $0x88] sm:$0xff]
        %v369 = vld [vmem:[%s344 + $0x90] sm:$0xff]
        %v370 = vld [vmem:[%s344 + $0x98] sm:$0xff]
        %v371 = vld [vmem:[%s344 + $0xa0] sm:$0xff]
        %v372 = vld [vmem:[%s344 + $0xa8] sm:$0xff]
        %v373 = vld [vmem:[%s344 + $0xb0] sm:$0xff]
        %v374 = vld [vmem:[%s344 + $0xb8] sm:$0xff]
        %v375 = vld [vmem:[%s344 + $0xc0] sm:$0xff]
        %v376 = vld [vmem:[%s344 + $0xc8] sm:$0xff]
        %v377 = vld [vmem:[%s344 + $0xd0] sm:$0xff]
        %v378 = vld [vmem:[%s344 + $0xd8] sm:$0xff]
        %v379 = vld [vmem:[%s344 + $0xe0] sm:$0xff]
        %v380 = vld [vmem:[%s344 + $0xe8] sm:$0xff]
        %v381 = vld [vmem:[%s344 + $0xf0] sm:$0xff]
        %v382 = vld [vmem:[%s344 + $0xf8] sm:$0xff]
        %v383 = vld [vmem:[%s344 + $0x100] sm:$0xff]
        %v384 = vld [vmem:[%s344 + $0x108] sm:$0xff]
        %v385 = vld [vmem:[%s344 + $0x110] sm:$0xff]
        %v386 = vld [vmem:[%s344 + $0x118] sm:$0xff]
        %v387 = vld [vmem:[%s344 + $0x120] sm:$0xff]
        %v388 = vld [vmem:[%s344 + $0x128] sm:$0xff]
        %v389 = vld [vmem:[%s344 + $0x130] sm:$0xff]
        %v390 = vld [vmem:[%s344 + $0x138] sm:$0xff]
        %v391 = vld [vmem:[%s344 + $0x140] sm:$0xff]
        %v392 = vld [vmem:[%s344 + $0x148] sm:$0xff]
        %v393 = vld [vmem:[%s344 + $0x150] sm:$0xff]
        %v394 = vld [vmem:[%s344 + $0x158] sm:$0xff]
        %v395 = vld [vmem:[%s344 + $0x160] sm:$0xff]
        %v396 = vld [vmem:[%s344 + $0x168] sm:$0xff]
        %v397 = vld [vmem:[%s344 + $0x170] sm:$0xff]
        %v398 = vld [vmem:[%s344 + $0x178] sm:$0xff]
        %v399 = vld [vmem:[%s344 + $0x180] sm:$0xff]
        %v400 = vld [vmem:[%s344 + $0x188] sm:$0xff]
        %v401 = vld [vmem:[%s344 + $0x190] sm:$0xff]
        %v402 = vld [vmem:[%s344 + $0x198] sm:$0xff]
        %v403 = vld [vmem:[%s344 + $0x1a0] sm:$0xff]
        %v404 = vld [vmem:[%s344 + $0x1a8] sm:$0xff]
        %v405 = vld [vmem:[%s344 + $0x1b0] sm:$0xff]
        %v406 = vld [vmem:[%s344 + $0x1b8] sm:$0xff]
        %v407 = vld [vmem:[%s344 + $0x1c0] sm:$0xff]
        %v408 = vld [vmem:[%s344 + $0x1c8] sm:$0xff]
        %v409 = vld [vmem:[%s344 + $0x1d0] sm:$0xff]
        %v410 = vld [vmem:[%s344 + $0x1d8] sm:$0xff]
        %v411 = vld [vmem:[%s344 + $0x1e0] sm:$0xff]
        %v412 = vld [vmem:[%s344 + $0x1e8] sm:$0xff]
        %v413 = vld [vmem:[%s344 + $0x1f0] sm:$0xff]
        %v414 = vld [vmem:[%s344 + $0x1f8] sm:$0xff]
        %v415 = vld [vmem:[%s344 + $0x200] sm:$0xff]
        %v416 = vld [vmem:[%s344 + $0x208] sm:$0xff]
        %v417 = vld [vmem:[%s344 + $0x210] sm:$0xff]
        %v418 = vld [vmem:[%s344 + $0x218] sm:$0xff]
        %v419 = vld [vmem:[%s344 + $0x220] sm:$0xff]
        %v420 = vld [vmem:[%s344 + $0x228] sm:$0xff]
        %v421 = vld [vmem:[%s344 + $0x230] sm:$0xff]
        %v422 = vld [vmem:[%s344 + $0x238] sm:$0xff]
        %v423 = vld [vmem:[%s344 + $0x240] sm:$0xff]
        %v424 = vld [vmem:[%s344 + $0x248] sm:$0xff]
        %v425 = vld [vmem:[%s344 + $0x250] sm:$0xff]
        %v426 = vld [vmem:[%s344 + $0x258] sm:$0xff]
        %v427 = vld [vmem:[%s344 + $0x260] sm:$0xff]
        %v428 = vld [vmem:[%s344 + $0x268] sm:$0xff]
        %v429 = vld [vmem:[%s344 + $0x270] sm:$0xff]
        %v430 = vld [vmem:[%s344 + $0x278] sm:$0xff]
        %v431 = vld [vmem:[%s344 + $0x280] sm:$0xff]
        %v432 = vld [vmem:[%s344 + $0x288] sm:$0xff]
        %v433 = vld [vmem:[%s344 + $0x290] sm:$0xff]
        %v434 = vld [vmem:[%s344 + $0x298] sm:$0xff]
        %v435 = vld [vmem:[%s344 + $0x2a0] sm:$0xff]
        %v436 = vld [vmem:[%s344 + $0x2a8] sm:$0xff]
        %v437 = vld [vmem:[%s344 + $0x2b0] sm:$0xff]
        %v438 = vld [vmem:[%s344 + $0x2b8] sm:$0xff]
        %v439 = vld [vmem:[%s344 + $0x2c0] sm:$0xff]
        %v440 = vld [vmem:[%s344 + $0x2c8] sm:$0xff]
        %v441 = vld [vmem:[%s344 + $0x2d0] sm:$0xff]
        %v442 = vld [vmem:[%s344 + $0x2d8] sm:$0xff]
        %v443 = vld [vmem:[%s344 + $0x2e0] sm:$0xff]
        %v444 = vld [vmem:[%s344 + $0x2e8] sm:$0xff]
        %v445 = vld [vmem:[%s344 + $0x2f0] sm:$0xff]
        %v446 = vld [vmem:[%s344 + $0x2f8] sm:$0xff]
        %v447 = vld [vmem:[%s344 + $0x300] sm:$0xff]
        %v448 = vld [vmem:[%s344 + $0x308] sm:$0xff]
        %v449 = vld [vmem:[%s344 + $0x310] sm:$0xff]
        %v450 = vld [vmem:[%s344 + $0x318] sm:$0xff]
        %v451 = vld [vmem:[%s344 + $0x320] sm:$0xff]
        %v452 = vld [vmem:[%s344 + $0x328] sm:$0xff]
        %v453 = vld [vmem:[%s344 + $0x330] sm:$0xff]
        %v454 = vld [vmem:[%s344 + $0x338] sm:$0xff]
        %v455 = vld [vmem:[%s344 + $0x340] sm:$0xff]
        %v456 = vld [vmem:[%s344 + $0x348] sm:$0xff]
        %v457 = vld [vmem:[%s344 + $0x350] sm:$0xff]
        %v458 = vld [vmem:[%s344 + $0x358] sm:$0xff]
        %v459 = vld [vmem:[%s344 + $0x360] sm:$0xff]
        %v460 = vld [vmem:[%s344 + $0x368] sm:$0xff]
        %v461 = vld [vmem:[%s344 + $0x370] sm:$0xff]
        %v462 = vld [vmem:[%s344 + $0x378] sm:$0xff]
        %v463 = vld [vmem:[%s344 + $0x380] sm:$0xff]
        %v464 = vld [vmem:[%s344 + $0x388] sm:$0xff]
        %v465 = vld [vmem:[%s344 + $0x390] sm:$0xff]
        %v466 = vld [vmem:[%s344 + $0x398] sm:$0xff]
        %v467 = vld [vmem:[%s344 + $0x3a0] sm:$0xff]
        %v468 = vld [vmem:[%s344 + $0x3a8] sm:$0xff]
        %v469 = vld [vmem:[%s344 + $0x3b0] sm:$0xff]
        %v470 = vld [vmem:[%s344 + $0x3b8] sm:$0xff]
        %v471 = vld [vmem:[%s344 + $0x3c0] sm:$0xff]
        %v472 = vld [vmem:[%s344 + $0x3c8] sm:$0xff]
        %v473 = vld [vmem:[%s344 + $0x3d0] sm:$0xff]
        %v474 = vld [vmem:[%s344 + $0x3d8] sm:$0xff]
        %v475 = vld [vmem:[%s344 + $0x3e0] sm:$0xff]
        %v476 = vld [vmem:[%s344 + $0x3e8] sm:$0xff]
        %v477 = vld [vmem:[%s344 + $0x3f0] sm:$0xff]
        %v478 = vld [vmem:[%s344 + $0x3f8] sm:$0xff]
        %v479 = vld [vmem:[%s344 + $0x400] sm:$0xff]
        %v480 = vld [vmem:[%s344 + $0x408] sm:$0xff]
        %v481 = vld [vmem:[%s344 + $0x410] sm:$0xff]
        %v482 = vld [vmem:[%s344 + $0x418] sm:$0xff]
        %v483 = vld [vmem:[%s344 + $0x420] sm:$0xff]
        %v484 = vld [vmem:[%s344 + $0x428] sm:$0xff]
        %v485 = vld [vmem:[%s344 + $0x430] sm:$0xff]
        %v486 = vld [vmem:[%s344 + $0x438] sm:$0xff]
        %v487 = vld [vmem:[%s344 + $0x440] sm:$0xff]
        %v488 = vld [vmem:[%s344 + $0x448] sm:$0xff]
        %v489 = vld [vmem:[%s344 + $0x450] sm:$0xff]
        %v490 = vld [vmem:[%s344 + $0x458] sm:$0xff]
        %v491 = vld [vmem:[%s344 + $0x460] sm:$0xff]
        %v492 = vld [vmem:[%s344 + $0x468] sm:$0xff]
        %v493 = vld [vmem:[%s344 + $0x470] sm:$0xff]
        %v494 = vld [vmem:[%s344 + $0x478] sm:$0xff]
        %v495 = vld [vmem:[%s344 + $0x480] sm:$0xff]
        %v496 = vld [vmem:[%s344 + $0x488] sm:$0xff]
        %v497 = vld [vmem:[%s344 + $0x490] sm:$0xff]
        %v498 = vld [vmem:[%s344 + $0x498] sm:$0xff]
        %v499 = vld [vmem:[%s344 + $0x4a0] sm:$0xff]
        %v500 = vld [vmem:[%s344 + $0x4a8] sm:$0xff]
        %v501 = vld [vmem:[%s344 + $0x4b0] sm:$0xff]
        %v502 = vld [vmem:[%s344 + $0x4b8] sm:$0xff]
        %v503 = vld [vmem:[%s344 + $0x4c0] sm:$0xff]
        %v504 = vld [vmem:[%s344 + $0x4c8] sm:$0xff]
        %v505 = vld [vmem:[%s344 + $0x4d0] sm:$0xff]
        %v506 = vld [vmem:[%s344 + $0x4d8] sm:$0xff]
        %v507 = vld [vmem:[%s344 + $0x4e0] sm:$0xff]
        %v508 = vld [vmem:[%s344 + $0x4e8] sm:$0xff]
        %v509 = vld [vmem:[%s344 + $0x4f0] sm:$0xff]
        %v510 = vld [vmem:[%s344 + $0x4f8] sm:$0xff]
        %v511 = vld [vmem:[%s344 + $0x500] sm:$0xff]
        %v512 = vld [vmem:[%s344 + $0x508] sm:$0xff]
        %v513 = vld [vmem:[%s344 + $0x510] sm:$0xff]
        %v514 = vld [vmem:[%s344 + $0x518] sm:$0xff]
        %v515 = vld [vmem:[%s344 + $0x520] sm:$0xff]
        %v516 = vld [vmem:[%s344 + $0x528] sm:$0xff]
        %v517 = vld [vmem:[%s344 + $0x530] sm:$0xff]
        %v518 = vld [vmem:[%s344 + $0x538] sm:$0xff]
        %v519 = vld [vmem:[%s344 + $0x540] sm:$0xff]
        %v520 = vld [vmem:[%s344 + $0x548] sm:$0xff]
        %v521 = vld [vmem:[%s344 + $0x550] sm:$0xff]
        %v522 = vld [vmem:[%s344 + $0x558] sm:$0xff]
        %v523 = vld [vmem:[%s344 + $0x560] sm:$0xff]
        %v524 = vld [vmem:[%s344 + $0x568] sm:$0xff]
        %v525 = vld [vmem:[%s344 + $0x570] sm:$0xff]
        %v526 = vld [vmem:[%s344 + $0x578] sm:$0xff]
        %v527 = vld [vmem:[%s344 + $0x580] sm:$0xff]
        %v528 = vld [vmem:[%s344 + $0x588] sm:$0xff]
        %v529 = vld [vmem:[%s344 + $0x590] sm:$0xff]
        %v530 = vld [vmem:[%s344 + $0x598] sm:$0xff]
        %v531 = vld [vmem:[%s344 + $0x5a0] sm:$0xff]
        %v532 = vld [vmem:[%s344 + $0x5a8] sm:$0xff]
        %v533 = vld [vmem:[%s344 + $0x5b0] sm:$0xff]
        %v534 = vld [vmem:[%s344 + $0x5b8] sm:$0xff]
        %v535 = vld [vmem:[%s344 + $0x5c0] sm:$0xff]
        %v536 = vld [vmem:[%s344 + $0x5c8] sm:$0xff]
        %v537 = vld [vmem:[%s344 + $0x5d0] sm:$0xff]
        %v538 = vld [vmem:[%s344 + $0x5d8] sm:$0xff]
        %v539 = vld [vmem:[%s344 + $0x5e0] sm:$0xff]
        %v540 = vld [vmem:[%s344 + $0x5e8] sm:$0xff]
        %v541 = vld [vmem:[%s344 + $0x5f0] sm:$0xff]
        %v542 = vld [vmem:[%s344 + $0x5f8] sm:$0xff]
        %v543 = vld [vmem:[%s344 + $0x600] sm:$0xff]
        %v544 = vld [vmem:[%s344 + $0x608] sm:$0xff]
        %v545 = vld [vmem:[%s344 + $0x610] sm:$0xff]
        %v546 = vld [vmem:[%s344 + $0x618] sm:$0xff]
        %v547 = vld [vmem:[%s344 + $0x620] sm:$0xff]
        %v548 = vld [vmem:[%s344 + $0x628] sm:$0xff]
        %v549 = vld [vmem:[%s344 + $0x630] sm:$0xff]
        %v550 = vld [vmem:[%s344 + $0x638] sm:$0xff]
        %v551 = vld [vmem:[%s344 + $0x640] sm:$0xff]
        %v552 = vld [vmem:[%s344 + $0x648] sm:$0xff]
        %v553 = vld [vmem:[%s344 + $0x650] sm:$0xff]
        %v554 = vld [vmem:[%s344 + $0x658] sm:$0xff]
        %v555 = vld [vmem:[%s344 + $0x660] sm:$0xff]
        %v556 = vld [vmem:[%s344 + $0x668] sm:$0xff]
        %v557 = vld [vmem:[%s344 + $0x670] sm:$0xff]
        %v558 = vld [vmem:[%s344 + $0x678] sm:$0xff]
        %v559 = vld [vmem:[%s344 + $0x680] sm:$0xff]
        %v560 = vld [vmem:[%s344 + $0x688] sm:$0xff]
        %v561 = vld [vmem:[%s344 + $0x690] sm:$0xff]
        %v562 = vld [vmem:[%s344 + $0x698] sm:$0xff]
        %v563 = vld [vmem:[%s344 + $0x6a0] sm:$0xff]
        %v564 = vld [vmem:[%s344 + $0x6a8] sm:$0xff]
        %v565 = vld [vmem:[%s344 + $0x6b0] sm:$0xff]
        %v566 = vld [vmem:[%s344 + $0x6b8] sm:$0xff]
        %v567 = vld [vmem:[%s344 + $0x6c0] sm:$0xff]
        %v568 = vld [vmem:[%s344 + $0x6c8] sm:$0xff]
        %v569 = vld [vmem:[%s344 + $0x6d0] sm:$0xff]
        %v570 = vld [vmem:[%s344 + $0x6d8] sm:$0xff]
        %v571 = vld [vmem:[%s344 + $0x6e0] sm:$0xff]
        %v572 = vld [vmem:[%s344 + $0x6e8] sm:$0xff]
        %v573 = vld [vmem:[%s344 + $0x6f0] sm:$0xff]
        %v574 = vld [vmem:[%s344 + $0x6f8] sm:$0xff]
        %v575 = vld [vmem:[%s344 + $0x700] sm:$0xff]
        %v576 = vld [vmem:[%s344 + $0x708] sm:$0xff]
        %v577 = vld [vmem:[%s344 + $0x710] sm:$0xff]
        %v578 = vld [vmem:[%s344 + $0x718] sm:$0xff]
        %v579 = vld [vmem:[%s344 + $0x720] sm:$0xff]
        %v580 = vld [vmem:[%s344 + $0x728] sm:$0xff]
        %v581 = vld [vmem:[%s344 + $0x730] sm:$0xff]
        %v582 = vld [vmem:[%s344 + $0x738] sm:$0xff]
        %v583 = vld [vmem:[%s344 + $0x740] sm:$0xff]
        %v584 = vld [vmem:[%s344 + $0x748] sm:$0xff]
        %v585 = vld [vmem:[%s344 + $0x750] sm:$0xff]
        %v586 = vld [vmem:[%s344 + $0x758] sm:$0xff]
        %v587 = vld [vmem:[%s344 + $0x760] sm:$0xff]
        %v588 = vld [vmem:[%s344 + $0x768] sm:$0xff]
        %v589 = vld [vmem:[%s344 + $0x770] sm:$0xff]
        %v590 = vld [vmem:[%s344 + $0x778] sm:$0xff]
        %v591 = vld [vmem:[%s344 + $0x780] sm:$0xff]
        %v592 = vld [vmem:[%s344 + $0x788] sm:$0xff]
        %v593 = vld [vmem:[%s344 + $0x790] sm:$0xff]
        %v594 = vld [vmem:[%s344 + $0x798] sm:$0xff]
        %v595 = vld [vmem:[%s344 + $0x7a0] sm:$0xff]
        %v596 = vld [vmem:[%s344 + $0x7a8] sm:$0xff]
        %v597 = vld [vmem:[%s344 + $0x7b0] sm:$0xff]
        %v598 = vld [vmem:[%s344 + $0x7b8] sm:$0xff]
        %v599 = vld [vmem:[%s344 + $0x7c0] sm:$0xff]
        %v600 = vld [vmem:[%s344 + $0x7c8] sm:$0xff]
        %v601 = vld [vmem:[%s344 + $0x7d0] sm:$0xff]
        %v602 = vld [vmem:[%s344 + $0x7d8] sm:$0xff]
        %v603 = vld [vmem:[%s344 + $0x7e0] sm:$0xff]
        %v604 = vld [vmem:[%s344 + $0x7e8] sm:$0xff]
        %v605 = vld [vmem:[%s344 + $0x7f0] sm:$0xff]
        %v606 = vld [vmem:[%s344 + $0x7f8] sm:$0xff]
        %v607 = vld [vmem:[%s344 + $0x800] sm:$0xff]
        %v608 = vld [vmem:[%s344 + $0x808] sm:$0xff]
        %v609 = vld [vmem:[%s344 + $0x810] sm:$0xff]
        %v610 = vld [vmem:[%s344 + $0x818] sm:$0xff]
        %v611 = vld [vmem:[%s344 + $0x820] sm:$0xff]
        %v612 = vld [vmem:[%s344 + $0x828] sm:$0xff]
        %v613 = vld [vmem:[%s344 + $0x830] sm:$0xff]
        %v614 = vld [vmem:[%s344 + $0x838] sm:$0xff]
        %v615 = vld [vmem:[%s344 + $0x840] sm:$0xff]
        %v616 = vld [vmem:[%s344 + $0x848] sm:$0xff]
        %v617 = vld [vmem:[%s344 + $0x850] sm:$0xff]
        %v618 = vld [vmem:[%s344 + $0x858] sm:$0xff]
        %v619 = vld [vmem:[%s344 + $0x860] sm:$0xff]
        %v620 = vld [vmem:[%s344 + $0x868] sm:$0xff]
        %v621 = vld [vmem:[%s344 + $0x870] sm:$0xff]
        %v622 = vld [vmem:[%s344 + $0x878] sm:$0xff]
        %v623 = vld [vmem:[%s344 + $0x880] sm:$0xff]
        %v624 = vld [vmem:[%s344 + $0x888] sm:$0xff]
        %v625 = vld [vmem:[%s344 + $0x890] sm:$0xff]
        %v626 = vld [vmem:[%s344 + $0x898] sm:$0xff]
        %v627 = vld [vmem:[%s344 + $0x8a0] sm:$0xff]
        %v628 = vld [vmem:[%s344 + $0x8a8] sm:$0xff]
        %v629 = vld [vmem:[%s344 + $0x8b0] sm:$0xff]
        %v630 = vld [vmem:[%s344 + $0x8b8] sm:$0xff]
        %v631 = vld [vmem:[%s344 + $0x8c0] sm:$0xff]
        %v632 = vld [vmem:[%s344 + $0x8c8] sm:$0xff]
        %v633 = vld [vmem:[%s344 + $0x8d0] sm:$0xff]
        %v634 = vld [vmem:[%s344 + $0x8d8] sm:$0xff]
        %v635 = vld [vmem:[%s344 + $0x8e0] sm:$0xff]
        %v636 = vld [vmem:[%s344 + $0x8e8] sm:$0xff]
        %v637 = vld [vmem:[%s344 + $0x8f0] sm:$0xff]
        %v638 = vld [vmem:[%s344 + $0x8f8] sm:$0xff]
        %v639 = vld [vmem:[%s344 + $0x900] sm:$0xff]
        %v640 = vld [vmem:[%s344 + $0x908] sm:$0xff]
        %v641 = vld [vmem:[%s344 + $0x910] sm:$0xff]
        %v642 = vld [vmem:[%s344 + $0x918] sm:$0xff]
        %v643 = vld [vmem:[%s344 + $0x920] sm:$0xff]
        %v644 = vld [vmem:[%s344 + $0x928] sm:$0xff]
        %v645 = vld [vmem:[%s344 + $0x930] sm:$0xff]
        %v646 = vld [vmem:[%s344 + $0x938] sm:$0xff]
        %v647 = vld [vmem:[%s344 + $0x940] sm:$0xff]
        %v648 = vld [vmem:[%s344 + $0x948] sm:$0xff]
        %v649 = vld [vmem:[%s344 + $0x950] sm:$0xff]
        %v650 = vld [vmem:[%s344 + $0x958] sm:$0xff]
        %v651 = vld [vmem:[%s344 + $0x960] sm:$0xff]
        %v652 = vld [vmem:[%s344 + $0x968] sm:$0xff]
        %v653 = vld [vmem:[%s344 + $0x970] sm:$0xff]
        %v654 = vld [vmem:[%s344 + $0x978] sm:$0xff]
        %v655 = vld [vmem:[%s344 + $0x980] sm:$0xff]
        %v656 = vld [vmem:[%s344 + $0x988] sm:$0xff]
        %v657 = vld [vmem:[%s344 + $0x990] sm:$0xff]
        %v658 = vld [vmem:[%s344 + $0x998] sm:$0xff]
        %v659 = vld [vmem:[%s344 + $0x9a0] sm:$0xff]
        %v660 = vld [vmem:[%s344 + $0x9a8] sm:$0xff]
        %v661 = vld [vmem:[%s344 + $0x9b0] sm:$0xff]
        %v662 = vld [vmem:[%s344 + $0x9b8] sm:$0xff]
        %v663 = vld [vmem:[%s344 + $0x9c0] sm:$0xff]
        %v664 = vld [vmem:[%s344 + $0x9c8] sm:$0xff]
        %v665 = vld [vmem:[%s344 + $0x9d0] sm:$0xff]
        %v666 = vld [vmem:[%s344 + $0x9d8] sm:$0xff]
        %v667 = vld [vmem:[%s344 + $0x9e0] sm:$0xff]
        %v668 = vld [vmem:[%s344 + $0x9e8] sm:$0xff]
        %v669 = vld [vmem:[%s344 + $0x9f0] sm:$0xff]
        %v670 = vld [vmem:[%s344 + $0x9f8] sm:$0xff]
        %v671 = vld [vmem:[%s344 + $0xa00] sm:$0xff]
        %v672 = vld [vmem:[%s344 + $0xa08] sm:$0xff]
        %v673 = vld [vmem:[%s344 + $0xa10] sm:$0xff]
        %v674 = vld [vmem:[%s344 + $0xa18] sm:$0xff]
        %v675 = vld [vmem:[%s344 + $0xa20] sm:$0xff]
        %v676 = vld [vmem:[%s344 + $0xa28] sm:$0xff]
        %v677 = vld [vmem:[%s344 + $0xa30] sm:$0xff]
        %v678 = vld [vmem:[%s344 + $0xa38] sm:$0xff]
        %v679 = vld [vmem:[%s344 + $0xa40] sm:$0xff]
        %v680 = vld [vmem:[%s344 + $0xa48] sm:$0xff]
        %v681 = vld [vmem:[%s344 + $0xa50] sm:$0xff]
        %v682 = vld [vmem:[%s344 + $0xa58] sm:$0xff]
        %v683 = vld [vmem:[%s344 + $0xa60] sm:$0xff]
        %v684 = vld [vmem:[%s344 + $0xa68] sm:$0xff]
        %v685 = vld [vmem:[%s344 + $0xa70] sm:$0xff]
        %v686 = vld [vmem:[%s344 + $0xa78] sm:$0xff]
        %v687 = vld [vmem:[%s344 + $0xa80] sm:$0xff]
        %v688 = vld [vmem:[%s344 + $0xa88] sm:$0xff]
        %v689 = vld [vmem:[%s344 + $0xa90] sm:$0xff]
        %v690 = vld [vmem:[%s344 + $0xa98] sm:$0xff]
        %v691 = vld [vmem:[%s344 + $0xaa0] sm:$0xff]
        %v692 = vld [vmem:[%s344 + $0xaa8] sm:$0xff]
        %v693 = vld [vmem:[%s344 + $0xab0] sm:$0xff]
        %v694 = vld [vmem:[%s344 + $0xab8] sm:$0xff]
        %v695 = vld [vmem:[%s344 + $0xac0] sm:$0xff]
        %v696 = vld [vmem:[%s344 + $0xac8] sm:$0xff]
        %v697 = vld [vmem:[%s344 + $0xad0] sm:$0xff]
        %v698 = vld [vmem:[%s344 + $0xad8] sm:$0xff]
        %v699 = vld [vmem:[%s344 + $0xae0] sm:$0xff]
        %v700 = vld [vmem:[%s344 + $0xae8] sm:$0xff]
        %v701 = vld [vmem:[%s344 + $0xaf0] sm:$0xff]
        %v702 = vld [vmem:[%s344 + $0xaf8] sm:$0xff]
        %v703 = vld [vmem:[%s344 + $0xb00] sm:$0xff]
        %v704 = vld [vmem:[%s344 + $0xb08] sm:$0xff]
        %v705 = vld [vmem:[%s344 + $0xb10] sm:$0xff]
        %v706 = vld [vmem:[%s344 + $0xb18] sm:$0xff]
        %v707 = vld [vmem:[%s344 + $0xb20] sm:$0xff]
        %v708 = vld [vmem:[%s344 + $0xb28] sm:$0xff]
        %v709 = vld [vmem:[%s344 + $0xb30] sm:$0xff]
        %v710 = vld [vmem:[%s344 + $0xb38] sm:$0xff]
        %v711 = vld [vmem:[%s344 + $0xb40] sm:$0xff]
        %v712 = vld [vmem:[%s344 + $0xb48] sm:$0xff]
        %v713 = vld [vmem:[%s344 + $0xb50] sm:$0xff]
        %v714 = vld [vmem:[%s344 + $0xb58] sm:$0xff]
        %v715 = vld [vmem:[%s344 + $0xb60] sm:$0xff]
        %v716 = vld [vmem:[%s344 + $0xb68] sm:$0xff]
        %v717 = vld [vmem:[%s344 + $0xb70] sm:$0xff]
        %v718 = vld [vmem:[%s344 + $0xb78] sm:$0xff]
        %v719 = vld [vmem:[%s344 + $0xb80] sm:$0xff]
        %v720 = vld [vmem:[%s344 + $0xb88] sm:$0xff]
        %v721 = vld [vmem:[%s344 + $0xb90] sm:$0xff]
        %v722 = vld [vmem:[%s344 + $0xb98] sm:$0xff]
        %v723 = vld [vmem:[%s344 + $0xba0] sm:$0xff]
        %v724 = vld [vmem:[%s344 + $0xba8] sm:$0xff]
        %v725 = vld [vmem:[%s344 + $0xbb0] sm:$0xff]
        %v726 = vld [vmem:[%s344 + $0xbb8] sm:$0xff]
        %v727 = vld [vmem:[%s344 + $0xbc0] sm:$0xff]
        %v728 = vld [vmem:[%s344 + $0xbc8] sm:$0xff]
        %v729 = vld [vmem:[%s344 + $0xbd0] sm:$0xff]
        %v730 = vld [vmem:[%s344 + $0xbd8] sm:$0xff]
        %v731 = vld [vmem:[%s344 + $0xbe0] sm:$0xff]
        %v732 = vld [vmem:[%s344 + $0xbe8] sm:$0xff]
        %v733 = vld [vmem:[%s344 + $0xbf0] sm:$0xff]
        %v734 = vld [vmem:[%s344 + $0xbf8] sm:$0xff]
        %v735 = vld [vmem:[%s344 + $0xc00] sm:$0xff]
        %v736 = vld [vmem:[%s344 + $0xc08] sm:$0xff]
        %v737 = vld [vmem:[%s344 + $0xc10] sm:$0xff]
        %v738 = vld [vmem:[%s344 + $0xc18] sm:$0xff]
        %v739 = vld [vmem:[%s344 + $0xc20] sm:$0xff]
        %v740 = vld [vmem:[%s344 + $0xc28] sm:$0xff]
        %v741 = vld [vmem:[%s344 + $0xc30] sm:$0xff]
        %v742 = vld [vmem:[%s344 + $0xc38] sm:$0xff]
        %v743 = vld [vmem:[%s344 + $0xc40] sm:$0xff]
        %v744 = vld [vmem:[%s344 + $0xc48] sm:$0xff]
        %v745 = vld [vmem:[%s344 + $0xc50] sm:$0xff]
        %v746 = vld [vmem:[%s344 + $0xc58] sm:$0xff]
        %v747 = vld [vmem:[%s344 + $0xc60] sm:$0xff]
        %v748 = vld [vmem:[%s344 + $0xc68] sm:$0xff]
        %v749 = vld [vmem:[%s344 + $0xc70] sm:$0xff]
        %v750 = vld [vmem:[%s344 + $0xc78] sm:$0xff]
        %v751 = vld [vmem:[%s344 + $0xc80] sm:$0xff]
        %v752 = vld [vmem:[%s344 + $0xc88] sm:$0xff]
        %v753 = vld [vmem:[%s344 + $0xc90] sm:$0xff]
        %v754 = vld [vmem:[%s344 + $0xc98] sm:$0xff]
        %v755 = vld [vmem:[%s344 + $0xca0] sm:$0xff]
        %v756 = vld [vmem:[%s344 + $0xca8] sm:$0xff]
        %v757 = vld [vmem:[%s344 + $0xcb0] sm:$0xff]
        %v758 = vld [vmem:[%s344 + $0xcb8] sm:$0xff]
        %v759 = vld [vmem:[%s344 + $0xcc0] sm:$0xff]
        %v760 = vld [vmem:[%s344 + $0xcc8] sm:$0xff]
        %v761 = vld [vmem:[%s344 + $0xcd0] sm:$0xff]
        %v762 = vld [vmem:[%s344 + $0xcd8] sm:$0xff]
        %v763 = vld [vmem:[%s344 + $0xce0] sm:$0xff]
        %v764 = vld [vmem:[%s344 + $0xce8] sm:$0xff]
        %v765 = vld [vmem:[%s344 + $0xcf0] sm:$0xff]
        %v766 = vld [vmem:[%s344 + $0xcf8] sm:$0xff]
        %v767 = vld [vmem:[%s344 + $0xd00] sm:$0xff]
        %v768 = vld [vmem:[%s344 + $0xd08] sm:$0xff]
        %v769 = vld [vmem:[%s344 + $0xd10] sm:$0xff]
        %v770 = vld [vmem:[%s344 + $0xd18] sm:$0xff]
        %v771 = vld [vmem:[%s344 + $0xd20] sm:$0xff]
        %v772 = vld [vmem:[%s344 + $0xd28] sm:$0xff]
        %v773 = vld [vmem:[%s344 + $0xd30] sm:$0xff]
        %v774 = vld [vmem:[%s344 + $0xd38] sm:$0xff]
        %v775 = vld [vmem:[%s344 + $0xd40] sm:$0xff]
        %v776 = vld [vmem:[%s344 + $0xd48] sm:$0xff]
        %v777 = vld [vmem:[%s344 + $0xd50] sm:$0xff]
        %v778 = vld [vmem:[%s344 + $0xd58] sm:$0xff]
        %v779 = vld [vmem:[%s344 + $0xd60] sm:$0xff]
        %v780 = vld [vmem:[%s344 + $0xd68] sm:$0xff]
        %v781 = vld [vmem:[%s344 + $0xd70] sm:$0xff]
        %v782 = vld [vmem:[%s344 + $0xd78] sm:$0xff]
        %v783 = vld [vmem:[%s344 + $0xd80] sm:$0xff]
        %v784 = vld [vmem:[%s344 + $0xd88] sm:$0xff]
        %v785 = vld [vmem:[%s344 + $0xd90] sm:$0xff]
        %v786 = vld [vmem:[%s344 + $0xd98] sm:$0xff]
        %v787 = vld [vmem:[%s344 + $0xda0] sm:$0xff]
        %v788 = vld [vmem:[%s344 + $0xda8] sm:$0xff]
        %v789 = vld [vmem:[%s344 + $0xdb0] sm:$0xff]
        %v790 = vld [vmem:[%s344 + $0xdb8] sm:$0xff]
        %v791 = vld [vmem:[%s344 + $0xdc0] sm:$0xff]
        %v792 = vld [vmem:[%s344 + $0xdc8] sm:$0xff]
        %v793 = vld [vmem:[%s344 + $0xdd0] sm:$0xff]
        %v794 = vld [vmem:[%s344 + $0xdd8] sm:$0xff]
        %v795 = vld [vmem:[%s344 + $0xde0] sm:$0xff]
        %v796 = vld [vmem:[%s344 + $0xde8] sm:$0xff]
        %v797 = vld [vmem:[%s344 + $0xdf0] sm:$0xff]
        %v798 = vld [vmem:[%s344 + $0xdf8] sm:$0xff]
        %v799 = vld [vmem:[%s344 + $0xe00] sm:$0xff]
        %v800 = vld [vmem:[%s344 + $0xe08] sm:$0xff]
        %v801 = vld [vmem:[%s344 + $0xe10] sm:$0xff]
        %v802 = vld [vmem:[%s344 + $0xe18] sm:$0xff]
        %v803 = vld [vmem:[%s344 + $0xe20] sm:$0xff]
        %v804 = vld [vmem:[%s344 + $0xe28] sm:$0xff]
        %v805 = vld [vmem:[%s344 + $0xe30] sm:$0xff]
        %v806 = vld [vmem:[%s344 + $0xe38] sm:$0xff]
        %v807 = vld [vmem:[%s344 + $0xe40] sm:$0xff]
        %v808 = vld [vmem:[%s344 + $0xe48] sm:$0xff]
        %v809 = vld [vmem:[%s344 + $0xe50] sm:$0xff]
        %v810 = vld [vmem:[%s344 + $0xe58] sm:$0xff]
        %v811 = vld [vmem:[%s344 + $0xe60] sm:$0xff]
        %v812 = vld [vmem:[%s344 + $0xe68] sm:$0xff]
        %v813 = vld [vmem:[%s344 + $0xe70] sm:$0xff]
        %v814 = vld [vmem:[%s344 + $0xe78] sm:$0xff]
        %v815 = vld [vmem:[%s344 + $0xe80] sm:$0xff]
        %v816 = vld [vmem:[%s344 + $0xe88] sm:$0xff]
        %v817 = vld [vmem:[%s344 + $0xe90] sm:$0xff]
        %v818 = vld [vmem:[%s344 + $0xe98] sm:$0xff]
        %v819 = vld [vmem:[%s344 + $0xea0] sm:$0xff]
        %v820 = vld [vmem:[%s344 + $0xea8] sm:$0xff]
        %v821 = vld [vmem:[%s344 + $0xeb0] sm:$0xff]
        %v822 = vld [vmem:[%s344 + $0xeb8] sm:$0xff]
        %v823 = vld [vmem:[%s344 + $0xec0] sm:$0xff]
        %v824 = vld [vmem:[%s344 + $0xec8] sm:$0xff]
        %v825 = vld [vmem:[%s344 + $0xed0] sm:$0xff]
        %v826 = vld [vmem:[%s344 + $0xed8] sm:$0xff]
        %v827 = vld [vmem:[%s344 + $0xee0] sm:$0xff]
        %v828 = vld [vmem:[%s344 + $0xee8] sm:$0xff]
        %v829 = vld [vmem:[%s344 + $0xef0] sm:$0xff]
        %v830 = vld [vmem:[%s344 + $0xef8] sm:$0xff]
        %v831 = vld [vmem:[%s344 + $0xf00] sm:$0xff]
        %v832 = vld [vmem:[%s344 + $0xf08] sm:$0xff]
        %v833 = vld [vmem:[%s344 + $0xf10] sm:$0xff]
        %v834 = vld [vmem:[%s344 + $0xf18] sm:$0xff]
        %v835 = vld [vmem:[%s344 + $0xf20] sm:$0xff]
        %v836 = vld [vmem:[%s344 + $0xf28] sm:$0xff]
        %v837 = vld [vmem:[%s344 + $0xf30] sm:$0xff]
        %v838 = vld [vmem:[%s344 + $0xf38] sm:$0xff]
        %v839 = vld [vmem:[%s344 + $0xf40] sm:$0xff]
        %v840 = vld [vmem:[%s344 + $0xf48] sm:$0xff]
        %v841 = vld [vmem:[%s344 + $0xf50] sm:$0xff]
        %v842 = vld [vmem:[%s344 + $0xf58] sm:$0xff]
        %v843 = vld [vmem:[%s344 + $0xf60] sm:$0xff]
        %v844 = vld [vmem:[%s344 + $0xf68] sm:$0xff]
        %v845 = vld [vmem:[%s344 + $0xf70] sm:$0xff]
        %v846 = vld [vmem:[%s344 + $0xf78] sm:$0xff]
        %v847 = vld [vmem:[%s344 + $0xf80] sm:$0xff]
        %v848 = vld [vmem:[%s344 + $0xf88] sm:$0xff]
        %v849 = vld [vmem:[%s344 + $0xf90] sm:$0xff]
        %v850 = vld [vmem:[%s344 + $0xf98] sm:$0xff]
        %v851 = vld [vmem:[%s344 + $0xfa0] sm:$0xff]
        %v852 = vld [vmem:[%s344 + $0xfa8] sm:$0xff]
        %v853 = vld [vmem:[%s344 + $0xfb0] sm:$0xff]
        %v854 = vld [vmem:[%s344 + $0xfb8] sm:$0xff]
        %v855 = vld [vmem:[%s344 + $0xfc0] sm:$0xff]
        %v856 = vld [vmem:[%s344 + $0xfc8] sm:$0xff]
        %v857 = vld [vmem:[%s344 + $0xfd0] sm:$0xff]
        %v858 = vld [vmem:[%s344 + $0xfd8] sm:$0xff]
        %v859 = vld [vmem:[%s344 + $0xfe0] sm:$0xff]
        %v860 = vld [vmem:[%s344 + $0xfe8] sm:$0xff]
        %v861 = vld [vmem:[%s344 + $0xff0] sm:$0xff]
        %v862 = vld [vmem:[%s344 + $0xff8] sm:$0xff]
        %v863 = vpack.c.bf16 %v353, %v351
        %v864 = vpack.c.bf16 %v354, %v352
        %v865 = vpack.c.bf16 %v357, %v355
        %v866 = vpack.c.bf16 %v358, %v356
        %v867 = vpack.c.bf16 %v361, %v359
        %v868 = vpack.c.bf16 %v362, %v360
        %v869 = vpack.c.bf16 %v365, %v363
        %v870 = vpack.c.bf16 %v366, %v364
        %v871 = vpack.c.bf16 %v369, %v367
        %v872 = vpack.c.bf16 %v370, %v368
        %v873 = vpack.c.bf16 %v373, %v371
        %v874 = vpack.c.bf16 %v374, %v372
        %v875 = vpack.c.bf16 %v377, %v375
        %v876 = vpack.c.bf16 %v378, %v376
        %v877 = vpack.c.bf16 %v381, %v379
        %v878 = vpack.c.bf16 %v382, %v380
        %v879 = vpack.c.bf16 %v385, %v383
        %v880 = vpack.c.bf16 %v386, %v384
        %v881 = vpack.c.bf16 %v389, %v387
        %v882 = vpack.c.bf16 %v390, %v388
        %v883 = vpack.c.bf16 %v393, %v391
        %v884 = vpack.c.bf16 %v394, %v392
        %v885 = vpack.c.bf16 %v397, %v395
        %v886 = vpack.c.bf16 %v398, %v396
        %v887 = vpack.c.bf16 %v401, %v399
        %v888 = vpack.c.bf16 %v402, %v400
        %v889 = vpack.c.bf16 %v405, %v403
        %v890 = vpack.c.bf16 %v406, %v404
        %v891 = vpack.c.bf16 %v409, %v407
        %v892 = vpack.c.bf16 %v410, %v408
        %v893 = vpack.c.bf16 %v413, %v411
        %v894 = vpack.c.bf16 %v414, %v412
        %v895 = vpack.c.bf16 %v417, %v415
        %v896 = vpack.c.bf16 %v418, %v416
        %v897 = vpack.c.bf16 %v421, %v419
        %v898 = vpack.c.bf16 %v422, %v420
        %v899 = vpack.c.bf16 %v425, %v423
        %v900 = vpack.c.bf16 %v426, %v424
        %v901 = vpack.c.bf16 %v429, %v427
        %v902 = vpack.c.bf16 %v430, %v428
        %v903 = vpack.c.bf16 %v433, %v431
        %v904 = vpack.c.bf16 %v434, %v432
        %v905 = vpack.c.bf16 %v437, %v435
        %v906 = vpack.c.bf16 %v438, %v436
        %v907 = vpack.c.bf16 %v441, %v439
        %v908 = vpack.c.bf16 %v442, %v440
        %v909 = vpack.c.bf16 %v445, %v443
        %v910 = vpack.c.bf16 %v446, %v444
        %v911 = vpack.c.bf16 %v449, %v447
        %v912 = vpack.c.bf16 %v450, %v448
        %v913 = vpack.c.bf16 %v453, %v451
        %v914 = vpack.c.bf16 %v454, %v452
        %v915 = vpack.c.bf16 %v457, %v455
        %v916 = vpack.c.bf16 %v458, %v456
        %v917 = vpack.c.bf16 %v461, %v459
        %v918 = vpack.c.bf16 %v462, %v460
        %v919 = vpack.c.bf16 %v465, %v463
        %v920 = vpack.c.bf16 %v466, %v464
        %v921 = vpack.c.bf16 %v469, %v467
        %v922 = vpack.c.bf16 %v470, %v468
        %v923 = vpack.c.bf16 %v473, %v471
        %v924 = vpack.c.bf16 %v474, %v472
        %v925 = vpack.c.bf16 %v477, %v475
        %v926 = vpack.c.bf16 %v478, %v476
        %v927 = vpack.c.bf16 %v481, %v479
        %v928 = vpack.c.bf16 %v482, %v480
        %v929 = vpack.c.bf16 %v485, %v483
        %v930 = vpack.c.bf16 %v486, %v484
        %v931 = vpack.c.bf16 %v489, %v487
        %v932 = vpack.c.bf16 %v490, %v488
        %v933 = vpack.c.bf16 %v493, %v491
        %v934 = vpack.c.bf16 %v494, %v492
        %v935 = vpack.c.bf16 %v497, %v495
        %v936 = vpack.c.bf16 %v498, %v496
        %v937 = vpack.c.bf16 %v501, %v499
        %v938 = vpack.c.bf16 %v502, %v500
        %v939 = vpack.c.bf16 %v505, %v503
        %v940 = vpack.c.bf16 %v506, %v504
        %v941 = vpack.c.bf16 %v509, %v507
        %v942 = vpack.c.bf16 %v510, %v508
        %v943 = vpack.c.bf16 %v513, %v511
        %v944 = vpack.c.bf16 %v514, %v512
        %v945 = vpack.c.bf16 %v517, %v515
        %v946 = vpack.c.bf16 %v518, %v516
        %v947 = vpack.c.bf16 %v521, %v519
        %v948 = vpack.c.bf16 %v522, %v520
        %v949 = vpack.c.bf16 %v525, %v523
        %v950 = vpack.c.bf16 %v526, %v524
        %v951 = vpack.c.bf16 %v529, %v527
        %v952 = vpack.c.bf16 %v530, %v528
        %v953 = vpack.c.bf16 %v533, %v531
        %v954 = vpack.c.bf16 %v534, %v532
        %v955 = vpack.c.bf16 %v537, %v535
        %v956 = vpack.c.bf16 %v538, %v536
        %v957 = vpack.c.bf16 %v541, %v539
        %v958 = vpack.c.bf16 %v542, %v540
        %v959 = vpack.c.bf16 %v545, %v543
        %v960 = vpack.c.bf16 %v546, %v544
        %v961 = vpack.c.bf16 %v549, %v547
        %v962 = vpack.c.bf16 %v550, %v548
        %v963 = vpack.c.bf16 %v553, %v551
        %v964 = vpack.c.bf16 %v554, %v552
        %v965 = vpack.c.bf16 %v557, %v555
        %v966 = vpack.c.bf16 %v558, %v556
        %v967 = vpack.c.bf16 %v561, %v559
        %v968 = vpack.c.bf16 %v562, %v560
        %v969 = vpack.c.bf16 %v565, %v563
        %v970 = vpack.c.bf16 %v566, %v564
        %v971 = vpack.c.bf16 %v569, %v567
        %v972 = vpack.c.bf16 %v570, %v568
        %v973 = vpack.c.bf16 %v573, %v571
        %v974 = vpack.c.bf16 %v574, %v572
        %v975 = vpack.c.bf16 %v577, %v575
        %v976 = vpack.c.bf16 %v578, %v576
        %v977 = vpack.c.bf16 %v581, %v579
        %v978 = vpack.c.bf16 %v582, %v580
        %v979 = vpack.c.bf16 %v585, %v583
        %v980 = vpack.c.bf16 %v586, %v584
        %v981 = vpack.c.bf16 %v589, %v587
        %v982 = vpack.c.bf16 %v590, %v588
        %v983 = vpack.c.bf16 %v593, %v591
        %v984 = vpack.c.bf16 %v594, %v592
        %v985 = vpack.c.bf16 %v597, %v595
        %v986 = vpack.c.bf16 %v598, %v596
        %v987 = vpack.c.bf16 %v601, %v599
        %v988 = vpack.c.bf16 %v602, %v600
        %v989 = vpack.c.bf16 %v605, %v603
        %v990 = vpack.c.bf16 %v606, %v604
        %v991 = vpack.c.bf16 %v609, %v607
        %v992 = vpack.c.bf16 %v610, %v608
        %v993 = vpack.c.bf16 %v613, %v611
        %v994 = vpack.c.bf16 %v614, %v612
        %v995 = vpack.c.bf16 %v617, %v615
        %v996 = vpack.c.bf16 %v618, %v616
        %v997 = vpack.c.bf16 %v621, %v619
        %v998 = vpack.c.bf16 %v622, %v620
        %v999 = vpack.c.bf16 %v625, %v623
        %v1000 = vpack.c.bf16 %v626, %v624
        %v1001 = vpack.c.bf16 %v629, %v627
        %v1002 = vpack.c.bf16 %v630, %v628
        %v1003 = vpack.c.bf16 %v633, %v631
        %v1004 = vpack.c.bf16 %v634, %v632
        %v1005 = vpack.c.bf16 %v637, %v635
        %v1006 = vpack.c.bf16 %v638, %v636
        %v1007 = vpack.c.bf16 %v641, %v639
        %v1008 = vpack.c.bf16 %v642, %v640
        %v1009 = vpack.c.bf16 %v645, %v643
        %v1010 = vpack.c.bf16 %v646, %v644
        %v1011 = vpack.c.bf16 %v649, %v647
        %v1012 = vpack.c.bf16 %v650, %v648
        %v1013 = vpack.c.bf16 %v653, %v651
        %v1014 = vpack.c.bf16 %v654, %v652
        %v1015 = vpack.c.bf16 %v657, %v655
        %v1016 = vpack.c.bf16 %v658, %v656
        %v1017 = vpack.c.bf16 %v661, %v659
        %v1018 = vpack.c.bf16 %v662, %v660
        %v1019 = vpack.c.bf16 %v665, %v663
        %v1020 = vpack.c.bf16 %v666, %v664
        %v1021 = vpack.c.bf16 %v669, %v667
        %v1022 = vpack.c.bf16 %v670, %v668
        %v1023 = vpack.c.bf16 %v673, %v671
        %v1024 = vpack.c.bf16 %v674, %v672
        %v1025 = vpack.c.bf16 %v677, %v675
        %v1026 = vpack.c.bf16 %v678, %v676
        %v1027 = vpack.c.bf16 %v681, %v679
        %v1028 = vpack.c.bf16 %v682, %v680
        %v1029 = vpack.c.bf16 %v685, %v683
        %v1030 = vpack.c.bf16 %v686, %v684
        %v1031 = vpack.c.bf16 %v689, %v687
        %v1032 = vpack.c.bf16 %v690, %v688
        %v1033 = vpack.c.bf16 %v693, %v691
        %v1034 = vpack.c.bf16 %v694, %v692
        %v1035 = vpack.c.bf16 %v697, %v695
        %v1036 = vpack.c.bf16 %v698, %v696
        %v1037 = vpack.c.bf16 %v701, %v699
        %v1038 = vpack.c.bf16 %v702, %v700
        %v1039 = vpack.c.bf16 %v705, %v703
        %v1040 = vpack.c.bf16 %v706, %v704
        %v1041 = vpack.c.bf16 %v709, %v707
        %v1042 = vpack.c.bf16 %v710, %v708
        %v1043 = vpack.c.bf16 %v713, %v711
        %v1044 = vpack.c.bf16 %v714, %v712
        %v1045 = vpack.c.bf16 %v717, %v715
        %v1046 = vpack.c.bf16 %v718, %v716
        %v1047 = vpack.c.bf16 %v721, %v719
        %v1048 = vpack.c.bf16 %v722, %v720
        %v1049 = vpack.c.bf16 %v725, %v723
        %v1050 = vpack.c.bf16 %v726, %v724
        %v1051 = vpack.c.bf16 %v729, %v727
        %v1052 = vpack.c.bf16 %v730, %v728
        %v1053 = vpack.c.bf16 %v733, %v731
        %v1054 = vpack.c.bf16 %v734, %v732
        %v1055 = vpack.c.bf16 %v737, %v735
        %v1056 = vpack.c.bf16 %v738, %v736
        %v1057 = vpack.c.bf16 %v741, %v739
        %v1058 = vpack.c.bf16 %v742, %v740
        %v1059 = vpack.c.bf16 %v745, %v743
        %v1060 = vpack.c.bf16 %v746, %v744
        %v1061 = vpack.c.bf16 %v749, %v747
        %v1062 = vpack.c.bf16 %v750, %v748
        %v1063 = vpack.c.bf16 %v753, %v751
        %v1064 = vpack.c.bf16 %v754, %v752
        %v1065 = vpack.c.bf16 %v757, %v755
        %v1066 = vpack.c.bf16 %v758, %v756
        %v1067 = vpack.c.bf16 %v761, %v759
        %v1068 = vpack.c.bf16 %v762, %v760
        %v1069 = vpack.c.bf16 %v765, %v763
        %v1070 = vpack.c.bf16 %v766, %v764
        %v1071 = vpack.c.bf16 %v769, %v767
        %v1072 = vpack.c.bf16 %v770, %v768
        %v1073 = vpack.c.bf16 %v773, %v771
        %v1074 = vpack.c.bf16 %v774, %v772
        %v1075 = vpack.c.bf16 %v777, %v775
        %v1076 = vpack.c.bf16 %v778, %v776
        %v1077 = vpack.c.bf16 %v781, %v779
        %v1078 = vpack.c.bf16 %v782, %v780
        %v1079 = vpack.c.bf16 %v785, %v783
        %v1080 = vpack.c.bf16 %v786, %v784
        %v1081 = vpack.c.bf16 %v789, %v787
        %v1082 = vpack.c.bf16 %v790, %v788
        %v1083 = vpack.c.bf16 %v793, %v791
        %v1084 = vpack.c.bf16 %v794, %v792
        %v1085 = vpack.c.bf16 %v797, %v795
        %v1086 = vpack.c.bf16 %v798, %v796
        %v1087 = vpack.c.bf16 %v801, %v799
        %v1088 = vpack.c.bf16 %v802, %v800
        %v1089 = vpack.c.bf16 %v805, %v803
        %v1090 = vpack.c.bf16 %v806, %v804
        %v1091 = vpack.c.bf16 %v809, %v807
        %v1092 = vpack.c.bf16 %v810, %v808
        %v1093 = vpack.c.bf16 %v813, %v811
        %v1094 = vpack.c.bf16 %v814, %v812
        %v1095 = vpack.c.bf16 %v817, %v815
        %v1096 = vpack.c.bf16 %v818, %v816
        %v1097 = vpack.c.bf16 %v821, %v819
        %v1098 = vpack.c.bf16 %v822, %v820
        %v1099 = vpack.c.bf16 %v825, %v823
        %v1100 = vpack.c.bf16 %v826, %v824
        %v1101 = vpack.c.bf16 %v829, %v827
        %v1102 = vpack.c.bf16 %v830, %v828
        %v1103 = vpack.c.bf16 %v833, %v831
        %v1104 = vpack.c.bf16 %v834, %v832
        %v1105 = vpack.c.bf16 %v837, %v835
        %v1106 = vpack.c.bf16 %v838, %v836
        %v1107 = vpack.c.bf16 %v841, %v839
        %v1108 = vpack.c.bf16 %v842, %v840
        %v1109 = vpack.c.bf16 %v845, %v843
        %v1110 = vpack.c.bf16 %v846, %v844
        %v1111 = vpack.c.bf16 %v849, %v847
        %v1112 = vpack.c.bf16 %v850, %v848
        %v1113 = vpack.c.bf16 %v853, %v851
        %v1114 = vpack.c.bf16 %v854, %v852
        %v1115 = vpack.c.bf16 %v857, %v855
        %v1116 = vpack.c.bf16 %v858, %v856
        %v1117 = vpack.c.bf16 %v861, %v859
        %v1118 = vpack.c.bf16 %v862, %v860
        %v1119 = vld [vmem:[%s1] sm:$0xff]
        %v1120 = vld [vmem:[%s1 + $0x8] sm:$0xff]
        %v1121 = vld [vmem:[%s1 + $0x10] sm:$0xff]
        %v1122 = vld [vmem:[%s1 + $0x18] sm:$0xff]
        %v1123 = vld [vmem:[%s1 + $0x20] sm:$0xff]
        %v1124 = vld [vmem:[%s1 + $0x28] sm:$0xff]
        %v1125 = vld [vmem:[%s1 + $0x30] sm:$0xff]
        %v1126 = vld [vmem:[%s1 + $0x38] sm:$0xff]
        %v1127 = vld [vmem:[%s1 + $0x40] sm:$0xff]
        %v1128 = vld [vmem:[%s1 + $0x48] sm:$0xff]
        %v1129 = vld [vmem:[%s1 + $0x50] sm:$0xff]
        %v1130 = vld [vmem:[%s1 + $0x58] sm:$0xff]
        %v1131 = vld [vmem:[%s1 + $0x60] sm:$0xff]
        %v1132 = vld [vmem:[%s1 + $0x68] sm:$0xff]
        %v1133 = vld [vmem:[%s1 + $0x70] sm:$0xff]
        %v1134 = vld [vmem:[%s1 + $0x78] sm:$0xff]
        %v1135 = vld [vmem:[%s1 + $0x80] sm:$0xff]
        %v1136 = vld [vmem:[%s1 + $0x88] sm:$0xff]
        %v1137 = vld [vmem:[%s1 + $0x90] sm:$0xff]
        %v1138 = vld [vmem:[%s1 + $0x98] sm:$0xff]
        %v1139 = vld [vmem:[%s1 + $0xa0] sm:$0xff]
        %v1140 = vld [vmem:[%s1 + $0xa8] sm:$0xff]
        %v1141 = vld [vmem:[%s1 + $0xb0] sm:$0xff]
        %v1142 = vld [vmem:[%s1 + $0xb8] sm:$0xff]
        %v1143 = vld [vmem:[%s1 + $0xc0] sm:$0xff]
        %v1144 = vld [vmem:[%s1 + $0xc8] sm:$0xff]
        %v1145 = vld [vmem:[%s1 + $0xd0] sm:$0xff]
        %v1146 = vld [vmem:[%s1 + $0xd8] sm:$0xff]
        %v1147 = vld [vmem:[%s1 + $0xe0] sm:$0xff]
        %v1148 = vld [vmem:[%s1 + $0xe8] sm:$0xff]
        %v1149 = vld [vmem:[%s1 + $0xf0] sm:$0xff]
        %v1150 = vld [vmem:[%s1 + $0xf8] sm:$0xff]
        %v1151 = vld [vmem:[%s1 + $0x100] sm:$0xff]
        %v1152 = vld [vmem:[%s1 + $0x108] sm:$0xff]
        %v1153 = vld [vmem:[%s1 + $0x110] sm:$0xff]
        %v1154 = vld [vmem:[%s1 + $0x118] sm:$0xff]
        %v1155 = vld [vmem:[%s1 + $0x120] sm:$0xff]
        %v1156 = vld [vmem:[%s1 + $0x128] sm:$0xff]
        %v1157 = vld [vmem:[%s1 + $0x130] sm:$0xff]
        %v1158 = vld [vmem:[%s1 + $0x138] sm:$0xff]
        %v1159 = vld [vmem:[%s1 + $0x140] sm:$0xff]
        %v1160 = vld [vmem:[%s1 + $0x148] sm:$0xff]
        %v1161 = vld [vmem:[%s1 + $0x150] sm:$0xff]
        %v1162 = vld [vmem:[%s1 + $0x158] sm:$0xff]
        %v1163 = vld [vmem:[%s1 + $0x160] sm:$0xff]
        %v1164 = vld [vmem:[%s1 + $0x168] sm:$0xff]
        %v1165 = vld [vmem:[%s1 + $0x170] sm:$0xff]
        %v1166 = vld [vmem:[%s1 + $0x178] sm:$0xff]
        %v1167 = vld [vmem:[%s1 + $0x180] sm:$0xff]
        %v1168 = vld [vmem:[%s1 + $0x188] sm:$0xff]
        %v1169 = vld [vmem:[%s1 + $0x190] sm:$0xff]
        %v1170 = vld [vmem:[%s1 + $0x198] sm:$0xff]
        %v1171 = vld [vmem:[%s1 + $0x1a0] sm:$0xff]
        %v1172 = vld [vmem:[%s1 + $0x1a8] sm:$0xff]
        %v1173 = vld [vmem:[%s1 + $0x1b0] sm:$0xff]
        %v1174 = vld [vmem:[%s1 + $0x1b8] sm:$0xff]
        %v1175 = vld [vmem:[%s1 + $0x1c0] sm:$0xff]
        %v1176 = vld [vmem:[%s1 + $0x1c8] sm:$0xff]
        %v1177 = vld [vmem:[%s1 + $0x1d0] sm:$0xff]
        %v1178 = vld [vmem:[%s1 + $0x1d8] sm:$0xff]
        %v1179 = vld [vmem:[%s1 + $0x1e0] sm:$0xff]
        %v1180 = vld [vmem:[%s1 + $0x1e8] sm:$0xff]
        %v1181 = vld [vmem:[%s1 + $0x1f0] sm:$0xff]
        %v1182 = vld [vmem:[%s1 + $0x1f8] sm:$0xff]
        %v1247 = vunpack.c.l.b16 %v1119
        %v1248 = vunpack.c.h.b16 %v1119
        %v1249 = vunpack.c.l.b16 %v1120
        %v1250 = vunpack.c.h.b16 %v1120
        %v1251 = vunpack.c.l.b16 %v1121
        %v1252 = vunpack.c.h.b16 %v1121
        %v1253 = vunpack.c.l.b16 %v1122
        %v1254 = vunpack.c.h.b16 %v1122
        %v1255 = vunpack.c.l.b16 %v1123
        %v1256 = vunpack.c.h.b16 %v1123
        %v1257 = vunpack.c.l.b16 %v1124
        %v1258 = vunpack.c.h.b16 %v1124
        %v1259 = vunpack.c.l.b16 %v1125
        %v1260 = vunpack.c.h.b16 %v1125
        %v1261 = vunpack.c.l.b16 %v1126
        %v1262 = vunpack.c.h.b16 %v1126
        %v1263 = vunpack.c.l.b16 %v1127
        %v1264 = vunpack.c.h.b16 %v1127
        %v1265 = vunpack.c.l.b16 %v1128
        %v1266 = vunpack.c.h.b16 %v1128
        %v1267 = vunpack.c.l.b16 %v1129
        %v1268 = vunpack.c.h.b16 %v1129
        %v1269 = vunpack.c.l.b16 %v1130
        %v1270 = vunpack.c.h.b16 %v1130
        %v1271 = vunpack.c.l.b16 %v1131
        %v1272 = vunpack.c.h.b16 %v1131
        %v1273 = vunpack.c.l.b16 %v1132
        %v1274 = vunpack.c.h.b16 %v1132
        %v1275 = vunpack.c.l.b16 %v1133
        %v1276 = vunpack.c.h.b16 %v1133
        %v1277 = vunpack.c.l.b16 %v1134
        %v1278 = vunpack.c.h.b16 %v1134
        %v1279 = vunpack.c.l.b16 %v1135
        %v1280 = vunpack.c.h.b16 %v1135
        %v1281 = vunpack.c.l.b16 %v1136
        %v1282 = vunpack.c.h.b16 %v1136
        %v1283 = vunpack.c.l.b16 %v1137
        %v1284 = vunpack.c.h.b16 %v1137
        %v1285 = vunpack.c.l.b16 %v1138
        %v1286 = vunpack.c.h.b16 %v1138
        %v1287 = vunpack.c.l.b16 %v1139
        %v1288 = vunpack.c.h.b16 %v1139
        %v1289 = vunpack.c.l.b16 %v1140
        %v1290 = vunpack.c.h.b16 %v1140
        %v1291 = vunpack.c.l.b16 %v1141
        %v1292 = vunpack.c.h.b16 %v1141
        %v1293 = vunpack.c.l.b16 %v1142
        %v1294 = vunpack.c.h.b16 %v1142
        %v1295 = vunpack.c.l.b16 %v1143
        %v1296 = vunpack.c.h.b16 %v1143
        %v1297 = vunpack.c.l.b16 %v1144
        %v1298 = vunpack.c.h.b16 %v1144
        %v1299 = vunpack.c.l.b16 %v1145
        %v1300 = vunpack.c.h.b16 %v1145
        %v1301 = vunpack.c.l.b16 %v1146
        %v1302 = vunpack.c.h.b16 %v1146
        %v1303 = vunpack.c.l.b16 %v1147
        %v1304 = vunpack.c.h.b16 %v1147
        %v1305 = vunpack.c.l.b16 %v1148
        %v1306 = vunpack.c.h.b16 %v1148
        %v1307 = vunpack.c.l.b16 %v1149
        %v1308 = vunpack.c.h.b16 %v1149
        %v1309 = vunpack.c.l.b16 %v1150
        %v1310 = vunpack.c.h.b16 %v1150
        %v1311 = vunpack.c.l.b16 %v1151
        %v1312 = vunpack.c.h.b16 %v1151
        %v1313 = vunpack.c.l.b16 %v1152
        %v1314 = vunpack.c.h.b16 %v1152
        %v1315 = vunpack.c.l.b16 %v1153
        %v1316 = vunpack.c.h.b16 %v1153
        %v1317 = vunpack.c.l.b16 %v1154
        %v1318 = vunpack.c.h.b16 %v1154
        %v1319 = vunpack.c.l.b16 %v1155
        %v1320 = vunpack.c.h.b16 %v1155
        %v1321 = vunpack.c.l.b16 %v1156
        %v1322 = vunpack.c.h.b16 %v1156
        %v1323 = vunpack.c.l.b16 %v1157
        %v1324 = vunpack.c.h.b16 %v1157
        %v1325 = vunpack.c.l.b16 %v1158
        %v1326 = vunpack.c.h.b16 %v1158
        %v1327 = vunpack.c.l.b16 %v1159
        %v1328 = vunpack.c.h.b16 %v1159
        %v1329 = vunpack.c.l.b16 %v1160
        %v1330 = vunpack.c.h.b16 %v1160
        %v1331 = vunpack.c.l.b16 %v1161
        %v1332 = vunpack.c.h.b16 %v1161
        %v1333 = vunpack.c.l.b16 %v1162
        %v1334 = vunpack.c.h.b16 %v1162
        %v1335 = vunpack.c.l.b16 %v1163
        %v1336 = vunpack.c.h.b16 %v1163
        %v1337 = vunpack.c.l.b16 %v1164
        %v1338 = vunpack.c.h.b16 %v1164
        %v1339 = vunpack.c.l.b16 %v1165
        %v1340 = vunpack.c.h.b16 %v1165
        %v1341 = vunpack.c.l.b16 %v1166
        %v1342 = vunpack.c.h.b16 %v1166
        %v1343 = vunpack.c.l.b16 %v1167
        %v1344 = vunpack.c.h.b16 %v1167
        %v1345 = vunpack.c.l.b16 %v1168
        %v1346 = vunpack.c.h.b16 %v1168
        %v1347 = vunpack.c.l.b16 %v1169
        %v1348 = vunpack.c.h.b16 %v1169
        %v1349 = vunpack.c.l.b16 %v1170
        %v1350 = vunpack.c.h.b16 %v1170
        %v1351 = vunpack.c.l.b16 %v1171
        %v1352 = vunpack.c.h.b16 %v1171
        %v1353 = vunpack.c.l.b16 %v1172
        %v1354 = vunpack.c.h.b16 %v1172
        %v1355 = vunpack.c.l.b16 %v1173
        %v1356 = vunpack.c.h.b16 %v1173
        %v1357 = vunpack.c.l.b16 %v1174
        %v1358 = vunpack.c.h.b16 %v1174
        %v1359 = vunpack.c.l.b16 %v1175
        %v1360 = vunpack.c.h.b16 %v1175
        %v1361 = vunpack.c.l.b16 %v1176
        %v1362 = vunpack.c.h.b16 %v1176
        %v1363 = vunpack.c.l.b16 %v1177
        %v1364 = vunpack.c.h.b16 %v1177
        %v1365 = vunpack.c.l.b16 %v1178
        %v1366 = vunpack.c.h.b16 %v1178
        %v1367 = vunpack.c.l.b16 %v1179
        %v1368 = vunpack.c.h.b16 %v1179
        %v1369 = vunpack.c.l.b16 %v1180
        %v1370 = vunpack.c.h.b16 %v1180
        %v1371 = vunpack.c.l.b16 %v1181
        %v1372 = vunpack.c.h.b16 %v1181
        %v1373 = vunpack.c.l.b16 %v1182
        %v1374 = vunpack.c.h.b16 %v1182
        %v1375 = vpack.c.b16 %v1263, %v1247
        %v1376 = vpack.c.b16 %v1264, %v1248
        %v1377 = vpack.c.b16 %v1265, %v1249
        %v1378 = vpack.c.b16 %v1266, %v1250
        %v1379 = vpack.c.b16 %v1267, %v1251
        %v1380 = vpack.c.b16 %v1268, %v1252
        %v1381 = vpack.c.b16 %v1269, %v1253
        %v1382 = vpack.c.b16 %v1270, %v1254
        %v1383 = vpack.c.b16 %v1271, %v1255
        %v1384 = vpack.c.b16 %v1272, %v1256
        %v1385 = vpack.c.b16 %v1273, %v1257
        %v1386 = vpack.c.b16 %v1274, %v1258
        %v1387 = vpack.c.b16 %v1275, %v1259
        %v1388 = vpack.c.b16 %v1276, %v1260
        %v1389 = vpack.c.b16 %v1277, %v1261
        %v1390 = vpack.c.b16 %v1278, %v1262
        %v1391 = vpack.c.b16 %v1295, %v1279
        %v1392 = vpack.c.b16 %v1296, %v1280
        %v1393 = vpack.c.b16 %v1297, %v1281
        %v1394 = vpack.c.b16 %v1298, %v1282
        %v1395 = vpack.c.b16 %v1299, %v1283
        %v1396 = vpack.c.b16 %v1300, %v1284
        %v1397 = vpack.c.b16 %v1301, %v1285
        %v1398 = vpack.c.b16 %v1302, %v1286
        %v1399 = vpack.c.b16 %v1303, %v1287
        %v1400 = vpack.c.b16 %v1304, %v1288
        %v1401 = vpack.c.b16 %v1305, %v1289
        %v1402 = vpack.c.b16 %v1306, %v1290
        %v1403 = vpack.c.b16 %v1307, %v1291
        %v1404 = vpack.c.b16 %v1308, %v1292
        %v1405 = vpack.c.b16 %v1309, %v1293
        %v1406 = vpack.c.b16 %v1310, %v1294
        %v1407 = vpack.c.b16 %v1327, %v1311
        %v1408 = vpack.c.b16 %v1328, %v1312
        %v1409 = vpack.c.b16 %v1329, %v1313
        %v1410 = vpack.c.b16 %v1330, %v1314
        %v1411 = vpack.c.b16 %v1331, %v1315
        %v1412 = vpack.c.b16 %v1332, %v1316
        %v1413 = vpack.c.b16 %v1333, %v1317
        %v1414 = vpack.c.b16 %v1334, %v1318
        %v1415 = vpack.c.b16 %v1335, %v1319
        %v1416 = vpack.c.b16 %v1336, %v1320
        %v1417 = vpack.c.b16 %v1337, %v1321
        %v1418 = vpack.c.b16 %v1338, %v1322
        %v1419 = vpack.c.b16 %v1339, %v1323
        %v1420 = vpack.c.b16 %v1340, %v1324
        %v1421 = vpack.c.b16 %v1341, %v1325
        %v1422 = vpack.c.b16 %v1342, %v1326
        %v1423 = vpack.c.b16 %v1359, %v1343
        %v1424 = vpack.c.b16 %v1360, %v1344
        %v1425 = vpack.c.b16 %v1361, %v1345
        %v1426 = vpack.c.b16 %v1362, %v1346
        %v1427 = vpack.c.b16 %v1363, %v1347
        %v1428 = vpack.c.b16 %v1364, %v1348
        %v1429 = vpack.c.b16 %v1365, %v1349
        %v1430 = vpack.c.b16 %v1366, %v1350
        %v1431 = vpack.c.b16 %v1367, %v1351
        %v1432 = vpack.c.b16 %v1368, %v1352
        %v1433 = vpack.c.b16 %v1369, %v1353
        %v1434 = vpack.c.b16 %v1370, %v1354
        %v1435 = vpack.c.b16 %v1371, %v1355
        %v1436 = vpack.c.b16 %v1372, %v1356
        %v1437 = vpack.c.b16 %v1373, %v1357
        %v1438 = vpack.c.b16 %v1374, %v1358
        %1503 = vmatpush.bf16.msra.mxu0 %v877
        %1504 = vmatpush.bf16.msra.mxu0 %v875
        %1505 = vmatpush.bf16.msra.mxu0 %v873
        %1506 = vmatpush.bf16.msra.mxu0 %v871
        %1507 = vmatpush.bf16.msra.mxu0 %v869
        %1508 = vmatpush.bf16.msra.mxu0 %v867
        %1509 = vmatpush.bf16.msra.mxu0 %v865
        %1510 = vmatpush.bf16.msra.mxu0 %v863
        %1511 = vmatmul.bf16.gmra.mxu0 %v1375
        %v1512 = vpop.f32.mrf.mxu0
        %v1513 = vadd.f32 0.0, %v1512
        %v1514 = vpop.f32.mrf.mxu0
        %v1515 = vadd.f32 0.0, %v1514
        %1516 = vmatmul.bf16.gmra.mxu0 %v1391
        %v1517 = vpop.f32.mrf.mxu0
        %v1518 = vadd.f32 0.0, %v1517
        %v1519 = vpop.f32.mrf.mxu0
        %v1520 = vadd.f32 0.0, %v1519
        %1521 = vmatmul.bf16.gmra.mxu0 %v1407
        %v1522 = vpop.f32.mrf.mxu0
        %v1523 = vadd.f32 0.0, %v1522
        %v1524 = vpop.f32.mrf.mxu0
        %v1525 = vadd.f32 0.0, %v1524
        %1526 = vmatmul.bf16.gmra.mxu0 %v1423
        %v1527 = vpop.f32.mrf.mxu0
        %v1528 = vadd.f32 0.0, %v1527
        %v1529 = vpop.f32.mrf.mxu0
        %v1530 = vadd.f32 0.0, %v1529
        %1531 = vdwg.mxu0
        %1532 = vmatpush.bf16.msra.mxu0 %v893
        %1533 = vmatpush.bf16.msra.mxu0 %v891
        %1534 = vmatpush.bf16.msra.mxu0 %v889
        %1535 = vmatpush.bf16.msra.mxu0 %v887
        %1536 = vmatpush.bf16.msra.mxu0 %v885
        %1537 = vmatpush.bf16.msra.mxu0 %v883
        %1538 = vmatpush.bf16.msra.mxu0 %v881
        %1539 = vmatpush.bf16.msra.mxu0 %v879
        %1540 = vmatmul.bf16.gmra.mxu0 %v1376
        %v1541 = vpop.f32.mrf.mxu0
        %v1542 = vadd.f32 %v1513, %v1541
        %v1543 = vpop.f32.mrf.mxu0
        %v1544 = vadd.f32 %v1515, %v1543
        %1545 = vmatmul.bf16.gmra.mxu0 %v1392
        %v1546 = vpop.f32.mrf.mxu0
        %v1547 = vadd.f32 %v1518, %v1546
        %v1548 = vpop.f32.mrf.mxu0
        %v1549 = vadd.f32 %v1520, %v1548
        %1550 = vmatmul.bf16.gmra.mxu0 %v1408
        %v1551 = vpop.f32.mrf.mxu0
        %v1552 = vadd.f32 %v1523, %v1551
        %v1553 = vpop.f32.mrf.mxu0
        %v1554 = vadd.f32 %v1525, %v1553
        %1555 = vmatmul.bf16.gmra.mxu0 %v1424
        %v1556 = vpop.f32.mrf.mxu0
        %v1557 = vadd.f32 %v1528, %v1556
        %v1558 = vpop.f32.mrf.mxu0
        %v1559 = vadd.f32 %v1530, %v1558
        %1560 = vdwg.mxu0
        %1561 = vmatpush.bf16.msra.mxu0 %v909
        %1562 = vmatpush.bf16.msra.mxu0 %v907
        %1563 = vmatpush.bf16.msra.mxu0 %v905
        %1564 = vmatpush.bf16.msra.mxu0 %v903
        %1565 = vmatpush.bf16.msra.mxu0 %v901
        %1566 = vmatpush.bf16.msra.mxu0 %v899
        %1567 = vmatpush.bf16.msra.mxu0 %v897
        %1568 = vmatpush.bf16.msra.mxu0 %v895
        %1569 = vmatmul.bf16.gmra.mxu0 %v1377
        %v1570 = vpop.f32.mrf.mxu0
        %v1571 = vadd.f32 %v1542, %v1570
        %v1572 = vpop.f32.mrf.mxu0
        %v1573 = vadd.f32 %v1544, %v1572
        %1574 = vmatmul.bf16.gmra.mxu0 %v1393
        %v1575 = vpop.f32.mrf.mxu0
        %v1576 = vadd.f32 %v1547, %v1575
        %v1577 = vpop.f32.mrf.mxu0
        %v1578 = vadd.f32 %v1549, %v1577
        %1579 = vmatmul.bf16.gmra.mxu0 %v1409
        %v1580 = vpop.f32.mrf.mxu0
        %v1581 = vadd.f32 %v1552, %v1580
        %v1582 = vpop.f32.mrf.mxu0
        %v1583 = vadd.f32 %v1554, %v1582
        %1584 = vmatmul.bf16.gmra.mxu0 %v1425
        %v1585 = vpop.f32.mrf.mxu0
        %v1586 = vadd.f32 %v1557, %v1585
        %v1587 = vpop.f32.mrf.mxu0
        %v1588 = vadd.f32 %v1559, %v1587
        %1589 = vdwg.mxu0
        %1590 = vmatpush.bf16.msra.mxu0 %v925
        %1591 = vmatpush.bf16.msra.mxu0 %v923
        %1592 = vmatpush.bf16.msra.mxu0 %v921
        %1593 = vmatpush.bf16.msra.mxu0 %v919
        %1594 = vmatpush.bf16.msra.mxu0 %v917
        %1595 = vmatpush.bf16.msra.mxu0 %v915
        %1596 = vmatpush.bf16.msra.mxu0 %v913
        %1597 = vmatpush.bf16.msra.mxu0 %v911
        %1598 = vmatmul.bf16.gmra.mxu0 %v1378
        %v1599 = vpop.f32.mrf.mxu0
        %v1600 = vadd.f32 %v1571, %v1599
        %v1601 = vpop.f32.mrf.mxu0
        %v1602 = vadd.f32 %v1573, %v1601
        %1603 = vmatmul.bf16.gmra.mxu0 %v1394
        %v1604 = vpop.f32.mrf.mxu0
        %v1605 = vadd.f32 %v1576, %v1604
        %v1606 = vpop.f32.mrf.mxu0
        %v1607 = vadd.f32 %v1578, %v1606
        %1608 = vmatmul.bf16.gmra.mxu0 %v1410
        %v1609 = vpop.f32.mrf.mxu0
        %v1610 = vadd.f32 %v1581, %v1609
        %v1611 = vpop.f32.mrf.mxu0
        %v1612 = vadd.f32 %v1583, %v1611
        %1613 = vmatmul.bf16.gmra.mxu0 %v1426
        %v1614 = vpop.f32.mrf.mxu0
        %v1615 = vadd.f32 %v1586, %v1614
        %v1616 = vpop.f32.mrf.mxu0
        %v1617 = vadd.f32 %v1588, %v1616
        %1618 = vdwg.mxu0
        %1619 = vmatpush.bf16.msra.mxu0 %v941
        %1620 = vmatpush.bf16.msra.mxu0 %v939
        %1621 = vmatpush.bf16.msra.mxu0 %v937
        %1622 = vmatpush.bf16.msra.mxu0 %v935
        %1623 = vmatpush.bf16.msra.mxu0 %v933
        %1624 = vmatpush.bf16.msra.mxu0 %v931
        %1625 = vmatpush.bf16.msra.mxu0 %v929
        %1626 = vmatpush.bf16.msra.mxu0 %v927
        %1627 = vmatmul.bf16.gmra.mxu0 %v1379
        %v1628 = vpop.f32.mrf.mxu0
        %v1629 = vadd.f32 %v1600, %v1628
        %v1630 = vpop.f32.mrf.mxu0
        %v1631 = vadd.f32 %v1602, %v1630
        %1632 = vmatmul.bf16.gmra.mxu0 %v1395
        %v1633 = vpop.f32.mrf.mxu0
        %v1634 = vadd.f32 %v1605, %v1633
        %v1635 = vpop.f32.mrf.mxu0
        %v1636 = vadd.f32 %v1607, %v1635
        %1637 = vmatmul.bf16.gmra.mxu0 %v1411
        %v1638 = vpop.f32.mrf.mxu0
        %v1639 = vadd.f32 %v1610, %v1638
        %v1640 = vpop.f32.mrf.mxu0
        %v1641 = vadd.f32 %v1612, %v1640
        %1642 = vmatmul.bf16.gmra.mxu0 %v1427
        %v1643 = vpop.f32.mrf.mxu0
        %v1644 = vadd.f32 %v1615, %v1643
        %v1645 = vpop.f32.mrf.mxu0
        %v1646 = vadd.f32 %v1617, %v1645
        %1647 = vdwg.mxu0
        %1648 = vmatpush.bf16.msra.mxu0 %v957
        %1649 = vmatpush.bf16.msra.mxu0 %v955
        %1650 = vmatpush.bf16.msra.mxu0 %v953
        %1651 = vmatpush.bf16.msra.mxu0 %v951
        %1652 = vmatpush.bf16.msra.mxu0 %v949
        %1653 = vmatpush.bf16.msra.mxu0 %v947
        %1654 = vmatpush.bf16.msra.mxu0 %v945
        %1655 = vmatpush.bf16.msra.mxu0 %v943
        %1656 = vmatmul.bf16.gmra.mxu0 %v1380
        %v1657 = vpop.f32.mrf.mxu0
        %v1658 = vadd.f32 %v1629, %v1657
        %v1659 = vpop.f32.mrf.mxu0
        %v1660 = vadd.f32 %v1631, %v1659
        %1661 = vmatmul.bf16.gmra.mxu0 %v1396
        %v1662 = vpop.f32.mrf.mxu0
        %v1663 = vadd.f32 %v1634, %v1662
        %v1664 = vpop.f32.mrf.mxu0
        %v1665 = vadd.f32 %v1636, %v1664
        %1666 = vmatmul.bf16.gmra.mxu0 %v1412
        %v1667 = vpop.f32.mrf.mxu0
        %v1668 = vadd.f32 %v1639, %v1667
        %v1669 = vpop.f32.mrf.mxu0
        %v1670 = vadd.f32 %v1641, %v1669
        %1671 = vmatmul.bf16.gmra.mxu0 %v1428
        %v1672 = vpop.f32.mrf.mxu0
        %v1673 = vadd.f32 %v1644, %v1672
        %v1674 = vpop.f32.mrf.mxu0
        %v1675 = vadd.f32 %v1646, %v1674
        %1676 = vdwg.mxu0
        %1677 = vmatpush.bf16.msra.mxu0 %v973
        %1678 = vmatpush.bf16.msra.mxu0 %v971
        %1679 = vmatpush.bf16.msra.mxu0 %v969
        %1680 = vmatpush.bf16.msra.mxu0 %v967
        %1681 = vmatpush.bf16.msra.mxu0 %v965
        %1682 = vmatpush.bf16.msra.mxu0 %v963
        %1683 = vmatpush.bf16.msra.mxu0 %v961
        %1684 = vmatpush.bf16.msra.mxu0 %v959
        %1685 = vmatmul.bf16.gmra.mxu0 %v1381
        %v1686 = vpop.f32.mrf.mxu0
        %v1687 = vadd.f32 %v1658, %v1686
        %v1688 = vpop.f32.mrf.mxu0
        %v1689 = vadd.f32 %v1660, %v1688
        %1690 = vmatmul.bf16.gmra.mxu0 %v1397
        %v1691 = vpop.f32.mrf.mxu0
        %v1692 = vadd.f32 %v1663, %v1691
        %v1693 = vpop.f32.mrf.mxu0
        %v1694 = vadd.f32 %v1665, %v1693
        %1695 = vmatmul.bf16.gmra.mxu0 %v1413
        %v1696 = vpop.f32.mrf.mxu0
        %v1697 = vadd.f32 %v1668, %v1696
        %v1698 = vpop.f32.mrf.mxu0
        %v1699 = vadd.f32 %v1670, %v1698
        %1700 = vmatmul.bf16.gmra.mxu0 %v1429
        %v1701 = vpop.f32.mrf.mxu0
        %v1702 = vadd.f32 %v1673, %v1701
        %v1703 = vpop.f32.mrf.mxu0
        %v1704 = vadd.f32 %v1675, %v1703
        %1705 = vdwg.mxu0
        %1706 = vmatpush.bf16.msra.mxu0 %v989
        %1707 = vmatpush.bf16.msra.mxu0 %v987
        %1708 = vmatpush.bf16.msra.mxu0 %v985
        %1709 = vmatpush.bf16.msra.mxu0 %v983
        %1710 = vmatpush.bf16.msra.mxu0 %v981
        %1711 = vmatpush.bf16.msra.mxu0 %v979
        %1712 = vmatpush.bf16.msra.mxu0 %v977
        %1713 = vmatpush.bf16.msra.mxu0 %v975
        %1714 = vmatmul.bf16.gmra.mxu0 %v1382
        %v1715 = vpop.f32.mrf.mxu0
        %v1716 = vadd.f32 %v1687, %v1715
        %v1717 = vpop.f32.mrf.mxu0
        %v1718 = vadd.f32 %v1689, %v1717
        %1719 = vmatmul.bf16.gmra.mxu0 %v1398
        %v1720 = vpop.f32.mrf.mxu0
        %v1721 = vadd.f32 %v1692, %v1720
        %v1722 = vpop.f32.mrf.mxu0
        %v1723 = vadd.f32 %v1694, %v1722
        %1724 = vmatmul.bf16.gmra.mxu0 %v1414
        %v1725 = vpop.f32.mrf.mxu0
        %v1726 = vadd.f32 %v1697, %v1725
        %v1727 = vpop.f32.mrf.mxu0
        %v1728 = vadd.f32 %v1699, %v1727
        %1729 = vmatmul.bf16.gmra.mxu0 %v1430
        %v1730 = vpop.f32.mrf.mxu0
        %v1731 = vadd.f32 %v1702, %v1730
        %v1732 = vpop.f32.mrf.mxu0
        %v1733 = vadd.f32 %v1704, %v1732
        %1734 = vdwg.mxu0
        %1735 = vmatpush.bf16.msra.mxu0 %v1005
        %1736 = vmatpush.bf16.msra.mxu0 %v1003
        %1737 = vmatpush.bf16.msra.mxu0 %v1001
        %1738 = vmatpush.bf16.msra.mxu0 %v999
        %1739 = vmatpush.bf16.msra.mxu0 %v997
        %1740 = vmatpush.bf16.msra.mxu0 %v995
        %1741 = vmatpush.bf16.msra.mxu0 %v993
        %1742 = vmatpush.bf16.msra.mxu0 %v991
        %1743 = vmatmul.bf16.gmra.mxu0 %v1383
        %v1744 = vpop.f32.mrf.mxu0
        %v1745 = vadd.f32 %v1716, %v1744
        %v1746 = vpop.f32.mrf.mxu0
        %v1747 = vadd.f32 %v1718, %v1746
        %1748 = vmatmul.bf16.gmra.mxu0 %v1399
        %v1749 = vpop.f32.mrf.mxu0
        %v1750 = vadd.f32 %v1721, %v1749
        %v1751 = vpop.f32.mrf.mxu0
        %v1752 = vadd.f32 %v1723, %v1751
        %1753 = vmatmul.bf16.gmra.mxu0 %v1415
        %v1754 = vpop.f32.mrf.mxu0
        %v1755 = vadd.f32 %v1726, %v1754
        %v1756 = vpop.f32.mrf.mxu0
        %v1757 = vadd.f32 %v1728, %v1756
        %1758 = vmatmul.bf16.gmra.mxu0 %v1431
        %v1759 = vpop.f32.mrf.mxu0
        %v1760 = vadd.f32 %v1731, %v1759
        %v1761 = vpop.f32.mrf.mxu0
        %v1762 = vadd.f32 %v1733, %v1761
        %1763 = vdwg.mxu0
        %1764 = vmatpush.bf16.msra.mxu0 %v1021
        %1765 = vmatpush.bf16.msra.mxu0 %v1019
        %1766 = vmatpush.bf16.msra.mxu0 %v1017
        %1767 = vmatpush.bf16.msra.mxu0 %v1015
        %1768 = vmatpush.bf16.msra.mxu0 %v1013
        %1769 = vmatpush.bf16.msra.mxu0 %v1011
        %1770 = vmatpush.bf16.msra.mxu0 %v1009
        %1771 = vmatpush.bf16.msra.mxu0 %v1007
        %1772 = vmatmul.bf16.gmra.mxu0 %v1384
        %v1773 = vpop.f32.mrf.mxu0
        %v1774 = vadd.f32 %v1745, %v1773
        %v1775 = vpop.f32.mrf.mxu0
        %v1776 = vadd.f32 %v1747, %v1775
        %1777 = vmatmul.bf16.gmra.mxu0 %v1400
        %v1778 = vpop.f32.mrf.mxu0
        %v1779 = vadd.f32 %v1750, %v1778
        %v1780 = vpop.f32.mrf.mxu0
        %v1781 = vadd.f32 %v1752, %v1780
        %1782 = vmatmul.bf16.gmra.mxu0 %v1416
        %v1783 = vpop.f32.mrf.mxu0
        %v1784 = vadd.f32 %v1755, %v1783
        %v1785 = vpop.f32.mrf.mxu0
        %v1786 = vadd.f32 %v1757, %v1785
        %1787 = vmatmul.bf16.gmra.mxu0 %v1432
        %v1788 = vpop.f32.mrf.mxu0
        %v1789 = vadd.f32 %v1760, %v1788
        %v1790 = vpop.f32.mrf.mxu0
        %v1791 = vadd.f32 %v1762, %v1790
        %1792 = vdwg.mxu0
        %1793 = vmatpush.bf16.msra.mxu0 %v1037
        %1794 = vmatpush.bf16.msra.mxu0 %v1035
        %1795 = vmatpush.bf16.msra.mxu0 %v1033
        %1796 = vmatpush.bf16.msra.mxu0 %v1031
        %1797 = vmatpush.bf16.msra.mxu0 %v1029
        %1798 = vmatpush.bf16.msra.mxu0 %v1027
        %1799 = vmatpush.bf16.msra.mxu0 %v1025
        %1800 = vmatpush.bf16.msra.mxu0 %v1023
        %1801 = vmatmul.bf16.gmra.mxu0 %v1385
        %v1802 = vpop.f32.mrf.mxu0
        %v1803 = vadd.f32 %v1774, %v1802
        %v1804 = vpop.f32.mrf.mxu0
        %v1805 = vadd.f32 %v1776, %v1804
        %1806 = vmatmul.bf16.gmra.mxu0 %v1401
        %v1807 = vpop.f32.mrf.mxu0
        %v1808 = vadd.f32 %v1779, %v1807
        %v1809 = vpop.f32.mrf.mxu0
        %v1810 = vadd.f32 %v1781, %v1809
        %1811 = vmatmul.bf16.gmra.mxu0 %v1417
        %v1812 = vpop.f32.mrf.mxu0
        %v1813 = vadd.f32 %v1784, %v1812
        %v1814 = vpop.f32.mrf.mxu0
        %v1815 = vadd.f32 %v1786, %v1814
        %1816 = vmatmul.bf16.gmra.mxu0 %v1433
        %v1817 = vpop.f32.mrf.mxu0
        %v1818 = vadd.f32 %v1789, %v1817
        %v1819 = vpop.f32.mrf.mxu0
        %v1820 = vadd.f32 %v1791, %v1819
        %1821 = vdwg.mxu0
        %1822 = vmatpush.bf16.msra.mxu0 %v1053
        %1823 = vmatpush.bf16.msra.mxu0 %v1051
        %1824 = vmatpush.bf16.msra.mxu0 %v1049
        %1825 = vmatpush.bf16.msra.mxu0 %v1047
        %1826 = vmatpush.bf16.msra.mxu0 %v1045
        %1827 = vmatpush.bf16.msra.mxu0 %v1043
        %1828 = vmatpush.bf16.msra.mxu0 %v1041
        %1829 = vmatpush.bf16.msra.mxu0 %v1039
        %1830 = vmatmul.bf16.gmra.mxu0 %v1386
        %v1831 = vpop.f32.mrf.mxu0
        %v1832 = vadd.f32 %v1803, %v1831
        %v1833 = vpop.f32.mrf.mxu0
        %v1834 = vadd.f32 %v1805, %v1833
        %1835 = vmatmul.bf16.gmra.mxu0 %v1402
        %v1836 = vpop.f32.mrf.mxu0
        %v1837 = vadd.f32 %v1808, %v1836
        %v1838 = vpop.f32.mrf.mxu0
        %v1839 = vadd.f32 %v1810, %v1838
        %1840 = vmatmul.bf16.gmra.mxu0 %v1418
        %v1841 = vpop.f32.mrf.mxu0
        %v1842 = vadd.f32 %v1813, %v1841
        %v1843 = vpop.f32.mrf.mxu0
        %v1844 = vadd.f32 %v1815, %v1843
        %1845 = vmatmul.bf16.gmra.mxu0 %v1434
        %v1846 = vpop.f32.mrf.mxu0
        %v1847 = vadd.f32 %v1818, %v1846
        %v1848 = vpop.f32.mrf.mxu0
        %v1849 = vadd.f32 %v1820, %v1848
        %1850 = vdwg.mxu0
        %1851 = vmatpush.bf16.msra.mxu0 %v1069
        %1852 = vmatpush.bf16.msra.mxu0 %v1067
        %1853 = vmatpush.bf16.msra.mxu0 %v1065
        %1854 = vmatpush.bf16.msra.mxu0 %v1063
        %1855 = vmatpush.bf16.msra.mxu0 %v1061
        %1856 = vmatpush.bf16.msra.mxu0 %v1059
        %1857 = vmatpush.bf16.msra.mxu0 %v1057
        %1858 = vmatpush.bf16.msra.mxu0 %v1055
        %1859 = vmatmul.bf16.gmra.mxu0 %v1387
        %v1860 = vpop.f32.mrf.mxu0
        %v1861 = vadd.f32 %v1832, %v1860
        %v1862 = vpop.f32.mrf.mxu0
        %v1863 = vadd.f32 %v1834, %v1862
        %1864 = vmatmul.bf16.gmra.mxu0 %v1403
        %v1865 = vpop.f32.mrf.mxu0
        %v1866 = vadd.f32 %v1837, %v1865
        %v1867 = vpop.f32.mrf.mxu0
        %v1868 = vadd.f32 %v1839, %v1867
        %1869 = vmatmul.bf16.gmra.mxu0 %v1419
        %v1870 = vpop.f32.mrf.mxu0
        %v1871 = vadd.f32 %v1842, %v1870
        %v1872 = vpop.f32.mrf.mxu0
        %v1873 = vadd.f32 %v1844, %v1872
        %1874 = vmatmul.bf16.gmra.mxu0 %v1435
        %v1875 = vpop.f32.mrf.mxu0
        %v1876 = vadd.f32 %v1847, %v1875
        %v1877 = vpop.f32.mrf.mxu0
        %v1878 = vadd.f32 %v1849, %v1877
        %1879 = vdwg.mxu0
        %1880 = vmatpush.bf16.msra.mxu0 %v1085
        %1881 = vmatpush.bf16.msra.mxu0 %v1083
        %1882 = vmatpush.bf16.msra.mxu0 %v1081
        %1883 = vmatpush.bf16.msra.mxu0 %v1079
        %1884 = vmatpush.bf16.msra.mxu0 %v1077
        %1885 = vmatpush.bf16.msra.mxu0 %v1075
        %1886 = vmatpush.bf16.msra.mxu0 %v1073
        %1887 = vmatpush.bf16.msra.mxu0 %v1071
        %1888 = vmatmul.bf16.gmra.mxu0 %v1388
        %v1889 = vpop.f32.mrf.mxu0
        %v1890 = vadd.f32 %v1861, %v1889
        %v1891 = vpop.f32.mrf.mxu0
        %v1892 = vadd.f32 %v1863, %v1891
        %1893 = vmatmul.bf16.gmra.mxu0 %v1404
        %v1894 = vpop.f32.mrf.mxu0
        %v1895 = vadd.f32 %v1866, %v1894
        %v1896 = vpop.f32.mrf.mxu0
        %v1897 = vadd.f32 %v1868, %v1896
        %1898 = vmatmul.bf16.gmra.mxu0 %v1420
        %v1899 = vpop.f32.mrf.mxu0
        %v1900 = vadd.f32 %v1871, %v1899
        %v1901 = vpop.f32.mrf.mxu0
        %v1902 = vadd.f32 %v1873, %v1901
        %1903 = vmatmul.bf16.gmra.mxu0 %v1436
        %v1904 = vpop.f32.mrf.mxu0
        %v1905 = vadd.f32 %v1876, %v1904
        %v1906 = vpop.f32.mrf.mxu0
        %v1907 = vadd.f32 %v1878, %v1906
        %1908 = vdwg.mxu0
        %1909 = vmatpush.bf16.msra.mxu0 %v1101
        %1910 = vmatpush.bf16.msra.mxu0 %v1099
        %1911 = vmatpush.bf16.msra.mxu0 %v1097
        %1912 = vmatpush.bf16.msra.mxu0 %v1095
        %1913 = vmatpush.bf16.msra.mxu0 %v1093
        %1914 = vmatpush.bf16.msra.mxu0 %v1091
        %1915 = vmatpush.bf16.msra.mxu0 %v1089
        %1916 = vmatpush.bf16.msra.mxu0 %v1087
        %1917 = vmatmul.bf16.gmra.mxu0 %v1389
        %v1918 = vpop.f32.mrf.mxu0
        %v1919 = vadd.f32 %v1890, %v1918
        %v1920 = vpop.f32.mrf.mxu0
        %v1921 = vadd.f32 %v1892, %v1920
        %1922 = vmatmul.bf16.gmra.mxu0 %v1405
        %v1923 = vpop.f32.mrf.mxu0
        %v1924 = vadd.f32 %v1895, %v1923
        %v1925 = vpop.f32.mrf.mxu0
        %v1926 = vadd.f32 %v1897, %v1925
        %1927 = vmatmul.bf16.gmra.mxu0 %v1421
        %v1928 = vpop.f32.mrf.mxu0
        %v1929 = vadd.f32 %v1900, %v1928
        %v1930 = vpop.f32.mrf.mxu0
        %v1931 = vadd.f32 %v1902, %v1930
        %1932 = vmatmul.bf16.gmra.mxu0 %v1437
        %v1933 = vpop.f32.mrf.mxu0
        %v1934 = vadd.f32 %v1905, %v1933
        %v1935 = vpop.f32.mrf.mxu0
        %v1936 = vadd.f32 %v1907, %v1935
        %1937 = vdwg.mxu0
        %1938 = vmatpush.bf16.msra.mxu0 %v1117
        %1939 = vmatpush.bf16.msra.mxu0 %v1115
        %1940 = vmatpush.bf16.msra.mxu0 %v1113
        %1941 = vmatpush.bf16.msra.mxu0 %v1111
        %1942 = vmatpush.bf16.msra.mxu0 %v1109
        %1943 = vmatpush.bf16.msra.mxu0 %v1107
        %1944 = vmatpush.bf16.msra.mxu0 %v1105
        %1945 = vmatpush.bf16.msra.mxu0 %v1103
        %1946 = vmatmul.bf16.gmra.mxu0 %v1390
        %v1947 = vpop.f32.mrf.mxu0
        %v1948 = vadd.f32 %v1919, %v1947
        %v1949 = vpop.f32.mrf.mxu0
        %v1950 = vadd.f32 %v1921, %v1949
        %1951 = vmatmul.bf16.gmra.mxu0 %v1406
        %v1952 = vpop.f32.mrf.mxu0
        %v1953 = vadd.f32 %v1924, %v1952
        %v1954 = vpop.f32.mrf.mxu0
        %v1955 = vadd.f32 %v1926, %v1954
        %1956 = vmatmul.bf16.gmra.mxu0 %v1422
        %v1957 = vpop.f32.mrf.mxu0
        %v1958 = vadd.f32 %v1929, %v1957
        %v1959 = vpop.f32.mrf.mxu0
        %v1960 = vadd.f32 %v1931, %v1959
        %1961 = vmatmul.bf16.gmra.mxu0 %v1438
        %v1962 = vpop.f32.mrf.mxu0
        %v1963 = vadd.f32 %v1934, %v1962
        %v1964 = vpop.f32.mrf.mxu0
        %v1965 = vadd.f32 %v1936, %v1964
        %1966 = vdwg.mxu0
        %1967 = vmatpush.bf16.msra.mxu0 %v878
        %1968 = vmatpush.bf16.msra.mxu0 %v876
        %1969 = vmatpush.bf16.msra.mxu0 %v874
        %1970 = vmatpush.bf16.msra.mxu0 %v872
        %1971 = vmatpush.bf16.msra.mxu0 %v870
        %1972 = vmatpush.bf16.msra.mxu0 %v868
        %1973 = vmatpush.bf16.msra.mxu0 %v866
        %1974 = vmatpush.bf16.msra.mxu0 %v864
        %1975 = vmatmul.bf16.gmra.mxu0 %v1375
        %v1976 = vpop.f32.mrf.mxu0
        %v1977 = vadd.f32 0.0, %v1976
        %v1978 = vpop.f32.mrf.mxu0
        %v1979 = vadd.f32 0.0, %v1978
        %1980 = vmatmul.bf16.gmra.mxu0 %v1391
        %v1981 = vpop.f32.mrf.mxu0
        %v1982 = vadd.f32 0.0, %v1981
        %v1983 = vpop.f32.mrf.mxu0
        %v1984 = vadd.f32 0.0, %v1983
        %1985 = vmatmul.bf16.gmra.mxu0 %v1407
        %v1986 = vpop.f32.mrf.mxu0
        %v1987 = vadd.f32 0.0, %v1986
        %v1988 = vpop.f32.mrf.mxu0
        %v1989 = vadd.f32 0.0, %v1988
        %1990 = vmatmul.bf16.gmra.mxu0 %v1423
        %v1991 = vpop.f32.mrf.mxu0
        %v1992 = vadd.f32 0.0, %v1991
        %v1993 = vpop.f32.mrf.mxu0
        %v1994 = vadd.f32 0.0, %v1993
        %1995 = vdwg.mxu0
        %1996 = vmatpush.bf16.msra.mxu0 %v894
        %1997 = vmatpush.bf16.msra.mxu0 %v892
        %1998 = vmatpush.bf16.msra.mxu0 %v890
        %1999 = vmatpush.bf16.msra.mxu0 %v888
        %2000 = vmatpush.bf16.msra.mxu0 %v886
        %2001 = vmatpush.bf16.msra.mxu0 %v884
        %2002 = vmatpush.bf16.msra.mxu0 %v882
        %2003 = vmatpush.bf16.msra.mxu0 %v880
        %2004 = vmatmul.bf16.gmra.mxu0 %v1376
        %v2005 = vpop.f32.mrf.mxu0
        %v2006 = vadd.f32 %v1977, %v2005
        %v2007 = vpop.f32.mrf.mxu0
        %v2008 = vadd.f32 %v1979, %v2007
        %2009 = vmatmul.bf16.gmra.mxu0 %v1392
        %v2010 = vpop.f32.mrf.mxu0
        %v2011 = vadd.f32 %v1982, %v2010
        %v2012 = vpop.f32.mrf.mxu0
        %v2013 = vadd.f32 %v1984, %v2012
        %2014 = vmatmul.bf16.gmra.mxu0 %v1408
        %v2015 = vpop.f32.mrf.mxu0
        %v2016 = vadd.f32 %v1987, %v2015
        %v2017 = vpop.f32.mrf.mxu0
        %v2018 = vadd.f32 %v1989, %v2017
        %2019 = vmatmul.bf16.gmra.mxu0 %v1424
        %v2020 = vpop.f32.mrf.mxu0
        %v2021 = vadd.f32 %v1992, %v2020
        %v2022 = vpop.f32.mrf.mxu0
        %v2023 = vadd.f32 %v1994, %v2022
        %2024 = vdwg.mxu0
        %2025 = vmatpush.bf16.msra.mxu0 %v910
        %2026 = vmatpush.bf16.msra.mxu0 %v908
        %2027 = vmatpush.bf16.msra.mxu0 %v906
        %2028 = vmatpush.bf16.msra.mxu0 %v904
        %2029 = vmatpush.bf16.msra.mxu0 %v902
        %2030 = vmatpush.bf16.msra.mxu0 %v900
        %2031 = vmatpush.bf16.msra.mxu0 %v898
        %2032 = vmatpush.bf16.msra.mxu0 %v896
        %2033 = vmatmul.bf16.gmra.mxu0 %v1377
        %v2034 = vpop.f32.mrf.mxu0
        %v2035 = vadd.f32 %v2006, %v2034
        %v2036 = vpop.f32.mrf.mxu0
        %v2037 = vadd.f32 %v2008, %v2036
        %2038 = vmatmul.bf16.gmra.mxu0 %v1393
        %v2039 = vpop.f32.mrf.mxu0
        %v2040 = vadd.f32 %v2011, %v2039
        %v2041 = vpop.f32.mrf.mxu0
        %v2042 = vadd.f32 %v2013, %v2041
        %2043 = vmatmul.bf16.gmra.mxu0 %v1409
        %v2044 = vpop.f32.mrf.mxu0
        %v2045 = vadd.f32 %v2016, %v2044
        %v2046 = vpop.f32.mrf.mxu0
        %v2047 = vadd.f32 %v2018, %v2046
        %2048 = vmatmul.bf16.gmra.mxu0 %v1425
        %v2049 = vpop.f32.mrf.mxu0
        %v2050 = vadd.f32 %v2021, %v2049
        %v2051 = vpop.f32.mrf.mxu0
        %v2052 = vadd.f32 %v2023, %v2051
        %2053 = vdwg.mxu0
        %2054 = vmatpush.bf16.msra.mxu0 %v926
        %2055 = vmatpush.bf16.msra.mxu0 %v924
        %2056 = vmatpush.bf16.msra.mxu0 %v922
        %2057 = vmatpush.bf16.msra.mxu0 %v920
        %2058 = vmatpush.bf16.msra.mxu0 %v918
        %2059 = vmatpush.bf16.msra.mxu0 %v916
        %2060 = vmatpush.bf16.msra.mxu0 %v914
        %2061 = vmatpush.bf16.msra.mxu0 %v912
        %2062 = vmatmul.bf16.gmra.mxu0 %v1378
        %v2063 = vpop.f32.mrf.mxu0
        %v2064 = vadd.f32 %v2035, %v2063
        %v2065 = vpop.f32.mrf.mxu0
        %v2066 = vadd.f32 %v2037, %v2065
        %2067 = vmatmul.bf16.gmra.mxu0 %v1394
        %v2068 = vpop.f32.mrf.mxu0
        %v2069 = vadd.f32 %v2040, %v2068
        %v2070 = vpop.f32.mrf.mxu0
        %v2071 = vadd.f32 %v2042, %v2070
        %2072 = vmatmul.bf16.gmra.mxu0 %v1410
        %v2073 = vpop.f32.mrf.mxu0
        %v2074 = vadd.f32 %v2045, %v2073
        %v2075 = vpop.f32.mrf.mxu0
        %v2076 = vadd.f32 %v2047, %v2075
        %2077 = vmatmul.bf16.gmra.mxu0 %v1426
        %v2078 = vpop.f32.mrf.mxu0
        %v2079 = vadd.f32 %v2050, %v2078
        %v2080 = vpop.f32.mrf.mxu0
        %v2081 = vadd.f32 %v2052, %v2080
        %2082 = vdwg.mxu0
        %2083 = vmatpush.bf16.msra.mxu0 %v942
        %2084 = vmatpush.bf16.msra.mxu0 %v940
        %2085 = vmatpush.bf16.msra.mxu0 %v938
        %2086 = vmatpush.bf16.msra.mxu0 %v936
        %2087 = vmatpush.bf16.msra.mxu0 %v934
        %2088 = vmatpush.bf16.msra.mxu0 %v932
        %2089 = vmatpush.bf16.msra.mxu0 %v930
        %2090 = vmatpush.bf16.msra.mxu0 %v928
        %2091 = vmatmul.bf16.gmra.mxu0 %v1379
        %v2092 = vpop.f32.mrf.mxu0
        %v2093 = vadd.f32 %v2064, %v2092
        %v2094 = vpop.f32.mrf.mxu0
        %v2095 = vadd.f32 %v2066, %v2094
        %2096 = vmatmul.bf16.gmra.mxu0 %v1395
        %v2097 = vpop.f32.mrf.mxu0
        %v2098 = vadd.f32 %v2069, %v2097
        %v2099 = vpop.f32.mrf.mxu0
        %v2100 = vadd.f32 %v2071, %v2099
        %2101 = vmatmul.bf16.gmra.mxu0 %v1411
        %v2102 = vpop.f32.mrf.mxu0
        %v2103 = vadd.f32 %v2074, %v2102
        %v2104 = vpop.f32.mrf.mxu0
        %v2105 = vadd.f32 %v2076, %v2104
        %2106 = vmatmul.bf16.gmra.mxu0 %v1427
        %v2107 = vpop.f32.mrf.mxu0
        %v2108 = vadd.f32 %v2079, %v2107
        %v2109 = vpop.f32.mrf.mxu0
        %v2110 = vadd.f32 %v2081, %v2109
        %2111 = vdwg.mxu0
        %2112 = vmatpush.bf16.msra.mxu0 %v958
        %2113 = vmatpush.bf16.msra.mxu0 %v956
        %2114 = vmatpush.bf16.msra.mxu0 %v954
        %2115 = vmatpush.bf16.msra.mxu0 %v952
        %2116 = vmatpush.bf16.msra.mxu0 %v950
        %2117 = vmatpush.bf16.msra.mxu0 %v948
        %2118 = vmatpush.bf16.msra.mxu0 %v946
        %2119 = vmatpush.bf16.msra.mxu0 %v944
        %2120 = vmatmul.bf16.gmra.mxu0 %v1380
        %v2121 = vpop.f32.mrf.mxu0
        %v2122 = vadd.f32 %v2093, %v2121
        %v2123 = vpop.f32.mrf.mxu0
        %v2124 = vadd.f32 %v2095, %v2123
        %2125 = vmatmul.bf16.gmra.mxu0 %v1396
        %v2126 = vpop.f32.mrf.mxu0
        %v2127 = vadd.f32 %v2098, %v2126
        %v2128 = vpop.f32.mrf.mxu0
        %v2129 = vadd.f32 %v2100, %v2128
        %2130 = vmatmul.bf16.gmra.mxu0 %v1412
        %v2131 = vpop.f32.mrf.mxu0
        %v2132 = vadd.f32 %v2103, %v2131
        %v2133 = vpop.f32.mrf.mxu0
        %v2134 = vadd.f32 %v2105, %v2133
        %2135 = vmatmul.bf16.gmra.mxu0 %v1428
        %v2136 = vpop.f32.mrf.mxu0
        %v2137 = vadd.f32 %v2108, %v2136
        %v2138 = vpop.f32.mrf.mxu0
        %v2139 = vadd.f32 %v2110, %v2138
        %2140 = vdwg.mxu0
        %2141 = vmatpush.bf16.msra.mxu0 %v974
        %2142 = vmatpush.bf16.msra.mxu0 %v972
        %2143 = vmatpush.bf16.msra.mxu0 %v970
        %2144 = vmatpush.bf16.msra.mxu0 %v968
        %2145 = vmatpush.bf16.msra.mxu0 %v966
        %2146 = vmatpush.bf16.msra.mxu0 %v964
        %2147 = vmatpush.bf16.msra.mxu0 %v962
        %2148 = vmatpush.bf16.msra.mxu0 %v960
        %2149 = vmatmul.bf16.gmra.mxu0 %v1381
        %v2150 = vpop.f32.mrf.mxu0
        %v2151 = vadd.f32 %v2122, %v2150
        %v2152 = vpop.f32.mrf.mxu0
        %v2153 = vadd.f32 %v2124, %v2152
        %2154 = vmatmul.bf16.gmra.mxu0 %v1397
        %v2155 = vpop.f32.mrf.mxu0
        %v2156 = vadd.f32 %v2127, %v2155
        %v2157 = vpop.f32.mrf.mxu0
        %v2158 = vadd.f32 %v2129, %v2157
        %2159 = vmatmul.bf16.gmra.mxu0 %v1413
        %v2160 = vpop.f32.mrf.mxu0
        %v2161 = vadd.f32 %v2132, %v2160
        %v2162 = vpop.f32.mrf.mxu0
        %v2163 = vadd.f32 %v2134, %v2162
        %2164 = vmatmul.bf16.gmra.mxu0 %v1429
        %v2165 = vpop.f32.mrf.mxu0
        %v2166 = vadd.f32 %v2137, %v2165
        %v2167 = vpop.f32.mrf.mxu0
        %v2168 = vadd.f32 %v2139, %v2167
        %2169 = vdwg.mxu0
        %2170 = vmatpush.bf16.msra.mxu0 %v990
        %2171 = vmatpush.bf16.msra.mxu0 %v988
        %2172 = vmatpush.bf16.msra.mxu0 %v986
        %2173 = vmatpush.bf16.msra.mxu0 %v984
        %2174 = vmatpush.bf16.msra.mxu0 %v982
        %2175 = vmatpush.bf16.msra.mxu0 %v980
        %2176 = vmatpush.bf16.msra.mxu0 %v978
        %2177 = vmatpush.bf16.msra.mxu0 %v976
        %2178 = vmatmul.bf16.gmra.mxu0 %v1382
        %v2179 = vpop.f32.mrf.mxu0
        %v2180 = vadd.f32 %v2151, %v2179
        %v2181 = vpop.f32.mrf.mxu0
        %v2182 = vadd.f32 %v2153, %v2181
        %2183 = vmatmul.bf16.gmra.mxu0 %v1398
        %v2184 = vpop.f32.mrf.mxu0
        %v2185 = vadd.f32 %v2156, %v2184
        %v2186 = vpop.f32.mrf.mxu0
        %v2187 = vadd.f32 %v2158, %v2186
        %2188 = vmatmul.bf16.gmra.mxu0 %v1414
        %v2189 = vpop.f32.mrf.mxu0
        %v2190 = vadd.f32 %v2161, %v2189
        %v2191 = vpop.f32.mrf.mxu0
        %v2192 = vadd.f32 %v2163, %v2191
        %2193 = vmatmul.bf16.gmra.mxu0 %v1430
        %v2194 = vpop.f32.mrf.mxu0
        %v2195 = vadd.f32 %v2166, %v2194
        %v2196 = vpop.f32.mrf.mxu0
        %v2197 = vadd.f32 %v2168, %v2196
        %2198 = vdwg.mxu0
        %2199 = vmatpush.bf16.msra.mxu0 %v1006
        %2200 = vmatpush.bf16.msra.mxu0 %v1004
        %2201 = vmatpush.bf16.msra.mxu0 %v1002
        %2202 = vmatpush.bf16.msra.mxu0 %v1000
        %2203 = vmatpush.bf16.msra.mxu0 %v998
        %2204 = vmatpush.bf16.msra.mxu0 %v996
        %2205 = vmatpush.bf16.msra.mxu0 %v994
        %2206 = vmatpush.bf16.msra.mxu0 %v992
        %2207 = vmatmul.bf16.gmra.mxu0 %v1383
        %v2208 = vpop.f32.mrf.mxu0
        %v2209 = vadd.f32 %v2180, %v2208
        %v2210 = vpop.f32.mrf.mxu0
        %v2211 = vadd.f32 %v2182, %v2210
        %2212 = vmatmul.bf16.gmra.mxu0 %v1399
        %v2213 = vpop.f32.mrf.mxu0
        %v2214 = vadd.f32 %v2185, %v2213
        %v2215 = vpop.f32.mrf.mxu0
        %v2216 = vadd.f32 %v2187, %v2215
        %2217 = vmatmul.bf16.gmra.mxu0 %v1415
        %v2218 = vpop.f32.mrf.mxu0
        %v2219 = vadd.f32 %v2190, %v2218
        %v2220 = vpop.f32.mrf.mxu0
        %v2221 = vadd.f32 %v2192, %v2220
        %2222 = vmatmul.bf16.gmra.mxu0 %v1431
        %v2223 = vpop.f32.mrf.mxu0
        %v2224 = vadd.f32 %v2195, %v2223
        %v2225 = vpop.f32.mrf.mxu0
        %v2226 = vadd.f32 %v2197, %v2225
        %2227 = vdwg.mxu0
        %2228 = vmatpush.bf16.msra.mxu0 %v1022
        %2229 = vmatpush.bf16.msra.mxu0 %v1020
        %2230 = vmatpush.bf16.msra.mxu0 %v1018
        %2231 = vmatpush.bf16.msra.mxu0 %v1016
        %2232 = vmatpush.bf16.msra.mxu0 %v1014
        %2233 = vmatpush.bf16.msra.mxu0 %v1012
        %2234 = vmatpush.bf16.msra.mxu0 %v1010
        %2235 = vmatpush.bf16.msra.mxu0 %v1008
        %2236 = vmatmul.bf16.gmra.mxu0 %v1384
        %v2237 = vpop.f32.mrf.mxu0
        %v2238 = vadd.f32 %v2209, %v2237
        %v2239 = vpop.f32.mrf.mxu0
        %v2240 = vadd.f32 %v2211, %v2239
        %2241 = vmatmul.bf16.gmra.mxu0 %v1400
        %v2242 = vpop.f32.mrf.mxu0
        %v2243 = vadd.f32 %v2214, %v2242
        %v2244 = vpop.f32.mrf.mxu0
        %v2245 = vadd.f32 %v2216, %v2244
        %2246 = vmatmul.bf16.gmra.mxu0 %v1416
        %v2247 = vpop.f32.mrf.mxu0
        %v2248 = vadd.f32 %v2219, %v2247
        %v2249 = vpop.f32.mrf.mxu0
        %v2250 = vadd.f32 %v2221, %v2249
        %2251 = vmatmul.bf16.gmra.mxu0 %v1432
        %v2252 = vpop.f32.mrf.mxu0
        %v2253 = vadd.f32 %v2224, %v2252
        %v2254 = vpop.f32.mrf.mxu0
        %v2255 = vadd.f32 %v2226, %v2254
        %2256 = vdwg.mxu0
        %2257 = vmatpush.bf16.msra.mxu0 %v1038
        %2258 = vmatpush.bf16.msra.mxu0 %v1036
        %2259 = vmatpush.bf16.msra.mxu0 %v1034
        %2260 = vmatpush.bf16.msra.mxu0 %v1032
        %2261 = vmatpush.bf16.msra.mxu0 %v1030
        %2262 = vmatpush.bf16.msra.mxu0 %v1028
        %2263 = vmatpush.bf16.msra.mxu0 %v1026
        %2264 = vmatpush.bf16.msra.mxu0 %v1024
        %2265 = vmatmul.bf16.gmra.mxu0 %v1385
        %v2266 = vpop.f32.mrf.mxu0
        %v2267 = vadd.f32 %v2238, %v2266
        %v2268 = vpop.f32.mrf.mxu0
        %v2269 = vadd.f32 %v2240, %v2268
        %2270 = vmatmul.bf16.gmra.mxu0 %v1401
        %v2271 = vpop.f32.mrf.mxu0
        %v2272 = vadd.f32 %v2243, %v2271
        %v2273 = vpop.f32.mrf.mxu0
        %v2274 = vadd.f32 %v2245, %v2273
        %2275 = vmatmul.bf16.gmra.mxu0 %v1417
        %v2276 = vpop.f32.mrf.mxu0
        %v2277 = vadd.f32 %v2248, %v2276
        %v2278 = vpop.f32.mrf.mxu0
        %v2279 = vadd.f32 %v2250, %v2278
        %2280 = vmatmul.bf16.gmra.mxu0 %v1433
        %v2281 = vpop.f32.mrf.mxu0
        %v2282 = vadd.f32 %v2253, %v2281
        %v2283 = vpop.f32.mrf.mxu0
        %v2284 = vadd.f32 %v2255, %v2283
        %2285 = vdwg.mxu0
        %2286 = vmatpush.bf16.msra.mxu0 %v1054
        %2287 = vmatpush.bf16.msra.mxu0 %v1052
        %2288 = vmatpush.bf16.msra.mxu0 %v1050
        %2289 = vmatpush.bf16.msra.mxu0 %v1048
        %2290 = vmatpush.bf16.msra.mxu0 %v1046
        %2291 = vmatpush.bf16.msra.mxu0 %v1044
        %2292 = vmatpush.bf16.msra.mxu0 %v1042
        %2293 = vmatpush.bf16.msra.mxu0 %v1040
        %2294 = vmatmul.bf16.gmra.mxu0 %v1386
        %v2295 = vpop.f32.mrf.mxu0
        %v2296 = vadd.f32 %v2267, %v2295
        %v2297 = vpop.f32.mrf.mxu0
        %v2298 = vadd.f32 %v2269, %v2297
        %2299 = vmatmul.bf16.gmra.mxu0 %v1402
        %v2300 = vpop.f32.mrf.mxu0
        %v2301 = vadd.f32 %v2272, %v2300
        %v2302 = vpop.f32.mrf.mxu0
        %v2303 = vadd.f32 %v2274, %v2302
        %2304 = vmatmul.bf16.gmra.mxu0 %v1418
        %v2305 = vpop.f32.mrf.mxu0
        %v2306 = vadd.f32 %v2277, %v2305
        %v2307 = vpop.f32.mrf.mxu0
        %v2308 = vadd.f32 %v2279, %v2307
        %2309 = vmatmul.bf16.gmra.mxu0 %v1434
        %v2310 = vpop.f32.mrf.mxu0
        %v2311 = vadd.f32 %v2282, %v2310
        %v2312 = vpop.f32.mrf.mxu0
        %v2313 = vadd.f32 %v2284, %v2312
        %2314 = vdwg.mxu0
        %2315 = vmatpush.bf16.msra.mxu0 %v1070
        %2316 = vmatpush.bf16.msra.mxu0 %v1068
        %2317 = vmatpush.bf16.msra.mxu0 %v1066
        %2318 = vmatpush.bf16.msra.mxu0 %v1064
        %2319 = vmatpush.bf16.msra.mxu0 %v1062
        %2320 = vmatpush.bf16.msra.mxu0 %v1060
        %2321 = vmatpush.bf16.msra.mxu0 %v1058
        %2322 = vmatpush.bf16.msra.mxu0 %v1056
        %2323 = vmatmul.bf16.gmra.mxu0 %v1387
        %v2324 = vpop.f32.mrf.mxu0
        %v2325 = vadd.f32 %v2296, %v2324
        %v2326 = vpop.f32.mrf.mxu0
        %v2327 = vadd.f32 %v2298, %v2326
        %2328 = vmatmul.bf16.gmra.mxu0 %v1403
        %v2329 = vpop.f32.mrf.mxu0
        %v2330 = vadd.f32 %v2301, %v2329
        %v2331 = vpop.f32.mrf.mxu0
        %v2332 = vadd.f32 %v2303, %v2331
        %2333 = vmatmul.bf16.gmra.mxu0 %v1419
        %v2334 = vpop.f32.mrf.mxu0
        %v2335 = vadd.f32 %v2306, %v2334
        %v2336 = vpop.f32.mrf.mxu0
        %v2337 = vadd.f32 %v2308, %v2336
        %2338 = vmatmul.bf16.gmra.mxu0 %v1435
        %v2339 = vpop.f32.mrf.mxu0
        %v2340 = vadd.f32 %v2311, %v2339
        %v2341 = vpop.f32.mrf.mxu0
        %v2342 = vadd.f32 %v2313, %v2341
        %2343 = vdwg.mxu0
        %2344 = vmatpush.bf16.msra.mxu0 %v1086
        %2345 = vmatpush.bf16.msra.mxu0 %v1084
        %2346 = vmatpush.bf16.msra.mxu0 %v1082
        %2347 = vmatpush.bf16.msra.mxu0 %v1080
        %2348 = vmatpush.bf16.msra.mxu0 %v1078
        %2349 = vmatpush.bf16.msra.mxu0 %v1076
        %2350 = vmatpush.bf16.msra.mxu0 %v1074
        %2351 = vmatpush.bf16.msra.mxu0 %v1072
        %2352 = vmatmul.bf16.gmra.mxu0 %v1388
        %v2353 = vpop.f32.mrf.mxu0
        %v2354 = vadd.f32 %v2325, %v2353
        %v2355 = vpop.f32.mrf.mxu0
        %v2356 = vadd.f32 %v2327, %v2355
        %2357 = vmatmul.bf16.gmra.mxu0 %v1404
        %v2358 = vpop.f32.mrf.mxu0
        %v2359 = vadd.f32 %v2330, %v2358
        %v2360 = vpop.f32.mrf.mxu0
        %v2361 = vadd.f32 %v2332, %v2360
        %2362 = vmatmul.bf16.gmra.mxu0 %v1420
        %v2363 = vpop.f32.mrf.mxu0
        %v2364 = vadd.f32 %v2335, %v2363
        %v2365 = vpop.f32.mrf.mxu0
        %v2366 = vadd.f32 %v2337, %v2365
        %2367 = vmatmul.bf16.gmra.mxu0 %v1436
        %v2368 = vpop.f32.mrf.mxu0
        %v2369 = vadd.f32 %v2340, %v2368
        %v2370 = vpop.f32.mrf.mxu0
        %v2371 = vadd.f32 %v2342, %v2370
        %2372 = vdwg.mxu0
        %2373 = vmatpush.bf16.msra.mxu0 %v1102
        %2374 = vmatpush.bf16.msra.mxu0 %v1100
        %2375 = vmatpush.bf16.msra.mxu0 %v1098
        %2376 = vmatpush.bf16.msra.mxu0 %v1096
        %2377 = vmatpush.bf16.msra.mxu0 %v1094
        %2378 = vmatpush.bf16.msra.mxu0 %v1092
        %2379 = vmatpush.bf16.msra.mxu0 %v1090
        %2380 = vmatpush.bf16.msra.mxu0 %v1088
        %2381 = vmatmul.bf16.gmra.mxu0 %v1389
        %v2382 = vpop.f32.mrf.mxu0
        %v2383 = vadd.f32 %v2354, %v2382
        %v2384 = vpop.f32.mrf.mxu0
        %v2385 = vadd.f32 %v2356, %v2384
        %2386 = vmatmul.bf16.gmra.mxu0 %v1405
        %v2387 = vpop.f32.mrf.mxu0
        %v2388 = vadd.f32 %v2359, %v2387
        %v2389 = vpop.f32.mrf.mxu0
        %v2390 = vadd.f32 %v2361, %v2389
        %2391 = vmatmul.bf16.gmra.mxu0 %v1421
        %v2392 = vpop.f32.mrf.mxu0
        %v2393 = vadd.f32 %v2364, %v2392
        %v2394 = vpop.f32.mrf.mxu0
        %v2395 = vadd.f32 %v2366, %v2394
        %2396 = vmatmul.bf16.gmra.mxu0 %v1437
        %v2397 = vpop.f32.mrf.mxu0
        %v2398 = vadd.f32 %v2369, %v2397
        %v2399 = vpop.f32.mrf.mxu0
        %v2400 = vadd.f32 %v2371, %v2399
        %2401 = vdwg.mxu0
        %2402 = vmatpush.bf16.msra.mxu0 %v1118
        %2403 = vmatpush.bf16.msra.mxu0 %v1116
        %2404 = vmatpush.bf16.msra.mxu0 %v1114
        %2405 = vmatpush.bf16.msra.mxu0 %v1112
        %2406 = vmatpush.bf16.msra.mxu0 %v1110
        %2407 = vmatpush.bf16.msra.mxu0 %v1108
        %2408 = vmatpush.bf16.msra.mxu0 %v1106
        %2409 = vmatpush.bf16.msra.mxu0 %v1104
        %2410 = vmatmul.bf16.gmra.mxu0 %v1390
        %v2411 = vpop.f32.mrf.mxu0
        %v2412 = vadd.f32 %v2383, %v2411
        %v2413 = vpop.f32.mrf.mxu0
        %v2414 = vadd.f32 %v2385, %v2413
        %2415 = vmatmul.bf16.gmra.mxu0 %v1406
        %v2416 = vpop.f32.mrf.mxu0
        %v2417 = vadd.f32 %v2388, %v2416
        %v2418 = vpop.f32.mrf.mxu0
        %v2419 = vadd.f32 %v2390, %v2418
        %2420 = vmatmul.bf16.gmra.mxu0 %v1422
        %v2421 = vpop.f32.mrf.mxu0
        %v2422 = vadd.f32 %v2393, %v2421
        %v2423 = vpop.f32.mrf.mxu0
        %v2424 = vadd.f32 %v2395, %v2423
        %2425 = vmatmul.bf16.gmra.mxu0 %v1438
        %v2426 = vpop.f32.mrf.mxu0
        %v2427 = vadd.f32 %v2398, %v2426
        %v2428 = vpop.f32.mrf.mxu0
        %v2429 = vadd.f32 %v2400, %v2428
        %2430 = vdwg.mxu0
        %v2431 = vpack.c.bf16 %v1950, %v1948
        %v2432 = vpack.c.bf16 %v2414, %v2412
        %v2433 = vpack.c.bf16 %v1955, %v1953
        %v2434 = vpack.c.bf16 %v2419, %v2417
        %v2435 = vpack.c.bf16 %v1960, %v1958
        %v2436 = vpack.c.bf16 %v2424, %v2422
        %v2437 = vpack.c.bf16 %v1965, %v1963
        %v2438 = vpack.c.bf16 %v2429, %v2427
        %v2439 = vld [vmem:[%s349] sm:$0xff]
        %v2440 = vld [vmem:[%s349 + $0x8] sm:$0xff]
        %v2441 = vld [vmem:[%s349 + $0x10] sm:$0xff]
        %v2442 = vld [vmem:[%s349 + $0x18] sm:$0xff]
        %v2443 = vld [vmem:[%s349 + $0x20] sm:$0xff]
        %v2444 = vld [vmem:[%s349 + $0x28] sm:$0xff]
        %v2445 = vld [vmem:[%s349 + $0x30] sm:$0xff]
        %v2446 = vld [vmem:[%s349 + $0x38] sm:$0xff]
        %v2447 = vld [vmem:[%s349 + $0x40] sm:$0xff]
        %v2457 = vunpack.c.l.b16 %v2439
        %v2458 = vunpack.c.h.b16 %v2439
        %v2459 = vunpack.c.l.b16 %v2440
        %v2460 = vunpack.c.h.b16 %v2440
        %v2461 = vunpack.c.l.b16 %v2441
        %v2462 = vunpack.c.h.b16 %v2441
        %v2463 = vunpack.c.l.b16 %v2442
        %v2464 = vunpack.c.h.b16 %v2442
        %v2465 = vunpack.c.l.b16 %v2443
        %v2466 = vunpack.c.h.b16 %v2443
        %v2467 = vunpack.c.l.b16 %v2444
        %v2468 = vunpack.c.h.b16 %v2444
        %v2469 = vunpack.c.l.b16 %v2445
        %v2470 = vunpack.c.h.b16 %v2445
        %v2471 = vunpack.c.l.b16 %v2446
        %v2472 = vunpack.c.h.b16 %v2446
        %v2473 = vunpack.c.l.b16 %v2447
        %v2474 = vunpack.c.h.b16 %v2447
        %v2475 = vpack.c.b16 %v2459, %v2457
        %v2476 = vpack.c.b16 %v2460, %v2458
        %v2477 = vpack.c.b16 %v2463, %v2461
        %v2478 = vpack.c.b16 %v2464, %v2462
        %v2479 = vpack.c.b16 %v2467, %v2465
        %v2480 = vpack.c.b16 %v2468, %v2466
        %v2481 = vpack.c.b16 %v2471, %v2469
        %v2482 = vpack.c.b16 %v2472, %v2470
        %v2483 = vpack.c.b16 %v2473, %v2473
        %v2484 = vpack.c.b16 %v2474, %v2474
        %2495 = vmatpush.bf16.xpose.msra.mxu0 0
        %2496 = vmatpush.bf16.xpose.msra.mxu0 0
        %2497 = vmatpush.bf16.xpose.msra.mxu0 0
        %2498 = vmatpush.bf16.xpose.msra.mxu0 0
        %2499 = vmatpush.bf16.xpose.msra.mxu0 %v2437
        %2500 = vmatpush.bf16.xpose.msra.mxu0 %v2435
        %2501 = vmatpush.bf16.xpose.msra.mxu0 %v2433
        %2502 = vmatpush.bf16.xpose.msra.mxu0 %v2431
        %2503 = vmatmul.bf16.gmra.mxu0 %v2475
        %v2504 = vpop.f32.mrf.mxu0
        %v2505 = vadd.f32 0.0, %v2504
        %v2506 = vpop.f32.mrf.mxu0
        %v2507 = vadd.f32 0.0, %v2506
        %2508 = vmatmul.bf16.gmra.mxu0 %v2477
        %v2509 = vpop.f32.mrf.mxu0
        %v2510 = vadd.f32 0.0, %v2509
        %v2511 = vpop.f32.mrf.mxu0
        %v2512 = vadd.f32 0.0, %v2511
        %2513 = vmatmul.bf16.gmra.mxu0 %v2479
        %v2514 = vpop.f32.mrf.mxu0
        %v2515 = vadd.f32 0.0, %v2514
        %v2516 = vpop.f32.mrf.mxu0
        %v2517 = vadd.f32 0.0, %v2516
        %2518 = vmatmul.bf16.gmra.mxu0 %v2481
        %v2519 = vpop.f32.mrf.mxu0
        %v2520 = vadd.f32 0.0, %v2519
        %v2521 = vpop.f32.mrf.mxu0
        %v2522 = vadd.f32 0.0, %v2521
        %2523 = vmatmul.bf16.gmra.mxu0 %v2483
        %v2524 = vpop.f32.mrf.mxu0
        %v2525 = vadd.f32 0.0, %v2524
        %v2526 = vpop.f32.mrf.mxu0
        %2527 = vdwg.mxu0
        %2528 = vmatpush.bf16.xpose.msra.mxu0 0
        %2529 = vmatpush.bf16.xpose.msra.mxu0 0
        %2530 = vmatpush.bf16.xpose.msra.mxu0 0
        %2531 = vmatpush.bf16.xpose.msra.mxu0 0
        %2532 = vmatpush.bf16.xpose.msra.mxu0 %v2438
        %2533 = vmatpush.bf16.xpose.msra.mxu0 %v2436
        %2534 = vmatpush.bf16.xpose.msra.mxu0 %v2434
        %2535 = vmatpush.bf16.xpose.msra.mxu0 %v2432
        %2536 = vmatmul.bf16.gmra.mxu0 %v2476
        %v2537 = vpop.f32.mrf.mxu0
        %v2538 = vadd.f32 %v2505, %v2537
        %v2539 = vpop.f32.mrf.mxu0
        %v2540 = vadd.f32 %v2507, %v2539
        %2541 = vmatmul.bf16.gmra.mxu0 %v2478
        %v2542 = vpop.f32.mrf.mxu0
        %v2543 = vadd.f32 %v2510, %v2542
        %v2544 = vpop.f32.mrf.mxu0
        %v2545 = vadd.f32 %v2512, %v2544
        %2546 = vmatmul.bf16.gmra.mxu0 %v2480
        %v2547 = vpop.f32.mrf.mxu0
        %v2548 = vadd.f32 %v2515, %v2547
        %v2549 = vpop.f32.mrf.mxu0
        %v2550 = vadd.f32 %v2517, %v2549
        %2551 = vmatmul.bf16.gmra.mxu0 %v2482
        %v2552 = vpop.f32.mrf.mxu0
        %v2553 = vadd.f32 %v2520, %v2552
        %v2554 = vpop.f32.mrf.mxu0
        %v2555 = vadd.f32 %v2522, %v2554
        %2556 = vmatmul.bf16.gmra.mxu0 %v2484
        %v2557 = vpop.f32.mrf.mxu0
        %v2558 = vadd.f32 %v2525, %v2557
        %v2559 = vpop.f32.mrf.mxu0
        %2560 = vdwg.mxu0
        %v2561 = vpack.c.bf16 %v2538, %v2538
        %v2562 = vld [vmem:[%s3] sm:$0xf]
        %v2563 = vld [vmem:[%s3 + $0x4] sm:$0xf]
        %v2564 = vld [vmem:[%s3 + $0x8] sm:$0xf]
        %v2565 = vld [vmem:[%s3 + $0xc] sm:$0xf]
        %v2566 = vld [vmem:[%s3 + $0x10] sm:$0xf]
        %v2567 = vld [vmem:[%s3 + $0x14] sm:$0xf]
        %v2568 = vld [vmem:[%s3 + $0x18] sm:$0xf]
        %v2569 = vld [vmem:[%s3 + $0x1c] sm:$0xf]
        %v2570 = vpack.c.bf16 %v2540, %v2540
        %s2571 = scalar_lea.vmem %s3, 32
        %v2572 = vld [vmem:[%s2571] sm:$0xf]
        %v2573 = vld [vmem:[%s2571 + $0x4] sm:$0xf]
        %v2574 = vld [vmem:[%s2571 + $0x8] sm:$0xf]
        %v2575 = vld [vmem:[%s2571 + $0xc] sm:$0xf]
        %v2576 = vld [vmem:[%s2571 + $0x10] sm:$0xf]
        %v2577 = vld [vmem:[%s2571 + $0x14] sm:$0xf]
        %v2578 = vld [vmem:[%s2571 + $0x18] sm:$0xf]
        %v2579 = vld [vmem:[%s2571 + $0x1c] sm:$0xf]
        %v2588 = vunpack.c.l.b16 %v2572
        %v2589 = vunpack.c.l.b16 %v2573
        %v2590 = vunpack.c.l.b16 %v2574
        %v2591 = vunpack.c.l.b16 %v2575
        %v2592 = vunpack.c.l.b16 %v2576
        %v2593 = vunpack.c.l.b16 %v2577
        %v2594 = vunpack.c.l.b16 %v2578
        %v2595 = vunpack.c.l.b16 %v2579
        %v2596 = vpack.c.b16 %v2589, %v2588
        %v2597 = vpack.c.b16 %v2591, %v2590
        %v2598 = vpack.c.b16 %v2593, %v2592
        %v2599 = vpack.c.b16 %v2595, %v2594
        %vm2604 = vcmask 523264
        %v2606 = vsel %vm2604, %v2570, 0
        %2608 = vmatpush.bf16.msra.mxu0 0
        %2609 = vmatpush.bf16.msra.mxu0 0
        %2610 = vmatpush.bf16.msra.mxu0 0
        %2611 = vmatpush.bf16.msra.mxu0 0
        %2612 = vmatpush.bf16.msra.mxu0 %v2599
        %2613 = vmatpush.bf16.msra.mxu0 %v2598
        %2614 = vmatpush.bf16.msra.mxu0 %v2597
        %2615 = vmatpush.bf16.msra.mxu0 %v2596
        %2616 = vmatmul.bf16.gmra.mxu0 %v2606
        %v2617 = vpop.f32.mrf.mxu0
        %v2618 = vadd.f32 0.0, %v2617
        %v2619 = vpop.f32.mrf.mxu0
        %2620 = vdwg.mxu0
        %v2629 = vunpack.c.l.b16 %v2562
        %v2630 = vunpack.c.l.b16 %v2563
        %v2631 = vunpack.c.l.b16 %v2564
        %v2632 = vunpack.c.l.b16 %v2565
        %v2633 = vunpack.c.l.b16 %v2566
        %v2634 = vunpack.c.l.b16 %v2567
        %v2635 = vunpack.c.l.b16 %v2568
        %v2636 = vunpack.c.l.b16 %v2569
        %v2637 = vpack.c.b16 %v2630, %v2629
        %v2638 = vpack.c.b16 %v2632, %v2631
        %v2639 = vpack.c.b16 %v2634, %v2633
        %v2640 = vpack.c.b16 %v2636, %v2635
        %v2646 = vsel %vm2604, %v2561, 0
        %2648 = vmatpush.bf16.msra.mxu0 0
        %2649 = vmatpush.bf16.msra.mxu0 0
        %2650 = vmatpush.bf16.msra.mxu0 0
        %2651 = vmatpush.bf16.msra.mxu0 0
        %2652 = vmatpush.bf16.msra.mxu0 %v2640
        %2653 = vmatpush.bf16.msra.mxu0 %v2639
        %2654 = vmatpush.bf16.msra.mxu0 %v2638
        %2655 = vmatpush.bf16.msra.mxu0 %v2637
        %2656 = vmatmul.bf16.gmra.mxu0 %v2646
        %v2657 = vpop.f32.mrf.mxu0
        %v2658 = vadd.f32 %v2618, %v2657
        %v2659 = vpop.f32.mrf.mxu0
        %2660 = vdwg.mxu0
        %v2661 = vpack.c.bf16 %v2543, %v2543
        %s2662 = scalar_lea.vmem %s3, 64
        %v2663 = vld [vmem:[%s2662] sm:$0xf]
        %v2664 = vld [vmem:[%s2662 + $0x4] sm:$0xf]
        %v2665 = vld [vmem:[%s2662 + $0x8] sm:$0xf]
        %v2666 = vld [vmem:[%s2662 + $0xc] sm:$0xf]
        %v2667 = vld [vmem:[%s2662 + $0x10] sm:$0xf]
        %v2668 = vld [vmem:[%s2662 + $0x14] sm:$0xf]
        %v2669 = vld [vmem:[%s2662 + $0x18] sm:$0xf]
        %v2670 = vld [vmem:[%s2662 + $0x1c] sm:$0xf]
        %v2679 = vunpack.c.l.b16 %v2663
        %v2680 = vunpack.c.l.b16 %v2664
        %v2681 = vunpack.c.l.b16 %v2665
        %v2682 = vunpack.c.l.b16 %v2666
        %v2683 = vunpack.c.l.b16 %v2667
        %v2684 = vunpack.c.l.b16 %v2668
        %v2685 = vunpack.c.l.b16 %v2669
        %v2686 = vunpack.c.l.b16 %v2670
        %v2687 = vpack.c.b16 %v2680, %v2679
        %v2688 = vpack.c.b16 %v2682, %v2681
        %v2689 = vpack.c.b16 %v2684, %v2683
        %v2690 = vpack.c.b16 %v2686, %v2685
        %v2696 = vsel %vm2604, %v2661, 0
        %2698 = vmatpush.bf16.msra.mxu0 0
        %2699 = vmatpush.bf16.msra.mxu0 0
        %2700 = vmatpush.bf16.msra.mxu0 0
        %2701 = vmatpush.bf16.msra.mxu0 0
        %2702 = vmatpush.bf16.msra.mxu0 %v2690
        %2703 = vmatpush.bf16.msra.mxu0 %v2689
        %2704 = vmatpush.bf16.msra.mxu0 %v2688
        %2705 = vmatpush.bf16.msra.mxu0 %v2687
        %2706 = vmatmul.bf16.gmra.mxu0 %v2696
        %v2707 = vpop.f32.mrf.mxu0
        %v2708 = vadd.f32 0.0, %v2707
        %v2709 = vpop.f32.mrf.mxu0
        %2710 = vdwg.mxu0
        %v2711 = vadd.f32 %v2658, %v2708
        %v2712 = vpack.c.bf16 %v2545, %v2545
        %s2713 = scalar_lea.vmem %s3, 96
        %v2714 = vld [vmem:[%s2713] sm:$0xf]
        %v2715 = vld [vmem:[%s2713 + $0x4] sm:$0xf]
        %v2716 = vld [vmem:[%s2713 + $0x8] sm:$0xf]
        %v2717 = vld [vmem:[%s2713 + $0xc] sm:$0xf]
        %v2718 = vld [vmem:[%s2713 + $0x10] sm:$0xf]
        %v2719 = vld [vmem:[%s2713 + $0x14] sm:$0xf]
        %v2720 = vld [vmem:[%s2713 + $0x18] sm:$0xf]
        %v2721 = vld [vmem:[%s2713 + $0x1c] sm:$0xf]
        %v2730 = vunpack.c.l.b16 %v2714
        %v2731 = vunpack.c.l.b16 %v2715
        %v2732 = vunpack.c.l.b16 %v2716
        %v2733 = vunpack.c.l.b16 %v2717
        %v2734 = vunpack.c.l.b16 %v2718
        %v2735 = vunpack.c.l.b16 %v2719
        %v2736 = vunpack.c.l.b16 %v2720
        %v2737 = vunpack.c.l.b16 %v2721
        %v2738 = vpack.c.b16 %v2731, %v2730
        %v2739 = vpack.c.b16 %v2733, %v2732
        %v2740 = vpack.c.b16 %v2735, %v2734
        %v2741 = vpack.c.b16 %v2737, %v2736
        %v2747 = vsel %vm2604, %v2712, 0
        %2749 = vmatpush.bf16.msra.mxu0 0
        %2750 = vmatpush.bf16.msra.mxu0 0
        %2751 = vmatpush.bf16.msra.mxu0 0
        %2752 = vmatpush.bf16.msra.mxu0 0
        %2753 = vmatpush.bf16.msra.mxu0 %v2741
        %2754 = vmatpush.bf16.msra.mxu0 %v2740
        %2755 = vmatpush.bf16.msra.mxu0 %v2739
        %2756 = vmatpush.bf16.msra.mxu0 %v2738
        %2757 = vmatmul.bf16.gmra.mxu0 %v2747
        %v2758 = vpop.f32.mrf.mxu0
        %v2759 = vadd.f32 0.0, %v2758
        %v2760 = vpop.f32.mrf.mxu0
        %2761 = vdwg.mxu0
        %v2762 = vadd.f32 %v2711, %v2759
        %v2763 = vpack.c.bf16 %v2548, %v2548
        %s2764 = scalar_lea.vmem %s3, 128
        %v2765 = vld [vmem:[%s2764] sm:$0xf]
        %v2766 = vld [vmem:[%s2764 + $0x4] sm:$0xf]
        %v2767 = vld [vmem:[%s2764 + $0x8] sm:$0xf]
        %v2768 = vld [vmem:[%s2764 + $0xc] sm:$0xf]
        %v2769 = vld [vmem:[%s2764 + $0x10] sm:$0xf]
        %v2770 = vld [vmem:[%s2764 + $0x14] sm:$0xf]
        %v2771 = vld [vmem:[%s2764 + $0x18] sm:$0xf]
        %v2772 = vld [vmem:[%s2764 + $0x1c] sm:$0xf]
        %v2781 = vunpack.c.l.b16 %v2765
        %v2782 = vunpack.c.l.b16 %v2766
        %v2783 = vunpack.c.l.b16 %v2767
        %v2784 = vunpack.c.l.b16 %v2768
        %v2785 = vunpack.c.l.b16 %v2769
        %v2786 = vunpack.c.l.b16 %v2770
        %v2787 = vunpack.c.l.b16 %v2771
        %v2788 = vunpack.c.l.b16 %v2772
        %v2789 = vpack.c.b16 %v2782, %v2781
        %v2790 = vpack.c.b16 %v2784, %v2783
        %v2791 = vpack.c.b16 %v2786, %v2785
        %v2792 = vpack.c.b16 %v2788, %v2787
        %v2798 = vsel %vm2604, %v2763, 0
        %2800 = vmatpush.bf16.msra.mxu0 0
        %2801 = vmatpush.bf16.msra.mxu0 0
        %2802 = vmatpush.bf16.msra.mxu0 0
        %2803 = vmatpush.bf16.msra.mxu0 0
        %2804 = vmatpush.bf16.msra.mxu0 %v2792
        %2805 = vmatpush.bf16.msra.mxu0 %v2791
        %2806 = vmatpush.bf16.msra.mxu0 %v2790
        %2807 = vmatpush.bf16.msra.mxu0 %v2789
        %2808 = vmatmul.bf16.gmra.mxu0 %v2798
        %v2809 = vpop.f32.mrf.mxu0
        %v2810 = vadd.f32 0.0, %v2809
        %v2811 = vpop.f32.mrf.mxu0
        %2812 = vdwg.mxu0
        %v2813 = vadd.f32 %v2762, %v2810
        %v2814 = vpack.c.bf16 %v2550, %v2550
        %s2815 = scalar_lea.vmem %s3, 160
        %v2816 = vld [vmem:[%s2815] sm:$0xf]
        %v2817 = vld [vmem:[%s2815 + $0x4] sm:$0xf]
        %v2818 = vld [vmem:[%s2815 + $0x8] sm:$0xf]
        %v2819 = vld [vmem:[%s2815 + $0xc] sm:$0xf]
        %v2820 = vld [vmem:[%s2815 + $0x10] sm:$0xf]
        %v2821 = vld [vmem:[%s2815 + $0x14] sm:$0xf]
        %v2822 = vld [vmem:[%s2815 + $0x18] sm:$0xf]
        %v2823 = vld [vmem:[%s2815 + $0x1c] sm:$0xf]
        %v2832 = vunpack.c.l.b16 %v2816
        %v2833 = vunpack.c.l.b16 %v2817
        %v2834 = vunpack.c.l.b16 %v2818
        %v2835 = vunpack.c.l.b16 %v2819
        %v2836 = vunpack.c.l.b16 %v2820
        %v2837 = vunpack.c.l.b16 %v2821
        %v2838 = vunpack.c.l.b16 %v2822
        %v2839 = vunpack.c.l.b16 %v2823
        %v2840 = vpack.c.b16 %v2833, %v2832
        %v2841 = vpack.c.b16 %v2835, %v2834
        %v2842 = vpack.c.b16 %v2837, %v2836
        %v2843 = vpack.c.b16 %v2839, %v2838
        %v2849 = vsel %vm2604, %v2814, 0
        %2851 = vmatpush.bf16.msra.mxu0 0
        %2852 = vmatpush.bf16.msra.mxu0 0
        %2853 = vmatpush.bf16.msra.mxu0 0
        %2854 = vmatpush.bf16.msra.mxu0 0
        %2855 = vmatpush.bf16.msra.mxu0 %v2843
        %2856 = vmatpush.bf16.msra.mxu0 %v2842
        %2857 = vmatpush.bf16.msra.mxu0 %v2841
        %2858 = vmatpush.bf16.msra.mxu0 %v2840
        %2859 = vmatmul.bf16.gmra.mxu0 %v2849
        %v2860 = vpop.f32.mrf.mxu0
        %v2861 = vadd.f32 0.0, %v2860
        %v2862 = vpop.f32.mrf.mxu0
        %2863 = vdwg.mxu0
        %v2864 = vadd.f32 %v2813, %v2861
        %v2865 = vpack.c.bf16 %v2553, %v2553
        %s2866 = scalar_lea.vmem %s3, 192
        %v2867 = vld [vmem:[%s2866] sm:$0xf]
        %v2868 = vld [vmem:[%s2866 + $0x4] sm:$0xf]
        %v2869 = vld [vmem:[%s2866 + $0x8] sm:$0xf]
        %v2870 = vld [vmem:[%s2866 + $0xc] sm:$0xf]
        %v2871 = vld [vmem:[%s2866 + $0x10] sm:$0xf]
        %v2872 = vld [vmem:[%s2866 + $0x14] sm:$0xf]
        %v2873 = vld [vmem:[%s2866 + $0x18] sm:$0xf]
        %v2874 = vld [vmem:[%s2866 + $0x1c] sm:$0xf]
        %v2883 = vunpack.c.l.b16 %v2867
        %v2884 = vunpack.c.l.b16 %v2868
        %v2885 = vunpack.c.l.b16 %v2869
        %v2886 = vunpack.c.l.b16 %v2870
        %v2887 = vunpack.c.l.b16 %v2871
        %v2888 = vunpack.c.l.b16 %v2872
        %v2889 = vunpack.c.l.b16 %v2873
        %v2890 = vunpack.c.l.b16 %v2874
        %v2891 = vpack.c.b16 %v2884, %v2883
        %v2892 = vpack.c.b16 %v2886, %v2885
        %v2893 = vpack.c.b16 %v2888, %v2887
        %v2894 = vpack.c.b16 %v2890, %v2889
        %v2900 = vsel %vm2604, %v2865, 0
        %2902 = vmatpush.bf16.msra.mxu0 0
        %2903 = vmatpush.bf16.msra.mxu0 0
        %2904 = vmatpush.bf16.msra.mxu0 0
        %2905 = vmatpush.bf16.msra.mxu0 0
        %2906 = vmatpush.bf16.msra.mxu0 %v2894
        %2907 = vmatpush.bf16.msra.mxu0 %v2893
        %2908 = vmatpush.bf16.msra.mxu0 %v2892
        %2909 = vmatpush.bf16.msra.mxu0 %v2891
        %2910 = vmatmul.bf16.gmra.mxu0 %v2900
        %v2911 = vpop.f32.mrf.mxu0
        %v2912 = vadd.f32 0.0, %v2911
        %v2913 = vpop.f32.mrf.mxu0
        %2914 = vdwg.mxu0
        %v2915 = vadd.f32 %v2864, %v2912
        %v2916 = vpack.c.bf16 %v2555, %v2555
        %s2917 = scalar_lea.vmem %s3, 224
        %v2918 = vld [vmem:[%s2917] sm:$0xf]
        %v2919 = vld [vmem:[%s2917 + $0x4] sm:$0xf]
        %v2920 = vld [vmem:[%s2917 + $0x8] sm:$0xf]
        %v2921 = vld [vmem:[%s2917 + $0xc] sm:$0xf]
        %v2922 = vld [vmem:[%s2917 + $0x10] sm:$0xf]
        %v2923 = vld [vmem:[%s2917 + $0x14] sm:$0xf]
        %v2924 = vld [vmem:[%s2917 + $0x18] sm:$0xf]
        %v2925 = vld [vmem:[%s2917 + $0x1c] sm:$0xf]
        %v2934 = vunpack.c.l.b16 %v2918
        %v2935 = vunpack.c.l.b16 %v2919
        %v2936 = vunpack.c.l.b16 %v2920
        %v2937 = vunpack.c.l.b16 %v2921
        %v2938 = vunpack.c.l.b16 %v2922
        %v2939 = vunpack.c.l.b16 %v2923
        %v2940 = vunpack.c.l.b16 %v2924
        %v2941 = vunpack.c.l.b16 %v2925
        %v2942 = vpack.c.b16 %v2935, %v2934
        %v2943 = vpack.c.b16 %v2937, %v2936
        %v2944 = vpack.c.b16 %v2939, %v2938
        %v2945 = vpack.c.b16 %v2941, %v2940
        %v2951 = vsel %vm2604, %v2916, 0
        %2953 = vmatpush.bf16.msra.mxu0 0
        %2954 = vmatpush.bf16.msra.mxu0 0
        %2955 = vmatpush.bf16.msra.mxu0 0
        %2956 = vmatpush.bf16.msra.mxu0 0
        %2957 = vmatpush.bf16.msra.mxu0 %v2945
        %2958 = vmatpush.bf16.msra.mxu0 %v2944
        %2959 = vmatpush.bf16.msra.mxu0 %v2943
        %2960 = vmatpush.bf16.msra.mxu0 %v2942
        %2961 = vmatmul.bf16.gmra.mxu0 %v2951
        %v2962 = vpop.f32.mrf.mxu0
        %v2963 = vadd.f32 0.0, %v2962
        %v2964 = vpop.f32.mrf.mxu0
        %2965 = vdwg.mxu0
        %v2966 = vadd.f32 %v2915, %v2963
        %v2967 = vpack.c.bf16 %v2558, %v2558
        %s2968 = scalar_lea.vmem %s3, 256
        %v2969 = vld [vmem:[%s2968] sm:$0xf]
        %v2970 = vld [vmem:[%s2968 + $0x4] sm:$0xf]
        %v2971 = vld [vmem:[%s2968 + $0x8] sm:$0xf]
        %v2972 = vld [vmem:[%s2968 + $0xc] sm:$0xf]
        %v2973 = vld [vmem:[%s2968 + $0x10] sm:$0xf]
        %v2974 = vld [vmem:[%s2968 + $0x14] sm:$0xf]
        %v2975 = vld [vmem:[%s2968 + $0x18] sm:$0xf]
        %v2976 = vld [vmem:[%s2968 + $0x1c] sm:$0xf]
        %v2985 = vunpack.c.l.b16 %v2969
        %v2986 = vunpack.c.l.b16 %v2970
        %v2987 = vunpack.c.l.b16 %v2971
        %v2988 = vunpack.c.l.b16 %v2972
        %v2989 = vunpack.c.l.b16 %v2973
        %v2990 = vunpack.c.l.b16 %v2974
        %v2991 = vunpack.c.l.b16 %v2975
        %v2992 = vunpack.c.l.b16 %v2976
        %v2993 = vpack.c.b16 %v2986, %v2985
        %v2994 = vpack.c.b16 %v2988, %v2987
        %v2995 = vpack.c.b16 %v2990, %v2989
        %v2996 = vpack.c.b16 %v2992, %v2991
        %v3002 = vsel %vm2604, %v2967, 0
        %3004 = vmatpush.bf16.msra.mxu0 0
        %3005 = vmatpush.bf16.msra.mxu0 0
        %3006 = vmatpush.bf16.msra.mxu0 0
        %3007 = vmatpush.bf16.msra.mxu0 0
        %3008 = vmatpush.bf16.msra.mxu0 %v2996
        %3009 = vmatpush.bf16.msra.mxu0 %v2995
        %3010 = vmatpush.bf16.msra.mxu0 %v2994
        %3011 = vmatpush.bf16.msra.mxu0 %v2993
        %3012 = vmatmul.bf16.gmra.mxu0 %v3002
        %v3013 = vpop.f32.mrf.mxu0
        %v3014 = vadd.f32 0.0, %v3013
        %v3015 = vpop.f32.mrf.mxu0
        %3016 = vdwg.mxu0
        %v3017 = vadd.f32 %v2966, %v3014
        %v3018 = vld [vmem:[%s4] sm:$0x1]
        %v3020 = vperm.slane %v3018, 0
        %v3022 = vadd.f32 %v3017, %v3020
        %v3023 = vmax.f32 %v3022, 0.0
        %v3024 = vsel %vm2604, %v3023, 0.0
        %v3025 = vrot.slane %v3024, 4
        %v3026 = vadd.f32 %v3024, %v3025
        %v3027 = vrot.slane %v3026, 2
        %v3028 = vadd.f32 %v3026, %v3027
        %v3029 = vrot.slane %v3028, 1
        %v3030 = vadd.f32 %v3028, %v3029
        %v3031 = vmul.f32 %v3030, 0.125
        %v3032 = vld [vmem:[%s5] sm:$0xff]
        %v3033 = vld [vmem:[%s5 + $0x8] sm:$0xff]
        %v3034 = vld [vmem:[%s5 + $0x10] sm:$0xff]
        %v3035 = vld [vmem:[%s5 + $0x18] sm:$0xff]
        %v3036 = vld [vmem:[%s5 + $0x20] sm:$0xff]
        %v3037 = vld [vmem:[%s5 + $0x28] sm:$0xff]
        %v3038 = vld [vmem:[%s5 + $0x30] sm:$0xff]
        %v3039 = vld [vmem:[%s5 + $0x38] sm:$0xff]
        %v3040 = vld [vmem:[%s6] sm:$0x1]
        %v3042 = vsel %vm2604, %v3031, 0
        %3044 = vmatpush.msra.mxu0 0.0
        %3045 = vmatpush.msra.mxu0 0.0
        %3046 = vmatpush.msra.mxu0 0.0
        %3047 = vmatpush.msra.mxu0 0.0
        %3048 = vmatpush.msra.mxu0 0.0
        %3049 = vmatpush.msra.mxu0 0.0
        %3050 = vmatpush.msra.mxu0 0.0
        %3051 = vmatpush.msra.mxu0 0.0
        %3052 = vmatpush.msra.mxu0 %v3039
        %3053 = vmatpush.msra.mxu0 %v3038
        %3054 = vmatpush.msra.mxu0 %v3037
        %3055 = vmatpush.msra.mxu0 %v3036
        %3056 = vmatpush.msra.mxu0 %v3035
        %3057 = vmatpush.msra.mxu0 %v3034
        %3058 = vmatpush.msra.mxu0 %v3033
        %3059 = vmatpush.msra.mxu0 %v3032
        %3060 = vmatmul.f32.gmra.mxu0 %v3042
        %v3061 = vpop.f32.mrf.mxu0
        %v3062 = vadd.f32 %v3040, %v3061
        %3063 = vdwg.mxu0
        %v3064 = vld [vmem:[%s7] sm:$0xff]
        %v3065 = vld [vmem:[%s7 + $0x8] sm:$0xff]
        %v3066 = vld [vmem:[%s7 + $0x10] sm:$0xff]
        %v3067 = vld [vmem:[%s7 + $0x18] sm:$0xff]
        %v3068 = vld [vmem:[%s7 + $0x20] sm:$0xff]
        %v3069 = vld [vmem:[%s7 + $0x28] sm:$0xff]
        %v3070 = vld [vmem:[%s7 + $0x30] sm:$0xff]
        %v3071 = vld [vmem:[%s7 + $0x38] sm:$0xff]
        %v3072 = vld [vmem:[%s8] sm:$0x1]
        %v3074 = vsel %vm2604, %v3062, 0
        %3076 = vmatpush.msra.mxu0 0.0
        %3077 = vmatpush.msra.mxu0 0.0
        %3078 = vmatpush.msra.mxu0 0.0
        %3079 = vmatpush.msra.mxu0 0.0
        %3080 = vmatpush.msra.mxu0 0.0
        %3081 = vmatpush.msra.mxu0 0.0
        %3082 = vmatpush.msra.mxu0 0.0
        %3083 = vmatpush.msra.mxu0 0.0
        %3084 = vmatpush.msra.mxu0 %v3071
        %3085 = vmatpush.msra.mxu0 %v3070
        %3086 = vmatpush.msra.mxu0 %v3069
        %3087 = vmatpush.msra.mxu0 %v3068
        %3088 = vmatpush.msra.mxu0 %v3067
        %3089 = vmatpush.msra.mxu0 %v3066
        %3090 = vmatpush.msra.mxu0 %v3065
        %3091 = vmatpush.msra.mxu0 %v3064
        %3092 = vmatmul.f32.gmra.mxu0 %v3074
        %v3093 = vpop.f32.mrf.mxu0
        %v3094 = vadd.f32 %v3072, %v3093
        %3095 = vdwg.mxu0
        %vm3096 = vcmask 122880
        %3097 = vst.msk [vmem:[%s339] sm:$0x1] %vm3096, %v3094
        %s3098 = sand.u32 %s230, 1
        %s3099 = scalar_lea.sflag [#allocation3], %s3098
        %s3100 = sand.u32 %s230, 1
        %s3101 = scalar_lea.vmem [#allocation2], %s3100
        // Predicated region
        $region57: #{hard_distangle_head_forward.1} parent=55 // pred_check
          %p3102 = pneg %p240
        $region58: #{hard_distangle_head_forward.1} parent=55 // pred_check_branch
          %3104 = sbr.rel (%p3102) target = $region60
        $region59: #{hard_distangle_head_forward.1} parent=55 // pred_region
          %3106 = vsyncadd %s3099, 0
          %s3107 = scalar_lea.hbm %s9, %s23
          %s3109 = sshll.u32 %s3101, 4
          %s3110 = int_to_ptr.vmem [resolvable:$true] %s3109
          %s3111 = sshll.u32 %s3107, 4
          %s3112 = int_to_ptr.hbm [resolvable:$true] %s3111
          %3114 = dma.vmem_to_hbm [thread:$0]  %s3110, 16, %s3112, %s3099
        $region60: #{hard_distangle_head_forward.1} parent=55 // pred_fallthru
          _
      $region56: #{hard_distangle_head_forward.1} parent=5 // pred_fallthru
        _
      %p3115 = scmp.le.s32.totalorder 2, %s18
      // Predicated region
      $region61: #{hard_distangle_head_forward.1} parent=5 // pred_check
        %p3116 = pneg %p3115
      $region62: #{hard_distangle_head_forward.1} parent=5 // pred_check_branch
        %3118 = sbr.rel (%p3116) target = $region64
      $region63: #{hard_distangle_head_forward.1} parent=5 // pred_region
        %s3119 = ssub.s32 %s18, 2
        // Predicated region
        $region65: #{hard_distangle_head_forward.1} parent=63 // pred_check
          %p3120 = pneg %p246
        $region66: #{hard_distangle_head_forward.1} parent=63 // pred_check_branch
          %3122 = sbr.rel (%p3120) target = $region68
        $region67: #{hard_distangle_head_forward.1} parent=63 // pred_region
          %s3123 = sand.u32 %s231, 1
          %s3124 = scalar_lea.sflag [#allocation3], %s3123
          %s3125 = sand.u32 %s231, 1
          %s3126 = scalar_lea.vmem [#allocation2], %s3125
          %3128 = dma.done %s3124, 16
        $region68: #{hard_distangle_head_forward.1} parent=63 // pred_fallthru
          _
      $region64: #{hard_distangle_head_forward.1} parent=5 // pred_fallthru
        _
    $region6: #{hard_distangle_head_forward.1} parent=1 // loop_footer
      %s22 = sadd.s32 1, %s18
    $region7: #{hard_distangle_head_forward.1} parent=1 // loop_footer_branch
      %17 = sbr.rel target = $region3
    $region8: #{hard_distangle_head_forward.1} parent=1 // loop_exit
      _
    %3129 = vsyncpa [#allocation3], 1
    %s3130 = scalar_lea.sflag [#allocation3], 1
    %3131 = vsyncpa %s3130, 1

</llo_original>
